<compile_context>
chip_gen: v6e
topology: v6e:2x2x1
jax: 0.10.0
libtpu: 0.0.40
codegen_flags: <defaults>
</compile_context>

<pallas_src>
import jax
import jax.numpy as jnp
from jax import lax
from jax.experimental import pallas as pl
from jax.experimental.pallas import tpu as pltpu


def _encoder_gru_kernel(len_ref, x0_ref,
                        wr_ref, wz_ref, wn_ref,
                        ur_ref, uz_ref, un_ref,
                        br_ref, bz_ref, bni_ref, bnh_ref,
                        out_ref, hn_ref,
                        act_ref, gir_ref, giz_ref, gin_ref):
    """One grid step == one GRU layer over the full (masked) sequence."""
    l = pl.program_id(0)
    num_layers = pl.num_programs(0)

    TB, D = act_ref.shape           # T*B, padded input width
    B = hn_ref.shape[1]
    H = hn_ref.shape[2]
    T = TB // B

    # Layer 0 reads the embedded tokens; deeper layers read the previous
    # layer's outputs already sitting in the VMEM activation scratch.
    # The copy also initializes the (zero) tail columns H:D once, so the
    # per-step writeback below only needs to touch the H-wide output slice.
    @pl.when(l == 0)
    def _():
        act_ref[...] = x0_ref[...]

    # ---- Hoisted input projection (off the serial chain) ------------------
    # One batched (T*B, D) @ (D, H) matmul per gate; b_ir+b_hr, b_iz+b_hz and
    # b_in are folded here, only b_hn must stay inside the recurrence.
    x_all = act_ref[...]                                            # (T*B, D)
    gir_ref[...] = jnp.dot(x_all, wr_ref[0],
                           preferred_element_type=jnp.float32) + br_ref[0]
    giz_ref[...] = jnp.dot(x_all, wz_ref[0],
                           preferred_element_type=jnp.float32) + bz_ref[0]
    gin_ref[...] = jnp.dot(x_all, wn_ref[0],
                           preferred_element_type=jnp.float32) + bni_ref[0]

    lens = len_ref[...]                                             # (B, 1) i32
    u_r = ur_ref[0]                                                 # (H, H)
    u_z = uz_ref[0]
    u_n = un_ref[0]
    # Hoist the (1, H) -> (B, H) broadcast out of the time loop.
    b_hn = jnp.broadcast_to(bnh_ref[0], (B, H))

    # ---- Serial recurrence over time (single kernel invocation) -----------
    def step(t, h):
        off = pl.multiple_of(t * B, B)
        m = (t < lens).astype(jnp.float32)          # (B,1): 1 while t < len[b]

        gh_r = jnp.dot(h, u_r, preferred_element_type=jnp.float32)
        gh_z = jnp.dot(h, u_z, preferred_element_type=jnp.float32)
        gh_n = jnp.dot(h, u_n, preferred_element_type=jnp.float32) + b_hn

        r = jax.nn.sigmoid(gir_ref[pl.ds(off, B), :] + gh_r)
        z = jax.nn.sigmoid(giz_ref[pl.ds(off, B), :] + gh_z)
        n = jnp.tanh(gin_ref[pl.ds(off, B), :] + r * gh_n)
        h_new = (1.0 - z) * n + z * h

        out_t = m * h_new                           # zero at padded positions
        h_next = out_t + (1.0 - m) * h              # freeze finished sequences

        if D == H:                                  # static branch
            act_ref[pl.ds(off, B), :] = out_t
        else:
            # Tail columns H:D stay at their (zero / don't-care) layer-0
            # values; deeper layers' weight rows there are zero-padded.
            act_ref[pl.ds(off, B), 0:H] = out_t
        return h_next

    h0 = jnp.zeros((B, H), jnp.float32)
    h_final = lax.fori_loop(0, T, step, h0,
                            unroll=True if T <= 32 else 8)

    hn_ref[0] = h_final                             # per-layer final hidden

    # Lane-dense, one-shot writeback of the last layer's outputs.
    @pl.when(l == num_layers - 1)
    def _():
        out_ref[...] = act_ref[:, 0:H]


def _prep_layer(layer, in_dim, D, H):
    """Split PyTorch-layout GRU weights into per-gate, transposed, padded."""
    w_ih = jnp.asarray(layer["w_ih"], jnp.float32)      # (3H, in_dim)
    w_hh = jnp.asarray(layer["w_hh"], jnp.float32)      # (3H, H)
    b_ih = jnp.asarray(layer["b_ih"], jnp.float32)      # (3H,)
    b_hh = jnp.asarray(layer["b_hh"], jnp.float32)      # (3H,)

    def pad_rows(w):                                    # (in_dim, H) -> (D, H)
        if D > in_dim:
            return jnp.concatenate(
                [w, jnp.zeros((D - in_dim, H), jnp.float32)], axis=0)
        return w

    w_r = pad_rows(w_ih[0 * H:1 * H].T)
    w_z = pad_rows(w_ih[1 * H:2 * H].T)
    w_n = pad_rows(w_ih[2 * H:3 * H].T)
    u_r = w_hh[0 * H:1 * H].T
    u_z = w_hh[1 * H:2 * H].T
    u_n = w_hh[2 * H:3 * H].T
    b_r = (b_ih[0 * H:1 * H] + b_hh[0 * H:1 * H]).reshape(1, H)
    b_z = (b_ih[1 * H:2 * H] + b_hh[1 * H:2 * H]).reshape(1, H)
    b_ni = b_ih[2 * H:3 * H].reshape(1, H)
    b_nh = b_hh[2 * H:3 * H].reshape(1, H)
    return (w_r, w_z, w_n, u_r, u_z, u_n, b_r, b_z, b_ni, b_nh)


def encoder_forward_pallas(x_tokens, lengths, params):
    """x_tokens: (B, T) int32 token ids; lengths: (B,) int32.
    Returns (outputs (B, T, H), hidden (num_layers, B, H))."""
    B, T = x_tokens.shape
    emb = jnp.asarray(params["embedding"], jnp.float32)
    E = emb.shape[1]
    layers = params["gru_layers"]
    L = len(layers)
    H = layers[0]["w_hh"].shape[1]
    D = max(E, H)                     # common (padded) per-layer input width

    # Embedding gather, directly time-major (T, B, E) -> no extra transpose.
    # Dropout: module evaluated in eval mode -> identity.
    # TODO(synk): training-mode dropout (Bernoulli mask) not implemented.
    x_tm = jnp.take(emb, x_tokens.T, axis=0)
    if D > E:
        x_tm = jnp.pad(x_tm, ((0, 0), (0, 0), (0, D - E)))
    x_flat = x_tm.reshape(T * B, D)

    lens_2d = jnp.asarray(lengths, jnp.int32).reshape(B, 1)

    preps = [_prep_layer(layers[l], E if l == 0 else H, D, H) for l in range(L)]
    (w_r, w_z, w_n, u_r, u_z, u_n, b_r, b_z, b_ni, b_nh) = (
        jnp.stack([p[i] for p in preps], axis=0) for i in range(10))

    out_flat, hn = pl.pallas_call(
        _encoder_gru_kernel,
        out_shape=(
            jax.ShapeDtypeStruct((T * B, H), jnp.float32),
            jax.ShapeDtypeStruct((L, B, H), jnp.float32),
        ),
        grid_spec=pltpu.PrefetchScalarGridSpec(
            num_scalar_prefetch=0,
            grid=(L,),
            in_specs=[
                pl.BlockSpec((B, 1), lambda l: (0, 0)),          # lengths
                pl.BlockSpec((T * B, D), lambda l: (0, 0)),      # embedded x
                pl.BlockSpec((1, D, H), lambda l: (l, 0, 0)),    # W_ir^T
                pl.BlockSpec((1, D, H), lambda l: (l, 0, 0)),    # W_iz^T
                pl.BlockSpec((1, D, H), lambda l: (l, 0, 0)),    # W_in^T
                pl.BlockSpec((1, H, H), lambda l: (l, 0, 0)),    # W_hr^T
                pl.BlockSpec((1, H, H), lambda l: (l, 0, 0)),    # W_hz^T
                pl.BlockSpec((1, H, H), lambda l: (l, 0, 0)),    # W_hn^T
                pl.BlockSpec((1, 1, H), lambda l: (l, 0, 0)),    # b_ir + b_hr
                pl.BlockSpec((1, 1, H), lambda l: (l, 0, 0)),    # b_iz + b_hz
                pl.BlockSpec((1, 1, H), lambda l: (l, 0, 0)),    # b_in
                pl.BlockSpec((1, 1, H), lambda l: (l, 0, 0)),    # b_hn
            ],
            out_specs=[
                pl.BlockSpec((T * B, H), lambda l: (0, 0)),      # outputs
                pl.BlockSpec((1, B, H), lambda l: (l, 0, 0)),    # hidden per layer
            ],
            scratch_shapes=[
                pltpu.VMEM((T * B, D), jnp.float32),   # inter-layer activations
                pltpu.VMEM((T * B, H), jnp.float32),   # hoisted gi_r
                pltpu.VMEM((T * B, H), jnp.float32),   # hoisted gi_z
                pltpu.VMEM((T * B, H), jnp.float32),   # hoisted gi_n
            ],
        ),
        compiler_params=pltpu.CompilerParams(
            dimension_semantics=("arbitrary",)),       # layer l+1 depends on l
    )(lens_2d, x_flat, w_r, w_z, w_n, u_r, u_z, u_n, b_r, b_z, b_ni, b_nh)

    outputs = out_flat.reshape(T, B, H).transpose(1, 0, 2)   # batch_first
    return outputs, hn


# ------------------------- pure-JAX reference -------------------------
def _gru_layer_ref(x_tbe, mask_tb1, w_ih, w_hh, b_ih, b_hh):
    T, B, _ = x_tbe.shape
    H = w_hh.shape[1]

    def step(h, inp):
        x_t, m_t = inp
        gi = x_t @ w_ih.T + b_ih
        gh = h @ w_hh.T + b_hh
        i_r, i_z, i_n = jnp.split(gi, 3, axis=1)
        h_r, h_z, h_n = jnp.split(gh, 3, axis=1)
        r = jax.nn.sigmoid(i_r + h_r)
        z = jax.nn.sigmoid(i_z + h_z)
        n = jnp.tanh(i_n + r * h_n)
        h_new = (1.0 - z) * n + z * h
        h_next = m_t * h_new + (1.0 - m_t) * h
        return h_next, m_t * h_new

    h0 = jnp.zeros((B, H), jnp.float32)
    hT, outs = jax.lax.scan(step, h0, (x_tbe, mask_tb1))
    return outs, hT


def encoder_forward_ref(x_tokens, lengths, params):
    B, T = x_tokens.shape
    embedded = jnp.take(params["embedding"], x_tokens, axis=0)
    layer_in = jnp.transpose(embedded, (1, 0, 2)).astype(jnp.float32)
    mask = (jnp.arange(T)[:, None] < lengths[None, :]).astype(jnp.float32)[:, :, None]
    hiddens = []
    for layer in params["gru_layers"]:
        layer_in, hn = _gru_layer_ref(
            layer_in, mask, layer["w_ih"], layer["w_hh"], layer["b_ih"], layer["b_hh"])
        hiddens.append(hn)
    return jnp.transpose(layer_in, (1, 0, 2)), jnp.stack(hiddens, axis=0)


# ------------------------------- main ---------------------------------
if __name__ == "__main__":
    # Small shapes consistent with the module's forward:
    INPUT_SIZE = 50      # vocab
    EMBED_SIZE = 16
    HIDDEN_SIZE = 32
    NUM_LAYERS = 2
    B, T = 8, 8

    key = jax.random.PRNGKey(0)
    keys = jax.random.split(key, 4 + 4 * NUM_LAYERS)

    params = {
        "embedding": jax.random.normal(keys[0], (INPUT_SIZE, EMBED_SIZE),
                                       jnp.float32) * 0.1,
        "gru_layers": [],
    }
    k_i = 1
    for layer in range(NUM_LAYERS):
        in_dim = EMBED_SIZE if layer == 0 else HIDDEN_SIZE
        scale = 1.0 / jnp.sqrt(jnp.float32(HIDDEN_SIZE))
        params["gru_layers"].append({
            "w_ih": jax.random.uniform(keys[k_i + 0], (3 * HIDDEN_SIZE, in_dim),
                                       jnp.float32, -scale, scale),
            "w_hh": jax.random.uniform(keys[k_i + 1], (3 * HIDDEN_SIZE, HIDDEN_SIZE),
                                       jnp.float32, -scale, scale),
            "b_ih": jax.random.uniform(keys[k_i + 2], (3 * HIDDEN_SIZE,),
                                       jnp.float32, -scale, scale),
            "b_hh": jax.random.uniform(keys[k_i + 3], (3 * HIDDEN_SIZE,),
                                       jnp.float32, -scale, scale),
        })
        k_i += 4

    # Deterministic inputs: token ids (B, T) and lengths (B,) with max == T.
    x_tokens = jax.random.randint(keys[k_i], (B, T), 0, INPUT_SIZE, jnp.int32)
    lengths = jnp.array([T, 5, 3, T, 6, 2, 7, 4], jnp.int32)

    fwd = jax.jit(encoder_forward_pallas)
    outputs, hidden = fwd(x_tokens, lengths, params)
    jax.block_until_ready((outputs, hidden))

    ref_out, ref_hid = encoder_forward_ref(x_tokens, lengths, params)
    assert outputs.shape == (B, T, HIDDEN_SIZE)
    assert hidden.shape == (NUM_LAYERS, B, HIDDEN_SIZE)
    assert jnp.allclose(outputs, ref_out, atol=1e-5, rtol=1e-5)
    assert jnp.allclose(hidden, ref_hid, atol=1e-5, rtol=1e-5)

    print("KERNEL_OK")
</pallas_src>

<mosaic_0001>
module attributes {stable_mosaic.version = 11 : i64} {
  func.func @_encoder_gru_kernel(%arg0: i32, %arg1: memref<8x1xi32, #tpu.memory_space<vmem>>, %arg2: memref<64x32xf32, #tpu.memory_space<vmem>>, %arg3: memref<1x32x32xf32, #tpu.memory_space<vmem>>, %arg4: memref<1x32x32xf32, #tpu.memory_space<vmem>>, %arg5: memref<1x32x32xf32, #tpu.memory_space<vmem>>, %arg6: memref<1x32x32xf32, #tpu.memory_space<vmem>>, %arg7: memref<1x32x32xf32, #tpu.memory_space<vmem>>, %arg8: memref<1x32x32xf32, #tpu.memory_space<vmem>>, %arg9: memref<1x1x32xf32, #tpu.memory_space<vmem>>, %arg10: memref<1x1x32xf32, #tpu.memory_space<vmem>>, %arg11: memref<1x1x32xf32, #tpu.memory_space<vmem>>, %arg12: memref<1x1x32xf32, #tpu.memory_space<vmem>>, %arg13: memref<64x32xf32, #tpu.memory_space<vmem>>, %arg14: memref<1x8x32xf32, #tpu.memory_space<vmem>>, %arg15: memref<64x32xf32, #tpu.memory_space<vmem>>, %arg16: memref<64x32xf32, #tpu.memory_space<vmem>>, %arg17: memref<64x32xf32, #tpu.memory_space<vmem>>, %arg18: memref<64x32xf32, #tpu.memory_space<vmem>>) attributes {dimension_semantics = [#tpu.dimension_semantics<arbitrary>], iteration_bounds = array<i64: 2>, scalar_prefetch = 0 : i64, scratch_operands = 4 : i64, tpu.core_type = #tpu.core_type<tc>, window_params = [{pipeline_mode = #tpu.pipeline_mode<synchronous>, transform_indices = @transform_0, window_bounds = array<i64: 8, 1>}, {pipeline_mode = #tpu.pipeline_mode<synchronous>, transform_indices = @transform_1, window_bounds = array<i64: 64, 32>}, {transform_indices = @transform_2, window_bounds = array<i64: 1, 32, 32>}, {transform_indices = @transform_3, window_bounds = array<i64: 1, 32, 32>}, {transform_indices = @transform_4, window_bounds = array<i64: 1, 32, 32>}, {transform_indices = @transform_5, window_bounds = array<i64: 1, 32, 32>}, {transform_indices = @transform_6, window_bounds = array<i64: 1, 32, 32>}, {transform_indices = @transform_7, window_bounds = array<i64: 1, 32, 32>}, {transform_indices = @transform_8, window_bounds = array<i64: 1, 1, 32>}, {transform_indices = @transform_9, window_bounds = array<i64: 1, 1, 32>}, {transform_indices = @transform_10, window_bounds = array<i64: 1, 1, 32>}, {transform_indices = @transform_11, window_bounds = array<i64: 1, 1, 32>}, {pipeline_mode = #tpu.pipeline_mode<synchronous>, transform_indices = @transform_12, window_bounds = array<i64: 64, 32>}, {transform_indices = @transform_13, window_bounds = array<i64: 1, 8, 32>}]} {
    %c0_i32 = arith.constant 0 : i32
    %0 = arith.cmpi eq, %arg0, %c0_i32 : i32
    %1 = arith.extui %0 : i1 to i32
    %c0_i32_0 = arith.constant 0 : i32
    %2 = arith.cmpi ne, %1, %c0_i32_0 : i32
    scf.if %2 {
      %c0_145 = arith.constant 0 : index
      %c0_146 = arith.constant 0 : index
      %406 = vector.load %arg2[%c0_145, %c0_146] : memref<64x32xf32, #tpu.memory_space<vmem>>, vector<64x32xf32>
      %c0_147 = arith.constant 0 : index
      %c0_148 = arith.constant 0 : index
      %407 = vector.load %arg15[%c0_147, %c0_148] : memref<64x32xf32, #tpu.memory_space<vmem>>, vector<64x32xf32>
      tpu.vector_store %arg15[%c0_147, %c0_148], %406 {strides = array<i32>} : memref<64x32xf32, #tpu.memory_space<vmem>>, vector<64x32xf32>,
    } else {
    }
    %c0 = arith.constant 0 : index
    %c0_1 = arith.constant 0 : index
    %3 = vector.load %arg15[%c0, %c0_1] : memref<64x32xf32, #tpu.memory_space<vmem>>, vector<64x32xf32>
    %c0_2 = arith.constant 0 : index
    %c0_3 = arith.constant 0 : index
    %c0_4 = arith.constant 0 : index
    %4 = vector.load %arg3[%c0_2, %c0_3, %c0_4] : memref<1x32x32xf32, #tpu.memory_space<vmem>>, vector<1x32x32xf32>
    %5 = vector.shape_cast %4 : vector<1x32x32xf32> to vector<32x32xf32>
    %cst = arith.constant dense<0.000000e+00> : vector<64x32xf32>
    %6 = tpu.matmul %3, %5, %cst {dimension_numbers = #tpu.dot_dimension_numbers<[1], [0], [0], [1], [0, 0, 1, 1], [], []>} : vector<64x32xf32>, vector<32x32xf32>, vector<64x32xf32> -> vector<64x32xf32>
    %c0_5 = arith.constant 0 : index
    %c0_6 = arith.constant 0 : index
    %c0_7 = arith.constant 0 : index
    %7 = vector.load %arg9[%c0_5, %c0_6, %c0_7] : memref<1x1x32xf32, #tpu.memory_space<vmem>>, vector<1x1x32xf32>
    %8 = vector.shape_cast %7 : vector<1x1x32xf32> to vector<1x32xf32>
    %9 = vector.broadcast %8 : vector<1x32xf32> to vector<64x32xf32>
    %10 = arith.addf %6, %9 : vector<64x32xf32>
    %c0_8 = arith.constant 0 : index
    %c0_9 = arith.constant 0 : index
    %11 = vector.load %arg16[%c0_8, %c0_9] : memref<64x32xf32, #tpu.memory_space<vmem>>, vector<64x32xf32>
    tpu.vector_store %arg16[%c0_8, %c0_9], %10 {strides = array<i32>} : memref<64x32xf32, #tpu.memory_space<vmem>>, vector<64x32xf32>,
    %c0_10 = arith.constant 0 : index
    %c0_11 = arith.constant 0 : index
    %c0_12 = arith.constant 0 : index
    %12 = vector.load %arg4[%c0_10, %c0_11, %c0_12] : memref<1x32x32xf32, #tpu.memory_space<vmem>>, vector<1x32x32xf32>
    %13 = vector.shape_cast %12 : vector<1x32x32xf32> to vector<32x32xf32>
    %cst_13 = arith.constant dense<0.000000e+00> : vector<64x32xf32>
    %14 = tpu.matmul %3, %13, %cst_13 {dimension_numbers = #tpu.dot_dimension_numbers<[1], [0], [0], [1], [0, 0, 1, 1], [], []>} : vector<64x32xf32>, vector<32x32xf32>, vector<64x32xf32> -> vector<64x32xf32>
    %c0_14 = arith.constant 0 : index
    %c0_15 = arith.constant 0 : index
    %c0_16 = arith.constant 0 : index
    %15 = vector.load %arg10[%c0_14, %c0_15, %c0_16] : memref<1x1x32xf32, #tpu.memory_space<vmem>>, vector<1x1x32xf32>
    %16 = vector.shape_cast %15 : vector<1x1x32xf32> to vector<1x32xf32>
    %17 = vector.broadcast %16 : vector<1x32xf32> to vector<64x32xf32>
    %18 = arith.addf %14, %17 : vector<64x32xf32>
    %c0_17 = arith.constant 0 : index
    %c0_18 = arith.constant 0 : index
    %19 = vector.load %arg17[%c0_17, %c0_18] : memref<64x32xf32, #tpu.memory_space<vmem>>, vector<64x32xf32>
    tpu.vector_store %arg17[%c0_17, %c0_18], %18 {strides = array<i32>} : memref<64x32xf32, #tpu.memory_space<vmem>>, vector<64x32xf32>,
    %c0_19 = arith.constant 0 : index
    %c0_20 = arith.constant 0 : index
    %c0_21 = arith.constant 0 : index
    %20 = vector.load %arg5[%c0_19, %c0_20, %c0_21] : memref<1x32x32xf32, #tpu.memory_space<vmem>>, vector<1x32x32xf32>
    %21 = vector.shape_cast %20 : vector<1x32x32xf32> to vector<32x32xf32>
    %cst_22 = arith.constant dense<0.000000e+00> : vector<64x32xf32>
    %22 = tpu.matmul %3, %21, %cst_22 {dimension_numbers = #tpu.dot_dimension_numbers<[1], [0], [0], [1], [0, 0, 1, 1], [], []>} : vector<64x32xf32>, vector<32x32xf32>, vector<64x32xf32> -> vector<64x32xf32>
    %c0_23 = arith.constant 0 : index
    %c0_24 = arith.constant 0 : index
    %c0_25 = arith.constant 0 : index
    %23 = vector.load %arg11[%c0_23, %c0_24, %c0_25] : memref<1x1x32xf32, #tpu.memory_space<vmem>>, vector<1x1x32xf32>
    %24 = vector.shape_cast %23 : vector<1x1x32xf32> to vector<1x32xf32>
    %25 = vector.broadcast %24 : vector<1x32xf32> to vector<64x32xf32>
    %26 = arith.addf %22, %25 : vector<64x32xf32>
    %c0_26 = arith.constant 0 : index
    %c0_27 = arith.constant 0 : index
    %27 = vector.load %arg18[%c0_26, %c0_27] : memref<64x32xf32, #tpu.memory_space<vmem>>, vector<64x32xf32>
    tpu.vector_store %arg18[%c0_26, %c0_27], %26 {strides = array<i32>} : memref<64x32xf32, #tpu.memory_space<vmem>>, vector<64x32xf32>,
    %c0_28 = arith.constant 0 : index
    %c0_29 = arith.constant 0 : index
    %28 = vector.load %arg1[%c0_28, %c0_29] : memref<8x1xi32, #tpu.memory_space<vmem>>, vector<8x1xi32>
    %c0_30 = arith.constant 0 : index
    %c0_31 = arith.constant 0 : index
    %c0_32 = arith.constant 0 : index
    %29 = vector.load %arg6[%c0_30, %c0_31, %c0_32] : memref<1x32x32xf32, #tpu.memory_space<vmem>>, vector<1x32x32xf32>
    %30 = vector.shape_cast %29 : vector<1x32x32xf32> to vector<32x32xf32>
    %c0_33 = arith.constant 0 : index
    %c0_34 = arith.constant 0 : index
    %c0_35 = arith.constant 0 : index
    %31 = vector.load %arg7[%c0_33, %c0_34, %c0_35] : memref<1x32x32xf32, #tpu.memory_space<vmem>>, vector<1x32x32xf32>
    %32 = vector.shape_cast %31 : vector<1x32x32xf32> to vector<32x32xf32>
    %c0_36 = arith.constant 0 : index
    %c0_37 = arith.constant 0 : index
    %c0_38 = arith.constant 0 : index
    %33 = vector.load %arg8[%c0_36, %c0_37, %c0_38] : memref<1x32x32xf32, #tpu.memory_space<vmem>>, vector<1x32x32xf32>
    %34 = vector.shape_cast %33 : vector<1x32x32xf32> to vector<32x32xf32>
    %c0_39 = arith.constant 0 : index
    %c0_40 = arith.constant 0 : index
    %c0_41 = arith.constant 0 : index
    %35 = vector.load %arg12[%c0_39, %c0_40, %c0_41] : memref<1x1x32xf32, #tpu.memory_space<vmem>>, vector<1x1x32xf32>
    %36 = vector.shape_cast %35 : vector<1x1x32xf32> to vector<1x32xf32>
    %37 = vector.shape_cast %36 : vector<1x32xf32> to vector<1x32xf32>
    %38 = vector.broadcast %37 : vector<1x32xf32> to vector<8x32xf32>
    %cst_42 = arith.constant 0.000000e+00 : f32
    %39 = vector.broadcast %cst_42 : f32 to vector<8x32xf32>
    %c0_i32_43 = arith.constant 0 : i32
    %c8_i32 = arith.constant 8 : i32
    %40 = arith.muli %c0_i32_43, %c8_i32 : i32
    %41 = tpu.assume_multiple %40, 8 : i32
    %42 = vector.broadcast %c0_i32_43 : i32 to vector<8x1xi32>
    %43 = arith.cmpi slt, %42, %28 : vector<8x1xi32>
    %44 = arith.extui %43 : vector<8x1xi1> to vector<8x1xi32>
    %45 = arith.sitofp %44 : vector<8x1xi32> to vector<8x1xf32>
    %cst_44 = arith.constant dense<0.000000e+00> : vector<8x32xf32>
    %46 = tpu.matmul %39, %30, %cst_44 {dimension_numbers = #tpu.dot_dimension_numbers<[1], [0], [0], [1], [0, 0, 1, 1], [], []>} : vector<8x32xf32>, vector<32x32xf32>, vector<8x32xf32> -> vector<8x32xf32>
    %cst_45 = arith.constant dense<0.000000e+00> : vector<8x32xf32>
    %47 = tpu.matmul %39, %32, %cst_45 {dimension_numbers = #tpu.dot_dimension_numbers<[1], [0], [0], [1], [0, 0, 1, 1], [], []>} : vector<8x32xf32>, vector<32x32xf32>, vector<8x32xf32> -> vector<8x32xf32>
    %cst_46 = arith.constant dense<0.000000e+00> : vector<8x32xf32>
    %48 = tpu.matmul %39, %34, %cst_46 {dimension_numbers = #tpu.dot_dimension_numbers<[1], [0], [0], [1], [0, 0, 1, 1], [], []>} : vector<8x32xf32>, vector<32x32xf32>, vector<8x32xf32> -> vector<8x32xf32>
    %49 = arith.addf %48, %38 : vector<8x32xf32>
    %50 = arith.index_cast %41 : i32 to index
    %c0_47 = arith.constant 0 : index
    %51 = vector.load %arg16[%50, %c0_47] : memref<64x32xf32, #tpu.memory_space<vmem>>, vector<8x32xf32>
    %52 = arith.addf %51, %46 : vector<8x32xf32>
    %53 = arith.negf %52 : vector<8x32xf32>
    %54 = math.exp %53 : vector<8x32xf32>
    %cst_48 = arith.constant 1.000000e+00 : f32
    %55 = vector.broadcast %cst_48 : f32 to vector<8x32xf32>
    %56 = arith.addf %55, %54 : vector<8x32xf32>
    %57 = arith.divf %55, %56 : vector<8x32xf32>
    %58 = arith.index_cast %41 : i32 to index
    %c0_49 = arith.constant 0 : index
    %59 = vector.load %arg17[%58, %c0_49] : memref<64x32xf32, #tpu.memory_space<vmem>>, vector<8x32xf32>
    %60 = arith.addf %59, %47 : vector<8x32xf32>
    %61 = arith.negf %60 : vector<8x32xf32>
    %62 = math.exp %61 : vector<8x32xf32>
    %cst_50 = arith.constant 1.000000e+00 : f32
    %63 = vector.broadcast %cst_50 : f32 to vector<8x32xf32>
    %64 = arith.addf %63, %62 : vector<8x32xf32>
    %65 = arith.divf %63, %64 : vector<8x32xf32>
    %66 = arith.index_cast %41 : i32 to index
    %c0_51 = arith.constant 0 : index
    %67 = vector.load %arg18[%66, %c0_51] : memref<64x32xf32, #tpu.memory_space<vmem>>, vector<8x32xf32>
    %68 = arith.mulf %57, %49 : vector<8x32xf32>
    %69 = arith.addf %67, %68 : vector<8x32xf32>
    %70 = math.tanh %69 : vector<8x32xf32>
    %cst_52 = arith.constant 1.000000e+00 : f32
    %71 = vector.broadcast %cst_52 : f32 to vector<8x32xf32>
    %72 = arith.subf %71, %65 : vector<8x32xf32>
    %73 = arith.mulf %72, %70 : vector<8x32xf32>
    %74 = arith.mulf %65, %39 : vector<8x32xf32>
    %75 = arith.addf %73, %74 : vector<8x32xf32>
    %76 = vector.broadcast %45 : vector<8x1xf32> to vector<8x32xf32>
    %77 = arith.mulf %76, %75 : vector<8x32xf32>
    %cst_53 = arith.constant 1.000000e+00 : f32
    %78 = vector.broadcast %cst_53 : f32 to vector<8x1xf32>
    %79 = arith.subf %78, %45 : vector<8x1xf32>
    %80 = vector.broadcast %79 : vector<8x1xf32> to vector<8x32xf32>
    %81 = arith.mulf %80, %39 : vector<8x32xf32>
    %82 = arith.addf %77, %81 : vector<8x32xf32>
    %83 = arith.index_cast %41 : i32 to index
    %c0_54 = arith.constant 0 : index
    %84 = vector.load %arg15[%83, %c0_54] : memref<64x32xf32, #tpu.memory_space<vmem>>, vector<8x32xf32>
    tpu.vector_store %arg15[%83, %c0_54], %77 {strides = array<i32>} : memref<64x32xf32, #tpu.memory_space<vmem>>, vector<8x32xf32>,
    %c1_i32 = arith.constant 1 : i32
    %c8_i32_55 = arith.constant 8 : i32
    %85 = arith.muli %c1_i32, %c8_i32_55 : i32
    %86 = tpu.assume_multiple %85, 8 : i32
    %87 = vector.broadcast %c1_i32 : i32 to vector<8x1xi32>
    %88 = arith.cmpi slt, %87, %28 : vector<8x1xi32>
    %89 = arith.extui %88 : vector<8x1xi1> to vector<8x1xi32>
    %90 = arith.sitofp %89 : vector<8x1xi32> to vector<8x1xf32>
    %cst_56 = arith.constant dense<0.000000e+00> : vector<8x32xf32>
    %91 = tpu.matmul %82, %30, %cst_56 {dimension_numbers = #tpu.dot_dimension_numbers<[1], [0], [0], [1], [0, 0, 1, 1], [], []>} : vector<8x32xf32>, vector<32x32xf32>, vector<8x32xf32> -> vector<8x32xf32>
    %cst_57 = arith.constant dense<0.000000e+00> : vector<8x32xf32>
    %92 = tpu.matmul %82, %32, %cst_57 {dimension_numbers = #tpu.dot_dimension_numbers<[1], [0], [0], [1], [0, 0, 1, 1], [], []>} : vector<8x32xf32>, vector<32x32xf32>, vector<8x32xf32> -> vector<8x32xf32>
    %cst_58 = arith.constant dense<0.000000e+00> : vector<8x32xf32>
    %93 = tpu.matmul %82, %34, %cst_58 {dimension_numbers = #tpu.dot_dimension_numbers<[1], [0], [0], [1], [0, 0, 1, 1], [], []>} : vector<8x32xf32>, vector<32x32xf32>, vector<8x32xf32> -> vector<8x32xf32>
    %94 = arith.addf %93, %38 : vector<8x32xf32>
    %95 = arith.index_cast %86 : i32 to index
    %c0_59 = arith.constant 0 : index
    %96 = vector.load %arg16[%95, %c0_59] : memref<64x32xf32, #tpu.memory_space<vmem>>, vector<8x32xf32>
    %97 = arith.addf %96, %91 : vector<8x32xf32>
    %98 = arith.negf %97 : vector<8x32xf32>
    %99 = math.exp %98 : vector<8x32xf32>
    %cst_60 = arith.constant 1.000000e+00 : f32
    %100 = vector.broadcast %cst_60 : f32 to vector<8x32xf32>
    %101 = arith.addf %100, %99 : vector<8x32xf32>
    %102 = arith.divf %100, %101 : vector<8x32xf32>
    %103 = arith.index_cast %86 : i32 to index
    %c0_61 = arith.constant 0 : index
    %104 = vector.load %arg17[%103, %c0_61] : memref<64x32xf32, #tpu.memory_space<vmem>>, vector<8x32xf32>
    %105 = arith.addf %104, %92 : vector<8x32xf32>
    %106 = arith.negf %105 : vector<8x32xf32>
    %107 = math.exp %106 : vector<8x32xf32>
    %cst_62 = arith.constant 1.000000e+00 : f32
    %108 = vector.broadcast %cst_62 : f32 to vector<8x32xf32>
    %109 = arith.addf %108, %107 : vector<8x32xf32>
    %110 = arith.divf %108, %109 : vector<8x32xf32>
    %111 = arith.index_cast %86 : i32 to index
    %c0_63 = arith.constant 0 : index
    %112 = vector.load %arg18[%111, %c0_63] : memref<64x32xf32, #tpu.memory_space<vmem>>, vector<8x32xf32>
    %113 = arith.mulf %102, %94 : vector<8x32xf32>
    %114 = arith.addf %112, %113 : vector<8x32xf32>
    %115 = math.tanh %114 : vector<8x32xf32>
    %cst_64 = arith.constant 1.000000e+00 : f32
    %116 = vector.broadcast %cst_64 : f32 to vector<8x32xf32>
    %117 = arith.subf %116, %110 : vector<8x32xf32>
    %118 = arith.mulf %117, %115 : vector<8x32xf32>
    %119 = arith.mulf %110, %82 : vector<8x32xf32>
    %120 = arith.addf %118, %119 : vector<8x32xf32>
    %121 = vector.broadcast %90 : vector<8x1xf32> to vector<8x32xf32>
    %122 = arith.mulf %121, %120 : vector<8x32xf32>
    %cst_65 = arith.constant 1.000000e+00 : f32
    %123 = vector.broadcast %cst_65 : f32 to vector<8x1xf32>
    %124 = arith.subf %123, %90 : vector<8x1xf32>
    %125 = vector.broadcast %124 : vector<8x1xf32> to vector<8x32xf32>
    %126 = arith.mulf %125, %82 : vector<8x32xf32>
    %127 = arith.addf %122, %126 : vector<8x32xf32>
    %128 = arith.index_cast %86 : i32 to index
    %c0_66 = arith.constant 0 : index
    %129 = vector.load %arg15[%128, %c0_66] : memref<64x32xf32, #tpu.memory_space<vmem>>, vector<8x32xf32>
    tpu.vector_store %arg15[%128, %c0_66], %122 {strides = array<i32>} : memref<64x32xf32, #tpu.memory_space<vmem>>, vector<8x32xf32>,
    %c2_i32 = arith.constant 2 : i32
    %c8_i32_67 = arith.constant 8 : i32
    %130 = arith.muli %c2_i32, %c8_i32_67 : i32
    %131 = tpu.assume_multiple %130, 8 : i32
    %132 = vector.broadcast %c2_i32 : i32 to vector<8x1xi32>
    %133 = arith.cmpi slt, %132, %28 : vector<8x1xi32>
    %134 = arith.extui %133 : vector<8x1xi1> to vector<8x1xi32>
    %135 = arith.sitofp %134 : vector<8x1xi32> to vector<8x1xf32>
    %cst_68 = arith.constant dense<0.000000e+00> : vector<8x32xf32>
    %136 = tpu.matmul %127, %30, %cst_68 {dimension_numbers = #tpu.dot_dimension_numbers<[1], [0], [0], [1], [0, 0, 1, 1], [], []>} : vector<8x32xf32>, vector<32x32xf32>, vector<8x32xf32> -> vector<8x32xf32>
    %cst_69 = arith.constant dense<0.000000e+00> : vector<8x32xf32>
    %137 = tpu.matmul %127, %32, %cst_69 {dimension_numbers = #tpu.dot_dimension_numbers<[1], [0], [0], [1], [0, 0, 1, 1], [], []>} : vector<8x32xf32>, vector<32x32xf32>, vector<8x32xf32> -> vector<8x32xf32>
    %cst_70 = arith.constant dense<0.000000e+00> : vector<8x32xf32>
    %138 = tpu.matmul %127, %34, %cst_70 {dimension_numbers = #tpu.dot_dimension_numbers<[1], [0], [0], [1], [0, 0, 1, 1], [], []>} : vector<8x32xf32>, vector<32x32xf32>, vector<8x32xf32> -> vector<8x32xf32>
    %139 = arith.addf %138, %38 : vector<8x32xf32>
    %140 = arith.index_cast %131 : i32 to index
    %c0_71 = arith.constant 0 : index
    %141 = vector.load %arg16[%140, %c0_71] : memref<64x32xf32, #tpu.memory_space<vmem>>, vector<8x32xf32>
    %142 = arith.addf %141, %136 : vector<8x32xf32>
    %143 = arith.negf %142 : vector<8x32xf32>
    %144 = math.exp %143 : vector<8x32xf32>
    %cst_72 = arith.constant 1.000000e+00 : f32
    %145 = vector.broadcast %cst_72 : f32 to vector<8x32xf32>
    %146 = arith.addf %145, %144 : vector<8x32xf32>
    %147 = arith.divf %145, %146 : vector<8x32xf32>
    %148 = arith.index_cast %131 : i32 to index
    %c0_73 = arith.constant 0 : index
    %149 = vector.load %arg17[%148, %c0_73] : memref<64x32xf32, #tpu.memory_space<vmem>>, vector<8x32xf32>
    %150 = arith.addf %149, %137 : vector<8x32xf32>
    %151 = arith.negf %150 : vector<8x32xf32>
    %152 = math.exp %151 : vector<8x32xf32>
    %cst_74 = arith.constant 1.000000e+00 : f32
    %153 = vector.broadcast %cst_74 : f32 to vector<8x32xf32>
    %154 = arith.addf %153, %152 : vector<8x32xf32>
    %155 = arith.divf %153, %154 : vector<8x32xf32>
    %156 = arith.index_cast %131 : i32 to index
    %c0_75 = arith.constant 0 : index
    %157 = vector.load %arg18[%156, %c0_75] : memref<64x32xf32, #tpu.memory_space<vmem>>, vector<8x32xf32>
    %158 = arith.mulf %147, %139 : vector<8x32xf32>
    %159 = arith.addf %157, %158 : vector<8x32xf32>
    %160 = math.tanh %159 : vector<8x32xf32>
    %cst_76 = arith.constant 1.000000e+00 : f32
    %161 = vector.broadcast %cst_76 : f32 to vector<8x32xf32>
    %162 = arith.subf %161, %155 : vector<8x32xf32>
    %163 = arith.mulf %162, %160 : vector<8x32xf32>
    %164 = arith.mulf %155, %127 : vector<8x32xf32>
    %165 = arith.addf %163, %164 : vector<8x32xf32>
    %166 = vector.broadcast %135 : vector<8x1xf32> to vector<8x32xf32>
    %167 = arith.mulf %166, %165 : vector<8x32xf32>
    %cst_77 = arith.constant 1.000000e+00 : f32
    %168 = vector.broadcast %cst_77 : f32 to vector<8x1xf32>
    %169 = arith.subf %168, %135 : vector<8x1xf32>
    %170 = vector.broadcast %169 : vector<8x1xf32> to vector<8x32xf32>
    %171 = arith.mulf %170, %127 : vector<8x32xf32>
    %172 = arith.addf %167, %171 : vector<8x32xf32>
    %173 = arith.index_cast %131 : i32 to index
    %c0_78 = arith.constant 0 : index
    %174 = vector.load %arg15[%173, %c0_78] : memref<64x32xf32, #tpu.memory_space<vmem>>, vector<8x32xf32>
    tpu.vector_store %arg15[%173, %c0_78], %167 {strides = array<i32>} : memref<64x32xf32, #tpu.memory_space<vmem>>, vector<8x32xf32>,
    %c3_i32 = arith.constant 3 : i32
    %c8_i32_79 = arith.constant 8 : i32
    %175 = arith.muli %c3_i32, %c8_i32_79 : i32
    %176 = tpu.assume_multiple %175, 8 : i32
    %177 = vector.broadcast %c3_i32 : i32 to vector<8x1xi32>
    %178 = arith.cmpi slt, %177, %28 : vector<8x1xi32>
    %179 = arith.extui %178 : vector<8x1xi1> to vector<8x1xi32>
    %180 = arith.sitofp %179 : vector<8x1xi32> to vector<8x1xf32>
    %cst_80 = arith.constant dense<0.000000e+00> : vector<8x32xf32>
    %181 = tpu.matmul %172, %30, %cst_80 {dimension_numbers = #tpu.dot_dimension_numbers<[1], [0], [0], [1], [0, 0, 1, 1], [], []>} : vector<8x32xf32>, vector<32x32xf32>, vector<8x32xf32> -> vector<8x32xf32>
    %cst_81 = arith.constant dense<0.000000e+00> : vector<8x32xf32>
    %182 = tpu.matmul %172, %32, %cst_81 {dimension_numbers = #tpu.dot_dimension_numbers<[1], [0], [0], [1], [0, 0, 1, 1], [], []>} : vector<8x32xf32>, vector<32x32xf32>, vector<8x32xf32> -> vector<8x32xf32>
    %cst_82 = arith.constant dense<0.000000e+00> : vector<8x32xf32>
    %183 = tpu.matmul %172, %34, %cst_82 {dimension_numbers = #tpu.dot_dimension_numbers<[1], [0], [0], [1], [0, 0, 1, 1], [], []>} : vector<8x32xf32>, vector<32x32xf32>, vector<8x32xf32> -> vector<8x32xf32>
    %184 = arith.addf %183, %38 : vector<8x32xf32>
    %185 = arith.index_cast %176 : i32 to index
    %c0_83 = arith.constant 0 : index
    %186 = vector.load %arg16[%185, %c0_83] : memref<64x32xf32, #tpu.memory_space<vmem>>, vector<8x32xf32>
    %187 = arith.addf %186, %181 : vector<8x32xf32>
    %188 = arith.negf %187 : vector<8x32xf32>
    %189 = math.exp %188 : vector<8x32xf32>
    %cst_84 = arith.constant 1.000000e+00 : f32
    %190 = vector.broadcast %cst_84 : f32 to vector<8x32xf32>
    %191 = arith.addf %190, %189 : vector<8x32xf32>
    %192 = arith.divf %190, %191 : vector<8x32xf32>
    %193 = arith.index_cast %176 : i32 to index
    %c0_85 = arith.constant 0 : index
    %194 = vector.load %arg17[%193, %c0_85] : memref<64x32xf32, #tpu.memory_space<vmem>>, vector<8x32xf32>
    %195 = arith.addf %194, %182 : vector<8x32xf32>
    %196 = arith.negf %195 : vector<8x32xf32>
    %197 = math.exp %196 : vector<8x32xf32>
    %cst_86 = arith.constant 1.000000e+00 : f32
    %198 = vector.broadcast %cst_86 : f32 to vector<8x32xf32>
    %199 = arith.addf %198, %197 : vector<8x32xf32>
    %200 = arith.divf %198, %199 : vector<8x32xf32>
    %201 = arith.index_cast %176 : i32 to index
    %c0_87 = arith.constant 0 : index
    %202 = vector.load %arg18[%201, %c0_87] : memref<64x32xf32, #tpu.memory_space<vmem>>, vector<8x32xf32>
    %203 = arith.mulf %192, %184 : vector<8x32xf32>
    %204 = arith.addf %202, %203 : vector<8x32xf32>
    %205 = math.tanh %204 : vector<8x32xf32>
    %cst_88 = arith.constant 1.000000e+00 : f32
    %206 = vector.broadcast %cst_88 : f32 to vector<8x32xf32>
    %207 = arith.subf %206, %200 : vector<8x32xf32>
    %208 = arith.mulf %207, %205 : vector<8x32xf32>
    %209 = arith.mulf %200, %172 : vector<8x32xf32>
    %210 = arith.addf %208, %209 : vector<8x32xf32>
    %211 = vector.broadcast %180 : vector<8x1xf32> to vector<8x32xf32>
    %212 = arith.mulf %211, %210 : vector<8x32xf32>
    %cst_89 = arith.constant 1.000000e+00 : f32
    %213 = vector.broadcast %cst_89 : f32 to vector<8x1xf32>
    %214 = arith.subf %213, %180 : vector<8x1xf32>
    %215 = vector.broadcast %214 : vector<8x1xf32> to vector<8x32xf32>
    %216 = arith.mulf %215, %172 : vector<8x32xf32>
    %217 = arith.addf %212, %216 : vector<8x32xf32>
    %218 = arith.index_cast %176 : i32 to index
    %c0_90 = arith.constant 0 : index
    %219 = vector.load %arg15[%218, %c0_90] : memref<64x32xf32, #tpu.memory_space<vmem>>, vector<8x32xf32>
    tpu.vector_store %arg15[%218, %c0_90], %212 {strides = array<i32>} : memref<64x32xf32, #tpu.memory_space<vmem>>, vector<8x32xf32>,
    %c4_i32 = arith.constant 4 : i32
    %c8_i32_91 = arith.constant 8 : i32
    %220 = arith.muli %c4_i32, %c8_i32_91 : i32
    %221 = tpu.assume_multiple %220, 8 : i32
    %222 = vector.broadcast %c4_i32 : i32 to vector<8x1xi32>
    %223 = arith.cmpi slt, %222, %28 : vector<8x1xi32>
    %224 = arith.extui %223 : vector<8x1xi1> to vector<8x1xi32>
    %225 = arith.sitofp %224 : vector<8x1xi32> to vector<8x1xf32>
    %cst_92 = arith.constant dense<0.000000e+00> : vector<8x32xf32>
    %226 = tpu.matmul %217, %30, %cst_92 {dimension_numbers = #tpu.dot_dimension_numbers<[1], [0], [0], [1], [0, 0, 1, 1], [], []>} : vector<8x32xf32>, vector<32x32xf32>, vector<8x32xf32> -> vector<8x32xf32>
    %cst_93 = arith.constant dense<0.000000e+00> : vector<8x32xf32>
    %227 = tpu.matmul %217, %32, %cst_93 {dimension_numbers = #tpu.dot_dimension_numbers<[1], [0], [0], [1], [0, 0, 1, 1], [], []>} : vector<8x32xf32>, vector<32x32xf32>, vector<8x32xf32> -> vector<8x32xf32>
    %cst_94 = arith.constant dense<0.000000e+00> : vector<8x32xf32>
    %228 = tpu.matmul %217, %34, %cst_94 {dimension_numbers = #tpu.dot_dimension_numbers<[1], [0], [0], [1], [0, 0, 1, 1], [], []>} : vector<8x32xf32>, vector<32x32xf32>, vector<8x32xf32> -> vector<8x32xf32>
    %229 = arith.addf %228, %38 : vector<8x32xf32>
    %230 = arith.index_cast %221 : i32 to index
    %c0_95 = arith.constant 0 : index
    %231 = vector.load %arg16[%230, %c0_95] : memref<64x32xf32, #tpu.memory_space<vmem>>, vector<8x32xf32>
    %232 = arith.addf %231, %226 : vector<8x32xf32>
    %233 = arith.negf %232 : vector<8x32xf32>
    %234 = math.exp %233 : vector<8x32xf32>
    %cst_96 = arith.constant 1.000000e+00 : f32
    %235 = vector.broadcast %cst_96 : f32 to vector<8x32xf32>
    %236 = arith.addf %235, %234 : vector<8x32xf32>
    %237 = arith.divf %235, %236 : vector<8x32xf32>
    %238 = arith.index_cast %221 : i32 to index
    %c0_97 = arith.constant 0 : index
    %239 = vector.load %arg17[%238, %c0_97] : memref<64x32xf32, #tpu.memory_space<vmem>>, vector<8x32xf32>
    %240 = arith.addf %239, %227 : vector<8x32xf32>
    %241 = arith.negf %240 : vector<8x32xf32>
    %242 = math.exp %241 : vector<8x32xf32>
    %cst_98 = arith.constant 1.000000e+00 : f32
    %243 = vector.broadcast %cst_98 : f32 to vector<8x32xf32>
    %244 = arith.addf %243, %242 : vector<8x32xf32>
    %245 = arith.divf %243, %244 : vector<8x32xf32>
    %246 = arith.index_cast %221 : i32 to index
    %c0_99 = arith.constant 0 : index
    %247 = vector.load %arg18[%246, %c0_99] : memref<64x32xf32, #tpu.memory_space<vmem>>, vector<8x32xf32>
    %248 = arith.mulf %237, %229 : vector<8x32xf32>
    %249 = arith.addf %247, %248 : vector<8x32xf32>
    %250 = math.tanh %249 : vector<8x32xf32>
    %cst_100 = arith.constant 1.000000e+00 : f32
    %251 = vector.broadcast %cst_100 : f32 to vector<8x32xf32>
    %252 = arith.subf %251, %245 : vector<8x32xf32>
    %253 = arith.mulf %252, %250 : vector<8x32xf32>
    %254 = arith.mulf %245, %217 : vector<8x32xf32>
    %255 = arith.addf %253, %254 : vector<8x32xf32>
    %256 = vector.broadcast %225 : vector<8x1xf32> to vector<8x32xf32>
    %257 = arith.mulf %256, %255 : vector<8x32xf32>
    %cst_101 = arith.constant 1.000000e+00 : f32
    %258 = vector.broadcast %cst_101 : f32 to vector<8x1xf32>
    %259 = arith.subf %258, %225 : vector<8x1xf32>
    %260 = vector.broadcast %259 : vector<8x1xf32> to vector<8x32xf32>
    %261 = arith.mulf %260, %217 : vector<8x32xf32>
    %262 = arith.addf %257, %261 : vector<8x32xf32>
    %263 = arith.index_cast %221 : i32 to index
    %c0_102 = arith.constant 0 : index
    %264 = vector.load %arg15[%263, %c0_102] : memref<64x32xf32, #tpu.memory_space<vmem>>, vector<8x32xf32>
    tpu.vector_store %arg15[%263, %c0_102], %257 {strides = array<i32>} : memref<64x32xf32, #tpu.memory_space<vmem>>, vector<8x32xf32>,
    %c5_i32 = arith.constant 5 : i32
    %c8_i32_103 = arith.constant 8 : i32
    %265 = arith.muli %c5_i32, %c8_i32_103 : i32
    %266 = tpu.assume_multiple %265, 8 : i32
    %267 = vector.broadcast %c5_i32 : i32 to vector<8x1xi32>
    %268 = arith.cmpi slt, %267, %28 : vector<8x1xi32>
    %269 = arith.extui %268 : vector<8x1xi1> to vector<8x1xi32>
    %270 = arith.sitofp %269 : vector<8x1xi32> to vector<8x1xf32>
    %cst_104 = arith.constant dense<0.000000e+00> : vector<8x32xf32>
    %271 = tpu.matmul %262, %30, %cst_104 {dimension_numbers = #tpu.dot_dimension_numbers<[1], [0], [0], [1], [0, 0, 1, 1], [], []>} : vector<8x32xf32>, vector<32x32xf32>, vector<8x32xf32> -> vector<8x32xf32>
    %cst_105 = arith.constant dense<0.000000e+00> : vector<8x32xf32>
    %272 = tpu.matmul %262, %32, %cst_105 {dimension_numbers = #tpu.dot_dimension_numbers<[1], [0], [0], [1], [0, 0, 1, 1], [], []>} : vector<8x32xf32>, vector<32x32xf32>, vector<8x32xf32> -> vector<8x32xf32>
    %cst_106 = arith.constant dense<0.000000e+00> : vector<8x32xf32>
    %273 = tpu.matmul %262, %34, %cst_106 {dimension_numbers = #tpu.dot_dimension_numbers<[1], [0], [0], [1], [0, 0, 1, 1], [], []>} : vector<8x32xf32>, vector<32x32xf32>, vector<8x32xf32> -> vector<8x32xf32>
    %274 = arith.addf %273, %38 : vector<8x32xf32>
    %275 = arith.index_cast %266 : i32 to index
    %c0_107 = arith.constant 0 : index
    %276 = vector.load %arg16[%275, %c0_107] : memref<64x32xf32, #tpu.memory_space<vmem>>, vector<8x32xf32>
    %277 = arith.addf %276, %271 : vector<8x32xf32>
    %278 = arith.negf %277 : vector<8x32xf32>
    %279 = math.exp %278 : vector<8x32xf32>
    %cst_108 = arith.constant 1.000000e+00 : f32
    %280 = vector.broadcast %cst_108 : f32 to vector<8x32xf32>
    %281 = arith.addf %280, %279 : vector<8x32xf32>
    %282 = arith.divf %280, %281 : vector<8x32xf32>
    %283 = arith.index_cast %266 : i32 to index
    %c0_109 = arith.constant 0 : index
    %284 = vector.load %arg17[%283, %c0_109] : memref<64x32xf32, #tpu.memory_space<vmem>>, vector<8x32xf32>
    %285 = arith.addf %284, %272 : vector<8x32xf32>
    %286 = arith.negf %285 : vector<8x32xf32>
    %287 = math.exp %286 : vector<8x32xf32>
    %cst_110 = arith.constant 1.000000e+00 : f32
    %288 = vector.broadcast %cst_110 : f32 to vector<8x32xf32>
    %289 = arith.addf %288, %287 : vector<8x32xf32>
    %290 = arith.divf %288, %289 : vector<8x32xf32>
    %291 = arith.index_cast %266 : i32 to index
    %c0_111 = arith.constant 0 : index
    %292 = vector.load %arg18[%291, %c0_111] : memref<64x32xf32, #tpu.memory_space<vmem>>, vector<8x32xf32>
    %293 = arith.mulf %282, %274 : vector<8x32xf32>
    %294 = arith.addf %292, %293 : vector<8x32xf32>
    %295 = math.tanh %294 : vector<8x32xf32>
    %cst_112 = arith.constant 1.000000e+00 : f32
    %296 = vector.broadcast %cst_112 : f32 to vector<8x32xf32>
    %297 = arith.subf %296, %290 : vector<8x32xf32>
    %298 = arith.mulf %297, %295 : vector<8x32xf32>
    %299 = arith.mulf %290, %262 : vector<8x32xf32>
    %300 = arith.addf %298, %299 : vector<8x32xf32>
    %301 = vector.broadcast %270 : vector<8x1xf32> to vector<8x32xf32>
    %302 = arith.mulf %301, %300 : vector<8x32xf32>
    %cst_113 = arith.constant 1.000000e+00 : f32
    %303 = vector.broadcast %cst_113 : f32 to vector<8x1xf32>
    %304 = arith.subf %303, %270 : vector<8x1xf32>
    %305 = vector.broadcast %304 : vector<8x1xf32> to vector<8x32xf32>
    %306 = arith.mulf %305, %262 : vector<8x32xf32>
    %307 = arith.addf %302, %306 : vector<8x32xf32>
    %308 = arith.index_cast %266 : i32 to index
    %c0_114 = arith.constant 0 : index
    %309 = vector.load %arg15[%308, %c0_114] : memref<64x32xf32, #tpu.memory_space<vmem>>, vector<8x32xf32>
    tpu.vector_store %arg15[%308, %c0_114], %302 {strides = array<i32>} : memref<64x32xf32, #tpu.memory_space<vmem>>, vector<8x32xf32>,
    %c6_i32 = arith.constant 6 : i32
    %c8_i32_115 = arith.constant 8 : i32
    %310 = arith.muli %c6_i32, %c8_i32_115 : i32
    %311 = tpu.assume_multiple %310, 8 : i32
    %312 = vector.broadcast %c6_i32 : i32 to vector<8x1xi32>
    %313 = arith.cmpi slt, %312, %28 : vector<8x1xi32>
    %314 = arith.extui %313 : vector<8x1xi1> to vector<8x1xi32>
    %315 = arith.sitofp %314 : vector<8x1xi32> to vector<8x1xf32>
    %cst_116 = arith.constant dense<0.000000e+00> : vector<8x32xf32>
    %316 = tpu.matmul %307, %30, %cst_116 {dimension_numbers = #tpu.dot_dimension_numbers<[1], [0], [0], [1], [0, 0, 1, 1], [], []>} : vector<8x32xf32>, vector<32x32xf32>, vector<8x32xf32> -> vector<8x32xf32>
    %cst_117 = arith.constant dense<0.000000e+00> : vector<8x32xf32>
    %317 = tpu.matmul %307, %32, %cst_117 {dimension_numbers = #tpu.dot_dimension_numbers<[1], [0], [0], [1], [0, 0, 1, 1], [], []>} : vector<8x32xf32>, vector<32x32xf32>, vector<8x32xf32> -> vector<8x32xf32>
    %cst_118 = arith.constant dense<0.000000e+00> : vector<8x32xf32>
    %318 = tpu.matmul %307, %34, %cst_118 {dimension_numbers = #tpu.dot_dimension_numbers<[1], [0], [0], [1], [0, 0, 1, 1], [], []>} : vector<8x32xf32>, vector<32x32xf32>, vector<8x32xf32> -> vector<8x32xf32>
    %319 = arith.addf %318, %38 : vector<8x32xf32>
    %320 = arith.index_cast %311 : i32 to index
    %c0_119 = arith.constant 0 : index
    %321 = vector.load %arg16[%320, %c0_119] : memref<64x32xf32, #tpu.memory_space<vmem>>, vector<8x32xf32>
    %322 = arith.addf %321, %316 : vector<8x32xf32>
    %323 = arith.negf %322 : vector<8x32xf32>
    %324 = math.exp %323 : vector<8x32xf32>
    %cst_120 = arith.constant 1.000000e+00 : f32
    %325 = vector.broadcast %cst_120 : f32 to vector<8x32xf32>
    %326 = arith.addf %325, %324 : vector<8x32xf32>
    %327 = arith.divf %325, %326 : vector<8x32xf32>
    %328 = arith.index_cast %311 : i32 to index
    %c0_121 = arith.constant 0 : index
    %329 = vector.load %arg17[%328, %c0_121] : memref<64x32xf32, #tpu.memory_space<vmem>>, vector<8x32xf32>
    %330 = arith.addf %329, %317 : vector<8x32xf32>
    %331 = arith.negf %330 : vector<8x32xf32>
    %332 = math.exp %331 : vector<8x32xf32>
    %cst_122 = arith.constant 1.000000e+00 : f32
    %333 = vector.broadcast %cst_122 : f32 to vector<8x32xf32>
    %334 = arith.addf %333, %332 : vector<8x32xf32>
    %335 = arith.divf %333, %334 : vector<8x32xf32>
    %336 = arith.index_cast %311 : i32 to index
    %c0_123 = arith.constant 0 : index
    %337 = vector.load %arg18[%336, %c0_123] : memref<64x32xf32, #tpu.memory_space<vmem>>, vector<8x32xf32>
    %338 = arith.mulf %327, %319 : vector<8x32xf32>
    %339 = arith.addf %337, %338 : vector<8x32xf32>
    %340 = math.tanh %339 : vector<8x32xf32>
    %cst_124 = arith.constant 1.000000e+00 : f32
    %341 = vector.broadcast %cst_124 : f32 to vector<8x32xf32>
    %342 = arith.subf %341, %335 : vector<8x32xf32>
    %343 = arith.mulf %342, %340 : vector<8x32xf32>
    %344 = arith.mulf %335, %307 : vector<8x32xf32>
    %345 = arith.addf %343, %344 : vector<8x32xf32>
    %346 = vector.broadcast %315 : vector<8x1xf32> to vector<8x32xf32>
    %347 = arith.mulf %346, %345 : vector<8x32xf32>
    %cst_125 = arith.constant 1.000000e+00 : f32
    %348 = vector.broadcast %cst_125 : f32 to vector<8x1xf32>
    %349 = arith.subf %348, %315 : vector<8x1xf32>
    %350 = vector.broadcast %349 : vector<8x1xf32> to vector<8x32xf32>
    %351 = arith.mulf %350, %307 : vector<8x32xf32>
    %352 = arith.addf %347, %351 : vector<8x32xf32>
    %353 = arith.index_cast %311 : i32 to index
    %c0_126 = arith.constant 0 : index
    %354 = vector.load %arg15[%353, %c0_126] : memref<64x32xf32, #tpu.memory_space<vmem>>, vector<8x32xf32>
    tpu.vector_store %arg15[%353, %c0_126], %347 {strides = array<i32>} : memref<64x32xf32, #tpu.memory_space<vmem>>, vector<8x32xf32>,
    %c7_i32 = arith.constant 7 : i32
    %c8_i32_127 = arith.constant 8 : i32
    %355 = arith.muli %c7_i32, %c8_i32_127 : i32
    %356 = tpu.assume_multiple %355, 8 : i32
    %357 = vector.broadcast %c7_i32 : i32 to vector<8x1xi32>
    %358 = arith.cmpi slt, %357, %28 : vector<8x1xi32>
    %359 = arith.extui %358 : vector<8x1xi1> to vector<8x1xi32>
    %360 = arith.sitofp %359 : vector<8x1xi32> to vector<8x1xf32>
    %cst_128 = arith.constant dense<0.000000e+00> : vector<8x32xf32>
    %361 = tpu.matmul %352, %30, %cst_128 {dimension_numbers = #tpu.dot_dimension_numbers<[1], [0], [0], [1], [0, 0, 1, 1], [], []>} : vector<8x32xf32>, vector<32x32xf32>, vector<8x32xf32> -> vector<8x32xf32>
    %cst_129 = arith.constant dense<0.000000e+00> : vector<8x32xf32>
    %362 = tpu.matmul %352, %32, %cst_129 {dimension_numbers = #tpu.dot_dimension_numbers<[1], [0], [0], [1], [0, 0, 1, 1], [], []>} : vector<8x32xf32>, vector<32x32xf32>, vector<8x32xf32> -> vector<8x32xf32>
    %cst_130 = arith.constant dense<0.000000e+00> : vector<8x32xf32>
    %363 = tpu.matmul %352, %34, %cst_130 {dimension_numbers = #tpu.dot_dimension_numbers<[1], [0], [0], [1], [0, 0, 1, 1], [], []>} : vector<8x32xf32>, vector<32x32xf32>, vector<8x32xf32> -> vector<8x32xf32>
    %364 = arith.addf %363, %38 : vector<8x32xf32>
    %365 = arith.index_cast %356 : i32 to index
    %c0_131 = arith.constant 0 : index
    %366 = vector.load %arg16[%365, %c0_131] : memref<64x32xf32, #tpu.memory_space<vmem>>, vector<8x32xf32>
    %367 = arith.addf %366, %361 : vector<8x32xf32>
    %368 = arith.negf %367 : vector<8x32xf32>
    %369 = math.exp %368 : vector<8x32xf32>
    %cst_132 = arith.constant 1.000000e+00 : f32
    %370 = vector.broadcast %cst_132 : f32 to vector<8x32xf32>
    %371 = arith.addf %370, %369 : vector<8x32xf32>
    %372 = arith.divf %370, %371 : vector<8x32xf32>
    %373 = arith.index_cast %356 : i32 to index
    %c0_133 = arith.constant 0 : index
    %374 = vector.load %arg17[%373, %c0_133] : memref<64x32xf32, #tpu.memory_space<vmem>>, vector<8x32xf32>
    %375 = arith.addf %374, %362 : vector<8x32xf32>
    %376 = arith.negf %375 : vector<8x32xf32>
    %377 = math.exp %376 : vector<8x32xf32>
    %cst_134 = arith.constant 1.000000e+00 : f32
    %378 = vector.broadcast %cst_134 : f32 to vector<8x32xf32>
    %379 = arith.addf %378, %377 : vector<8x32xf32>
    %380 = arith.divf %378, %379 : vector<8x32xf32>
    %381 = arith.index_cast %356 : i32 to index
    %c0_135 = arith.constant 0 : index
    %382 = vector.load %arg18[%381, %c0_135] : memref<64x32xf32, #tpu.memory_space<vmem>>, vector<8x32xf32>
    %383 = arith.mulf %372, %364 : vector<8x32xf32>
    %384 = arith.addf %382, %383 : vector<8x32xf32>
    %385 = math.tanh %384 : vector<8x32xf32>
    %cst_136 = arith.constant 1.000000e+00 : f32
    %386 = vector.broadcast %cst_136 : f32 to vector<8x32xf32>
    %387 = arith.subf %386, %380 : vector<8x32xf32>
    %388 = arith.mulf %387, %385 : vector<8x32xf32>
    %389 = arith.mulf %380, %352 : vector<8x32xf32>
    %390 = arith.addf %388, %389 : vector<8x32xf32>
    %391 = vector.broadcast %360 : vector<8x1xf32> to vector<8x32xf32>
    %392 = arith.mulf %391, %390 : vector<8x32xf32>
    %cst_137 = arith.constant 1.000000e+00 : f32
    %393 = vector.broadcast %cst_137 : f32 to vector<8x1xf32>
    %394 = arith.subf %393, %360 : vector<8x1xf32>
    %395 = vector.broadcast %394 : vector<8x1xf32> to vector<8x32xf32>
    %396 = arith.mulf %395, %352 : vector<8x32xf32>
    %397 = arith.addf %392, %396 : vector<8x32xf32>
    %398 = arith.index_cast %356 : i32 to index
    %c0_138 = arith.constant 0 : index
    %399 = vector.load %arg15[%398, %c0_138] : memref<64x32xf32, #tpu.memory_space<vmem>>, vector<8x32xf32>
    tpu.vector_store %arg15[%398, %c0_138], %392 {strides = array<i32>} : memref<64x32xf32, #tpu.memory_space<vmem>>, vector<8x32xf32>,
    %c8_i32_139 = arith.constant 8 : i32
    %c0_140 = arith.constant 0 : index
    %c0_141 = arith.constant 0 : index
    %c0_142 = arith.constant 0 : index
    %400 = vector.load %arg14[%c0_140, %c0_141, %c0_142] : memref<1x8x32xf32, #tpu.memory_space<vmem>>, vector<1x8x32xf32>
    %401 = vector.shape_cast %400 : vector<1x8x32xf32> to vector<8x32xf32>
    %402 = vector.shape_cast %397 : vector<8x32xf32> to vector<1x8x32xf32>
    tpu.vector_store %arg14[%c0_140, %c0_141, %c0_142], %402 {strides = array<i32>} : memref<1x8x32xf32, #tpu.memory_space<vmem>>, vector<1x8x32xf32>,
    %c1_i32_143 = arith.constant 1 : i32
    %403 = arith.cmpi eq, %arg0, %c1_i32_143 : i32
    %404 = arith.extui %403 : i1 to i32
    %c0_i32_144 = arith.constant 0 : i32
    %405 = arith.cmpi ne, %404, %c0_i32_144 : i32
    scf.if %405 {
      %c0_145 = arith.constant 0 : index
      %c0_146 = arith.constant 0 : index
      %406 = vector.load %arg15[%c0_145, %c0_146] : memref<64x32xf32, #tpu.memory_space<vmem>>, vector<64x32xf32>
      %c0_147 = arith.constant 0 : index
      %c0_148 = arith.constant 0 : index
      %407 = vector.load %arg13[%c0_147, %c0_148] : memref<64x32xf32, #tpu.memory_space<vmem>>, vector<64x32xf32>
      tpu.vector_store %arg13[%c0_147, %c0_148], %406 {strides = array<i32>} : memref<64x32xf32, #tpu.memory_space<vmem>>, vector<64x32xf32>,
    } else {
    }
    return
  }
  func.func @transform_0(%arg0: i32) -> (i32, i32) {
    %c0_i32 = arith.constant 0 : i32
    %c0_i32_0 = arith.constant 0 : i32
    %c0_i32_1 = arith.constant 0 : i32
    return %c0_i32, %c0_i32_0 : i32, i32
  }
  func.func @transform_1(%arg0: i32) -> (i32, i32) {
    %c0_i32 = arith.constant 0 : i32
    %c0_i32_0 = arith.constant 0 : i32
    %c0_i32_1 = arith.constant 0 : i32
    return %c0_i32, %c0_i32_0 : i32, i32
  }
  func.func @transform_2(%arg0: i32) -> (i32, i32, i32) {
    %c0_i32 = arith.constant 0 : i32
    %c0_i32_0 = arith.constant 0 : i32
    %c0_i32_1 = arith.constant 0 : i32
    return %arg0, %c0_i32, %c0_i32_0 : i32, i32, i32
  }
  func.func @transform_3(%arg0: i32) -> (i32, i32, i32) {
    %c0_i32 = arith.constant 0 : i32
    %c0_i32_0 = arith.constant 0 : i32
    %c0_i32_1 = arith.constant 0 : i32
    return %arg0, %c0_i32, %c0_i32_0 : i32, i32, i32
  }
  func.func @transform_4(%arg0: i32) -> (i32, i32, i32) {
    %c0_i32 = arith.constant 0 : i32
    %c0_i32_0 = arith.constant 0 : i32
    %c0_i32_1 = arith.constant 0 : i32
    return %arg0, %c0_i32, %c0_i32_0 : i32, i32, i32
  }
  func.func @transform_5(%arg0: i32) -> (i32, i32, i32) {
    %c0_i32 = arith.constant 0 : i32
    %c0_i32_0 = arith.constant 0 : i32
    %c0_i32_1 = arith.constant 0 : i32
    return %arg0, %c0_i32, %c0_i32_0 : i32, i32, i32
  }
  func.func @transform_6(%arg0: i32) -> (i32, i32, i32) {
    %c0_i32 = arith.constant 0 : i32
    %c0_i32_0 = arith.constant 0 : i32
    %c0_i32_1 = arith.constant 0 : i32
    return %arg0, %c0_i32, %c0_i32_0 : i32, i32, i32
  }
  func.func @transform_7(%arg0: i32) -> (i32, i32, i32) {
    %c0_i32 = arith.constant 0 : i32
    %c0_i32_0 = arith.constant 0 : i32
    %c0_i32_1 = arith.constant 0 : i32
    return %arg0, %c0_i32, %c0_i32_0 : i32, i32, i32
  }
  func.func @transform_8(%arg0: i32) -> (i32, i32, i32) {
    %c0_i32 = arith.constant 0 : i32
    %c0_i32_0 = arith.constant 0 : i32
    %c0_i32_1 = arith.constant 0 : i32
    return %arg0, %c0_i32, %c0_i32_0 : i32, i32, i32
  }
  func.func @transform_9(%arg0: i32) -> (i32, i32, i32) {
    %c0_i32 = arith.constant 0 : i32
    %c0_i32_0 = arith.constant 0 : i32
    %c0_i32_1 = arith.constant 0 : i32
    return %arg0, %c0_i32, %c0_i32_0 : i32, i32, i32
  }
  func.func @transform_10(%arg0: i32) -> (i32, i32, i32) {
    %c0_i32 = arith.constant 0 : i32
    %c0_i32_0 = arith.constant 0 : i32
    %c0_i32_1 = arith.constant 0 : i32
    return %arg0, %c0_i32, %c0_i32_0 : i32, i32, i32
  }
  func.func @transform_11(%arg0: i32) -> (i32, i32, i32) {
    %c0_i32 = arith.constant 0 : i32
    %c0_i32_0 = arith.constant 0 : i32
    %c0_i32_1 = arith.constant 0 : i32
    return %arg0, %c0_i32, %c0_i32_0 : i32, i32, i32
  }
  func.func @transform_12(%arg0: i32) -> (i32, i32) {
    %c0_i32 = arith.constant 0 : i32
    %c0_i32_0 = arith.constant 0 : i32
    %c0_i32_1 = arith.constant 0 : i32
    return %c0_i32, %c0_i32_0 : i32, i32
  }
  func.func @transform_13(%arg0: i32) -> (i32, i32, i32) {
    %c0_i32 = arith.constant 0 : i32
    %c0_i32_0 = arith.constant 0 : i32
    %c0_i32_1 = arith.constant 0 : i32
    return %arg0, %c0_i32, %c0_i32_0 : i32, i32, i32
  }
}

</mosaic_0001>

<llo_original>
// kernel: encoder_forward_pallas.1
$region0: #{encoder_forward_pallas.1}
  #allocation0 [shape = 'u32[]', space=smem, size = 0x4, offset = 0x4, fixed_abs, tag = 'smem constant byte address 0x4 - core index']
  #allocation1 [shape = 'u32[144,128]{1,0:T(1,128)}', space=vmem, size = 0x12000, scoped, tag = 'internal scratch']
  #allocation2 [shape = 'f32[64,32]{1,0:T(8,128)}', space=vmem, size = 0x8000, scoped, tag = 'scratch operand']
  #allocation3 [shape = 'f32[64,32]{1,0:T(8,128)}', space=vmem, size = 0x8000, scoped, tag = 'scratch operand']
  #allocation4 [shape = 'f32[64,32]{1,0:T(8,128)}', space=vmem, size = 0x8000, scoped, tag = 'scratch operand']
  #allocation5 [shape = 'f32[64,32]{1,0:T(8,128)}', space=vmem, size = 0x8000, scoped, tag = 'scratch operand']
  %s0 = inlined_call_operand.vmem [shape: s32[8,1], index: 0, kind: input, shape index: {}]
  %s1 = inlined_call_operand.vmem [shape: f32[64,32], index: 1, kind: input, shape index: {}]
  %s2 = inlined_call_operand.vmem [shape: f32[2,32,32], index: 2, kind: input, shape index: {}]
  %s3 = inlined_call_operand.vmem [shape: f32[2,32,32], index: 3, kind: input, shape index: {}]
  %s4 = inlined_call_operand.vmem [shape: f32[2,32,32], index: 4, kind: input, shape index: {}]
  %s5 = inlined_call_operand.vmem [shape: f32[2,32,32], index: 5, kind: input, shape index: {}]
  %s6 = inlined_call_operand.vmem [shape: f32[2,32,32], index: 6, kind: input, shape index: {}]
  %s7 = inlined_call_operand.vmem [shape: f32[2,32,32], index: 7, kind: input, shape index: {}]
  %s8 = inlined_call_operand.vmem [shape: f32[2,1,32], index: 8, kind: input, shape index: {}]
  %s9 = inlined_call_operand.vmem [shape: f32[2,1,32], index: 9, kind: input, shape index: {}]
  %s10 = inlined_call_operand.vmem [shape: f32[2,1,32], index: 10, kind: input, shape index: {}]
  %s11 = inlined_call_operand.vmem [shape: f32[2,1,32], index: 11, kind: input, shape index: {}]
  %s12 = inlined_call_operand.vmem [shape: f32[64,32], index: 12, kind: output, shape index: {0}]
  %s13 = inlined_call_operand.hbm [shape: f32[2,8,32], index: 13, kind: output, shape index: {1}]
  %14 = xla_tuple %s12, %s13
  %s15 = sld [smem:[#allocation0]]
  $region97: #{encoder_forward_pallas.1} parent=0
    _
  %s17 = ssub.s32 1, %s15
  %s18 = scalar_select 0, %s17, %s15
  $region1: #{encoder_forward_pallas.1} parent=0
    #allocation6 [shape = 'u8[8192]{0}', space=vmem, size = 0x2000, scoped, tag = 'output window, operand 1']
    #allocation7 [shape = 's32[2]{0}', space=sflag, size = 0x8, scoped, tag = 'scoped memory for encoder_forward_pallas.1']
    %19 = vsyncpa [#allocation7], 0
    %s20 = scalar_lea.sflag [#allocation7], 1
    %21 = vsyncpa %s20, 0
    loop: start=0, step=1, limit=4
    $region2: #{encoder_forward_pallas.1} parent=1 // loop_pre_header
      _
    $region3: #{encoder_forward_pallas.1} parent=1 // loop_header
      %s23 = sphi 0, %s27
      %p24 = scmp.ge.s32.totalorder %s23, 4
      %s31 = sphi 0, %s31
      %s33 = sphi 0, %s31
      %s34 = sphi 0, %s33
      %s48 = sphi 0, %s34
      %s52 = sphi 0, %s52
      %s54 = sphi 0, %s52
      %s55 = sphi 0, %s54
      %s69 = sphi 0, %s55
      %s75 = sphi 0, %s77
      %s78 = sphi 0, %s75
      %s79 = sphi 0, %s78
      %s95 = sphi 0, %s79
      %s101 = sphi 0, %s103
      %s104 = sphi 0, %s101
      %s105 = sphi 0, %s104
      %s121 = sphi 0, %s105
      %s127 = sphi 0, %s129
      %s130 = sphi 0, %s127
      %s131 = sphi 0, %s130
      %s147 = sphi 0, %s131
      %s153 = sphi 0, %s155
      %s156 = sphi 0, %s153
      %s157 = sphi 0, %s156
      %s173 = sphi 0, %s157
      %s179 = sphi 0, %s181
      %s182 = sphi 0, %s179
      %s183 = sphi 0, %s182
      %s199 = sphi 0, %s183
      %s205 = sphi 0, %s207
      %s208 = sphi 0, %s205
      %s209 = sphi 0, %s208
      %s225 = sphi 0, %s209
      %s231 = sphi 0, %s233
      %s234 = sphi 0, %s231
      %s235 = sphi 0, %s234
      %s251 = sphi 0, %s235
      %s257 = sphi 0, %s259
      %s260 = sphi 0, %s257
      %s261 = sphi 0, %s260
      %s277 = sphi 0, %s261
      %s283 = sphi 0, %s285
      %s286 = sphi 0, %s283
      %s287 = sphi 0, %s286
      %s303 = sphi 0, %s287
      %s309 = sphi 0, %s311
      %s312 = sphi 0, %s309
      %s313 = sphi 0, %s312
      %s329 = sphi 0, %s313
      %s333 = sphi 0, %s333
      %s335 = sphi 0, %s333
      %s336 = sphi 0, %s335
      %s350 = sphi 0, %s336
      %s356 = sphi 0, %s358
      %s359 = sphi 0, %s356
      %s360 = sphi 0, %s359
      %s376 = sphi 0, %s360
    $region4: #{encoder_forward_pallas.1} parent=1 // loop_header_branch
      %26 = sbr.rel (%p24) target = $region8
    $region5: #{encoder_forward_pallas.1} parent=1 // loop_body
      %s28 = ssub.s32 %s23, 1
      %s29 = ssub.s32 %s23, 2
      %s30 = sadd.s32 %s23, 1
      %s32 = sadd.s32 %s31, 1
      %p35 = scmp.eq.s32.totalorder %s23, 1
      %p36 = scmp.ne.s32.totalorder %s31, %s33
      %p37 = scmp.eq.s32.totalorder %s23, 0
      %p38 = por %p36, %p37
      %p39 = scmp.ne.s32.totalorder %s31, %s33
      %p40 = scmp.eq.s32.totalorder %s28, 1
      %p41 = por %p39, %p40
      %p42 = scmp.ne.s32.totalorder %s33, %s34
      %p43 = scmp.eq.s32.totalorder %s28, 0
      %p44 = por %p42, %p43
      %p45 = scmp.ne.s32.totalorder %s33, %s34
      %p46 = scmp.eq.s32.totalorder %s29, 1
      %p47 = por %p45, %p46
      %p49 = scmp.ne.s32.totalorder %s34, %s48
      %p50 = scmp.eq.s32.totalorder %s29, 0
      %p51 = por %p49, %p50
      %s53 = sadd.s32 %s52, 1
      %p56 = scmp.eq.s32.totalorder %s23, 1
      %p57 = scmp.ne.s32.totalorder %s52, %s54
      %p58 = scmp.eq.s32.totalorder %s23, 0
      %p59 = por %p57, %p58
      %p60 = scmp.ne.s32.totalorder %s52, %s54
      %p61 = scmp.eq.s32.totalorder %s28, 1
      %p62 = por %p60, %p61
      %p63 = scmp.ne.s32.totalorder %s54, %s55
      %p64 = scmp.eq.s32.totalorder %s28, 0
      %p65 = por %p63, %p64
      %p66 = scmp.ne.s32.totalorder %s54, %s55
      %p67 = scmp.eq.s32.totalorder %s29, 1
      %p68 = por %p66, %p67
      %p70 = scmp.ne.s32.totalorder %s55, %s69
      %p71 = scmp.eq.s32.totalorder %s29, 0
      %p72 = por %p70, %p71
      %s73 = ssub.s32 %s23, %s30
      %p74 = scmp.eq.s32.totalorder %s73, 0
      %s76 = sadd.s32 %s75, 1
      %s77 = scalar_select %p74, %s75, %s76
      %p80 = pneg %p74
      %p81 = scmp.eq.s32.totalorder %s23, 1
      %p82 = por %p80, %p81
      %p83 = scmp.ne.s32.totalorder %s75, %s78
      %p84 = scmp.eq.s32.totalorder %s23, 0
      %p85 = por %p83, %p84
      %p86 = scmp.ne.s32.totalorder %s75, %s78
      %p87 = scmp.eq.s32.totalorder %s28, 1
      %p88 = por %p86, %p87
      %p89 = scmp.ne.s32.totalorder %s78, %s79
      %p90 = scmp.eq.s32.totalorder %s28, 0
      %p91 = por %p89, %p90
      %p92 = scmp.ne.s32.totalorder %s78, %s79
      %p93 = scmp.eq.s32.totalorder %s29, 1
      %p94 = por %p92, %p93
      %p96 = scmp.ne.s32.totalorder %s79, %s95
      %p97 = scmp.eq.s32.totalorder %s29, 0
      %p98 = por %p96, %p97
      %s99 = ssub.s32 %s23, %s30
      %p100 = scmp.eq.s32.totalorder %s99, 0
      %s102 = sadd.s32 %s101, 1
      %s103 = scalar_select %p100, %s101, %s102
      %p106 = pneg %p100
      %p107 = scmp.eq.s32.totalorder %s23, 1
      %p108 = por %p106, %p107
      %p109 = scmp.ne.s32.totalorder %s101, %s104
      %p110 = scmp.eq.s32.totalorder %s23, 0
      %p111 = por %p109, %p110
      %p112 = scmp.ne.s32.totalorder %s101, %s104
      %p113 = scmp.eq.s32.totalorder %s28, 1
      %p114 = por %p112, %p113
      %p115 = scmp.ne.s32.totalorder %s104, %s105
      %p116 = scmp.eq.s32.totalorder %s28, 0
      %p117 = por %p115, %p116
      %p118 = scmp.ne.s32.totalorder %s104, %s105
      %p119 = scmp.eq.s32.totalorder %s29, 1
      %p120 = por %p118, %p119
      %p122 = scmp.ne.s32.totalorder %s105, %s121
      %p123 = scmp.eq.s32.totalorder %s29, 0
      %p124 = por %p122, %p123
      %s125 = ssub.s32 %s23, %s30
      %p126 = scmp.eq.s32.totalorder %s125, 0
      %s128 = sadd.s32 %s127, 1
      %s129 = scalar_select %p126, %s127, %s128
      %p132 = pneg %p126
      %p133 = scmp.eq.s32.totalorder %s23, 1
      %p134 = por %p132, %p133
      %p135 = scmp.ne.s32.totalorder %s127, %s130
      %p136 = scmp.eq.s32.totalorder %s23, 0
      %p137 = por %p135, %p136
      %p138 = scmp.ne.s32.totalorder %s127, %s130
      %p139 = scmp.eq.s32.totalorder %s28, 1
      %p140 = por %p138, %p139
      %p141 = scmp.ne.s32.totalorder %s130, %s131
      %p142 = scmp.eq.s32.totalorder %s28, 0
      %p143 = por %p141, %p142
      %p144 = scmp.ne.s32.totalorder %s130, %s131
      %p145 = scmp.eq.s32.totalorder %s29, 1
      %p146 = por %p144, %p145
      %p148 = scmp.ne.s32.totalorder %s131, %s147
      %p149 = scmp.eq.s32.totalorder %s29, 0
      %p150 = por %p148, %p149
      %s151 = ssub.s32 %s23, %s30
      %p152 = scmp.eq.s32.totalorder %s151, 0
      %s154 = sadd.s32 %s153, 1
      %s155 = scalar_select %p152, %s153, %s154
      %p158 = pneg %p152
      %p159 = scmp.eq.s32.totalorder %s23, 1
      %p160 = por %p158, %p159
      %p161 = scmp.ne.s32.totalorder %s153, %s156
      %p162 = scmp.eq.s32.totalorder %s23, 0
      %p163 = por %p161, %p162
      %p164 = scmp.ne.s32.totalorder %s153, %s156
      %p165 = scmp.eq.s32.totalorder %s28, 1
      %p166 = por %p164, %p165
      %p167 = scmp.ne.s32.totalorder %s156, %s157
      %p168 = scmp.eq.s32.totalorder %s28, 0
      %p169 = por %p167, %p168
      %p170 = scmp.ne.s32.totalorder %s156, %s157
      %p171 = scmp.eq.s32.totalorder %s29, 1
      %p172 = por %p170, %p171
      %p174 = scmp.ne.s32.totalorder %s157, %s173
      %p175 = scmp.eq.s32.totalorder %s29, 0
      %p176 = por %p174, %p175
      %s177 = ssub.s32 %s23, %s30
      %p178 = scmp.eq.s32.totalorder %s177, 0
      %s180 = sadd.s32 %s179, 1
      %s181 = scalar_select %p178, %s179, %s180
      %p184 = pneg %p178
      %p185 = scmp.eq.s32.totalorder %s23, 1
      %p186 = por %p184, %p185
      %p187 = scmp.ne.s32.totalorder %s179, %s182
      %p188 = scmp.eq.s32.totalorder %s23, 0
      %p189 = por %p187, %p188
      %p190 = scmp.ne.s32.totalorder %s179, %s182
      %p191 = scmp.eq.s32.totalorder %s28, 1
      %p192 = por %p190, %p191
      %p193 = scmp.ne.s32.totalorder %s182, %s183
      %p194 = scmp.eq.s32.totalorder %s28, 0
      %p195 = por %p193, %p194
      %p196 = scmp.ne.s32.totalorder %s182, %s183
      %p197 = scmp.eq.s32.totalorder %s29, 1
      %p198 = por %p196, %p197
      %p200 = scmp.ne.s32.totalorder %s183, %s199
      %p201 = scmp.eq.s32.totalorder %s29, 0
      %p202 = por %p200, %p201
      %s203 = ssub.s32 %s23, %s30
      %p204 = scmp.eq.s32.totalorder %s203, 0
      %s206 = sadd.s32 %s205, 1
      %s207 = scalar_select %p204, %s205, %s206
      %p210 = pneg %p204
      %p211 = scmp.eq.s32.totalorder %s23, 1
      %p212 = por %p210, %p211
      %p213 = scmp.ne.s32.totalorder %s205, %s208
      %p214 = scmp.eq.s32.totalorder %s23, 0
      %p215 = por %p213, %p214
      %p216 = scmp.ne.s32.totalorder %s205, %s208
      %p217 = scmp.eq.s32.totalorder %s28, 1
      %p218 = por %p216, %p217
      %p219 = scmp.ne.s32.totalorder %s208, %s209
      %p220 = scmp.eq.s32.totalorder %s28, 0
      %p221 = por %p219, %p220
      %p222 = scmp.ne.s32.totalorder %s208, %s209
      %p223 = scmp.eq.s32.totalorder %s29, 1
      %p224 = por %p222, %p223
      %p226 = scmp.ne.s32.totalorder %s209, %s225
      %p227 = scmp.eq.s32.totalorder %s29, 0
      %p228 = por %p226, %p227
      %s229 = ssub.s32 %s23, %s30
      %p230 = scmp.eq.s32.totalorder %s229, 0
      %s232 = sadd.s32 %s231, 1
      %s233 = scalar_select %p230, %s231, %s232
      %p236 = pneg %p230
      %p237 = scmp.eq.s32.totalorder %s23, 1
      %p238 = por %p236, %p237
      %p239 = scmp.ne.s32.totalorder %s231, %s234
      %p240 = scmp.eq.s32.totalorder %s23, 0
      %p241 = por %p239, %p240
      %p242 = scmp.ne.s32.totalorder %s231, %s234
      %p243 = scmp.eq.s32.totalorder %s28, 1
      %p244 = por %p242, %p243
      %p245 = scmp.ne.s32.totalorder %s234, %s235
      %p246 = scmp.eq.s32.totalorder %s28, 0
      %p247 = por %p245, %p246
      %p248 = scmp.ne.s32.totalorder %s234, %s235
      %p249 = scmp.eq.s32.totalorder %s29, 1
      %p250 = por %p248, %p249
      %p252 = scmp.ne.s32.totalorder %s235, %s251
      %p253 = scmp.eq.s32.totalorder %s29, 0
      %p254 = por %p252, %p253
      %s255 = ssub.s32 %s23, %s30
      %p256 = scmp.eq.s32.totalorder %s255, 0
      %s258 = sadd.s32 %s257, 1
      %s259 = scalar_select %p256, %s257, %s258
      %p262 = pneg %p256
      %p263 = scmp.eq.s32.totalorder %s23, 1
      %p264 = por %p262, %p263
      %p265 = scmp.ne.s32.totalorder %s257, %s260
      %p266 = scmp.eq.s32.totalorder %s23, 0
      %p267 = por %p265, %p266
      %p268 = scmp.ne.s32.totalorder %s257, %s260
      %p269 = scmp.eq.s32.totalorder %s28, 1
      %p270 = por %p268, %p269
      %p271 = scmp.ne.s32.totalorder %s260, %s261
      %p272 = scmp.eq.s32.totalorder %s28, 0
      %p273 = por %p271, %p272
      %p274 = scmp.ne.s32.totalorder %s260, %s261
      %p275 = scmp.eq.s32.totalorder %s29, 1
      %p276 = por %p274, %p275
      %p278 = scmp.ne.s32.totalorder %s261, %s277
      %p279 = scmp.eq.s32.totalorder %s29, 0
      %p280 = por %p278, %p279
      %s281 = ssub.s32 %s23, %s30
      %p282 = scmp.eq.s32.totalorder %s281, 0
      %s284 = sadd.s32 %s283, 1
      %s285 = scalar_select %p282, %s283, %s284
      %p288 = pneg %p282
      %p289 = scmp.eq.s32.totalorder %s23, 1
      %p290 = por %p288, %p289
      %p291 = scmp.ne.s32.totalorder %s283, %s286
      %p292 = scmp.eq.s32.totalorder %s23, 0
      %p293 = por %p291, %p292
      %p294 = scmp.ne.s32.totalorder %s283, %s286
      %p295 = scmp.eq.s32.totalorder %s28, 1
      %p296 = por %p294, %p295
      %p297 = scmp.ne.s32.totalorder %s286, %s287
      %p298 = scmp.eq.s32.totalorder %s28, 0
      %p299 = por %p297, %p298
      %p300 = scmp.ne.s32.totalorder %s286, %s287
      %p301 = scmp.eq.s32.totalorder %s29, 1
      %p302 = por %p300, %p301
      %p304 = scmp.ne.s32.totalorder %s287, %s303
      %p305 = scmp.eq.s32.totalorder %s29, 0
      %p306 = por %p304, %p305
      %s307 = ssub.s32 %s23, %s30
      %p308 = scmp.eq.s32.totalorder %s307, 0
      %s310 = sadd.s32 %s309, 1
      %s311 = scalar_select %p308, %s309, %s310
      %p314 = pneg %p308
      %p315 = scmp.eq.s32.totalorder %s23, 1
      %p316 = por %p314, %p315
      %p317 = scmp.ne.s32.totalorder %s309, %s312
      %p318 = scmp.eq.s32.totalorder %s23, 0
      %p319 = por %p317, %p318
      %p320 = scmp.ne.s32.totalorder %s309, %s312
      %p321 = scmp.eq.s32.totalorder %s28, 1
      %p322 = por %p320, %p321
      %p323 = scmp.ne.s32.totalorder %s312, %s313
      %p324 = scmp.eq.s32.totalorder %s28, 0
      %p325 = por %p323, %p324
      %p326 = scmp.ne.s32.totalorder %s312, %s313
      %p327 = scmp.eq.s32.totalorder %s29, 1
      %p328 = por %p326, %p327
      %p330 = scmp.ne.s32.totalorder %s313, %s329
      %p331 = scmp.eq.s32.totalorder %s29, 0
      %p332 = por %p330, %p331
      %s334 = sadd.s32 %s333, 1
      %p337 = scmp.eq.s32.totalorder %s23, 1
      %p338 = scmp.ne.s32.totalorder %s333, %s335
      %p339 = scmp.eq.s32.totalorder %s23, 0
      %p340 = por %p338, %p339
      %p341 = scmp.ne.s32.totalorder %s333, %s335
      %p342 = scmp.eq.s32.totalorder %s28, 1
      %p343 = por %p341, %p342
      %p344 = scmp.ne.s32.totalorder %s335, %s336
      %p345 = scmp.eq.s32.totalorder %s28, 0
      %p346 = por %p344, %p345
      %p347 = scmp.ne.s32.totalorder %s335, %s336
      %p348 = scmp.eq.s32.totalorder %s29, 1
      %p349 = por %p347, %p348
      %p351 = scmp.ne.s32.totalorder %s336, %s350
      %p352 = scmp.eq.s32.totalorder %s29, 0
      %p353 = por %p351, %p352
      %s354 = ssub.s32 %s23, %s30
      %p355 = scmp.eq.s32.totalorder %s354, 0
      %s357 = sadd.s32 %s356, 1
      %s358 = scalar_select %p355, %s356, %s357
      %p361 = pneg %p355
      %p362 = scmp.eq.s32.totalorder %s23, 1
      %p363 = por %p361, %p362
      %p364 = scmp.ne.s32.totalorder %s356, %s359
      %p365 = scmp.eq.s32.totalorder %s23, 0
      %p366 = por %p364, %p365
      %p367 = scmp.ne.s32.totalorder %s356, %s359
      %p368 = scmp.eq.s32.totalorder %s28, 1
      %p369 = por %p367, %p368
      %p370 = scmp.ne.s32.totalorder %s359, %s360
      %p371 = scmp.eq.s32.totalorder %s28, 0
      %p372 = por %p370, %p371
      %p373 = scmp.ne.s32.totalorder %s359, %s360
      %p374 = scmp.eq.s32.totalorder %s29, 1
      %p375 = por %p373, %p374
      %p377 = scmp.ne.s32.totalorder %s360, %s376
      %p378 = scmp.eq.s32.totalorder %s29, 0
      %p379 = por %p377, %p378
      %p380 = scmp.le.s32.totalorder 1, %s23
      %p381 = scmp.lt.s32.totalorder %s23, 3
      %p382 = pnand %p380, %p381
      %p383 = pneg %p382
      // Predicated region
      $region9: #{encoder_forward_pallas.1} parent=5 // pred_check
        _
      $region10: #{encoder_forward_pallas.1} parent=5 // pred_check_branch
        %385 = sbr.rel (%p382) target = $region12
      $region11: #{encoder_forward_pallas.1} parent=5 // pred_region
        %s386 = ssub.s32 %s23, 1
        // Predicated region
        $region13: #{encoder_forward_pallas.1} parent=11 // pred_check
          %p387 = pneg %p44
        $region14: #{encoder_forward_pallas.1} parent=11 // pred_check_branch
          %389 = sbr.rel (%p387) target = $region16
        $region15: #{encoder_forward_pallas.1} parent=11 // pred_region
          _
        $region16: #{encoder_forward_pallas.1} parent=11 // pred_fallthru
          _
        // Predicated region
        $region17: #{encoder_forward_pallas.1} parent=11 // pred_check
          %p390 = pneg %p65
        $region18: #{encoder_forward_pallas.1} parent=11 // pred_check_branch
          %392 = sbr.rel (%p390) target = $region20
        $region19: #{encoder_forward_pallas.1} parent=11 // pred_region
          _
        $region20: #{encoder_forward_pallas.1} parent=11 // pred_fallthru
          _
      $region12: #{encoder_forward_pallas.1} parent=5 // pred_fallthru
        _
      %p393 = scmp.lt.s32.totalorder %s23, 2
      // Predicated region
      $region21: #{encoder_forward_pallas.1} parent=5 // pred_check
        %p394 = pneg %p393
      $region22: #{encoder_forward_pallas.1} parent=5 // pred_check_branch
        %396 = sbr.rel (%p394) target = $region24
      $region23: #{encoder_forward_pallas.1} parent=5 // pred_region
        // Predicated region
        $region25: #{encoder_forward_pallas.1} parent=23 // pred_check
          %p397 = pneg %p85
        $region26: #{encoder_forward_pallas.1} parent=23 // pred_check_branch
          %399 = sbr.rel (%p397) target = $region28
        $region27: #{encoder_forward_pallas.1} parent=23 // pred_region
          %p400 = scmp.lt.s32.totalorder %s23, 1
          %s401 = scalar_select %p400, %s23, 1
          %s402 = smul.addr %s401, 4
          %s403 = smul.addr %s402, 8
          %s404 = scalar_lea.vmem %s2, %s403
        $region28: #{encoder_forward_pallas.1} parent=23 // pred_fallthru
          _
        // Predicated region
        $region29: #{encoder_forward_pallas.1} parent=23 // pred_check
          %p405 = pneg %p111
        $region30: #{encoder_forward_pallas.1} parent=23 // pred_check_branch
          %407 = sbr.rel (%p405) target = $region32
        $region31: #{encoder_forward_pallas.1} parent=23 // pred_region
          %p408 = scmp.lt.s32.totalorder %s23, 1
          %s409 = scalar_select %p408, %s23, 1
          %s410 = smul.addr %s409, 4
          %s411 = smul.addr %s410, 8
          %s412 = scalar_lea.vmem %s3, %s411
        $region32: #{encoder_forward_pallas.1} parent=23 // pred_fallthru
          _
        // Predicated region
        $region33: #{encoder_forward_pallas.1} parent=23 // pred_check
          %p413 = pneg %p137
        $region34: #{encoder_forward_pallas.1} parent=23 // pred_check_branch
          %415 = sbr.rel (%p413) target = $region36
        $region35: #{encoder_forward_pallas.1} parent=23 // pred_region
          %p416 = scmp.lt.s32.totalorder %s23, 1
          %s417 = scalar_select %p416, %s23, 1
          %s418 = smul.addr %s417, 4
          %s419 = smul.addr %s418, 8
          %s420 = scalar_lea.vmem %s4, %s419
        $region36: #{encoder_forward_pallas.1} parent=23 // pred_fallthru
          _
        // Predicated region
        $region37: #{encoder_forward_pallas.1} parent=23 // pred_check
          %p421 = pneg %p163
        $region38: #{encoder_forward_pallas.1} parent=23 // pred_check_branch
          %423 = sbr.rel (%p421) target = $region40
        $region39: #{encoder_forward_pallas.1} parent=23 // pred_region
          %p424 = scmp.lt.s32.totalorder %s23, 1
          %s425 = scalar_select %p424, %s23, 1
          %s426 = smul.addr %s425, 4
          %s427 = smul.addr %s426, 8
          %s428 = scalar_lea.vmem %s5, %s427
        $region40: #{encoder_forward_pallas.1} parent=23 // pred_fallthru
          _
        // Predicated region
        $region41: #{encoder_forward_pallas.1} parent=23 // pred_check
          %p429 = pneg %p189
        $region42: #{encoder_forward_pallas.1} parent=23 // pred_check_branch
          %431 = sbr.rel (%p429) target = $region44
        $region43: #{encoder_forward_pallas.1} parent=23 // pred_region
          %p432 = scmp.lt.s32.totalorder %s23, 1
          %s433 = scalar_select %p432, %s23, 1
          %s434 = smul.addr %s433, 4
          %s435 = smul.addr %s434, 8
          %s436 = scalar_lea.vmem %s6, %s435
        $region44: #{encoder_forward_pallas.1} parent=23 // pred_fallthru
          _
        // Predicated region
        $region45: #{encoder_forward_pallas.1} parent=23 // pred_check
          %p437 = pneg %p215
        $region46: #{encoder_forward_pallas.1} parent=23 // pred_check_branch
          %439 = sbr.rel (%p437) target = $region48
        $region47: #{encoder_forward_pallas.1} parent=23 // pred_region
          %p440 = scmp.lt.s32.totalorder %s23, 1
          %s441 = scalar_select %p440, %s23, 1
          %s442 = smul.addr %s441, 4
          %s443 = smul.addr %s442, 8
          %s444 = scalar_lea.vmem %s7, %s443
        $region48: #{encoder_forward_pallas.1} parent=23 // pred_fallthru
          _
        // Predicated region
        $region49: #{encoder_forward_pallas.1} parent=23 // pred_check
          %p445 = pneg %p241
        $region50: #{encoder_forward_pallas.1} parent=23 // pred_check_branch
          %447 = sbr.rel (%p445) target = $region52
        $region51: #{encoder_forward_pallas.1} parent=23 // pred_region
          %p448 = scmp.lt.s32.totalorder %s23, 1
          %s449 = scalar_select %p448, %s23, 1
          %s450 = scalar_lea.vmem %s8, %s449
        $region52: #{encoder_forward_pallas.1} parent=23 // pred_fallthru
          _
        // Predicated region
        $region53: #{encoder_forward_pallas.1} parent=23 // pred_check
          %p451 = pneg %p267
        $region54: #{encoder_forward_pallas.1} parent=23 // pred_check_branch
          %453 = sbr.rel (%p451) target = $region56
        $region55: #{encoder_forward_pallas.1} parent=23 // pred_region
          %p454 = scmp.lt.s32.totalorder %s23, 1
          %s455 = scalar_select %p454, %s23, 1
          %s456 = scalar_lea.vmem %s9, %s455
        $region56: #{encoder_forward_pallas.1} parent=23 // pred_fallthru
          _
        // Predicated region
        $region57: #{encoder_forward_pallas.1} parent=23 // pred_check
          %p457 = pneg %p293
        $region58: #{encoder_forward_pallas.1} parent=23 // pred_check_branch
          %459 = sbr.rel (%p457) target = $region60
        $region59: #{encoder_forward_pallas.1} parent=23 // pred_region
          %p460 = scmp.lt.s32.totalorder %s23, 1
          %s461 = scalar_select %p460, %s23, 1
          %s462 = scalar_lea.vmem %s10, %s461
        $region60: #{encoder_forward_pallas.1} parent=23 // pred_fallthru
          _
        // Predicated region
        $region61: #{encoder_forward_pallas.1} parent=23 // pred_check
          %p463 = pneg %p319
        $region62: #{encoder_forward_pallas.1} parent=23 // pred_check_branch
          %465 = sbr.rel (%p463) target = $region64
        $region63: #{encoder_forward_pallas.1} parent=23 // pred_region
          %p466 = scmp.lt.s32.totalorder %s23, 1
          %s467 = scalar_select %p466, %s23, 1
          %s468 = scalar_lea.vmem %s11, %s467
        $region64: #{encoder_forward_pallas.1} parent=23 // pred_fallthru
          _
      $region24: #{encoder_forward_pallas.1} parent=5 // pred_fallthru
        _
      %p469 = scmp.le.s32.totalorder 1, %s23
      %p470 = scmp.lt.s32.totalorder %s23, 3
      %p471 = pnand %p469, %p470
      %p472 = pneg %p471
      // Predicated region
      $region65: #{encoder_forward_pallas.1} parent=5 // pred_check
        _
      $region66: #{encoder_forward_pallas.1} parent=5 // pred_check_branch
        %474 = sbr.rel (%p471) target = $region68
      $region67: #{encoder_forward_pallas.1} parent=5 // pred_region
        %s475 = ssub.s32 %s23, 1
        %p476 = pneg %p44
        %p477 = pneg %p41
        %p478 = pneg %p65
        %p479 = pneg %p62
        %p480 = scmp.lt.s32.totalorder %s28, 1
        %s481 = scalar_select %p480, %s28, 1
        %s482 = smul.addr %s481, 4
        %s483 = smul.addr %s482, 8
        %s484 = scalar_lea.vmem %s2, %s483
        %p485 = pneg %p91
        %p486 = pneg %p88
        %p487 = scmp.lt.s32.totalorder %s28, 1
        %s488 = scalar_select %p487, %s28, 1
        %s489 = smul.addr %s488, 4
        %s490 = smul.addr %s489, 8
        %s491 = scalar_lea.vmem %s3, %s490
        %p492 = pneg %p117
        %p493 = pneg %p114
        %p494 = scmp.lt.s32.totalorder %s28, 1
        %s495 = scalar_select %p494, %s28, 1
        %s496 = smul.addr %s495, 4
        %s497 = smul.addr %s496, 8
        %s498 = scalar_lea.vmem %s4, %s497
        %p499 = pneg %p143
        %p500 = pneg %p140
        %p501 = scmp.lt.s32.totalorder %s28, 1
        %s502 = scalar_select %p501, %s28, 1
        %s503 = smul.addr %s502, 4
        %s504 = smul.addr %s503, 8
        %s505 = scalar_lea.vmem %s5, %s504
        %p506 = pneg %p169
        %p507 = pneg %p166
        %p508 = scmp.lt.s32.totalorder %s28, 1
        %s509 = scalar_select %p508, %s28, 1
        %s510 = smul.addr %s509, 4
        %s511 = smul.addr %s510, 8
        %s512 = scalar_lea.vmem %s6, %s511
        %p513 = pneg %p195
        %p514 = pneg %p192
        %p515 = scmp.lt.s32.totalorder %s28, 1
        %s516 = scalar_select %p515, %s28, 1
        %s517 = smul.addr %s516, 4
        %s518 = smul.addr %s517, 8
        %s519 = scalar_lea.vmem %s7, %s518
        %p520 = pneg %p221
        %p521 = pneg %p218
        %p522 = scmp.lt.s32.totalorder %s28, 1
        %s523 = scalar_select %p522, %s28, 1
        %s524 = scalar_lea.vmem %s8, %s523
        %p525 = pneg %p247
        %p526 = pneg %p244
        %p527 = scmp.lt.s32.totalorder %s28, 1
        %s528 = scalar_select %p527, %s28, 1
        %s529 = scalar_lea.vmem %s9, %s528
        %p530 = pneg %p273
        %p531 = pneg %p270
        %p532 = scmp.lt.s32.totalorder %s28, 1
        %s533 = scalar_select %p532, %s28, 1
        %s534 = scalar_lea.vmem %s10, %s533
        %p535 = pneg %p299
        %p536 = pneg %p296
        %p537 = scmp.lt.s32.totalorder %s28, 1
        %s538 = scalar_select %p537, %s28, 1
        %s539 = scalar_lea.vmem %s11, %s538
        %p540 = pneg %p325
        %p541 = pneg %p322
        %p542 = pneg %p346
        %p543 = pneg %p343
        %p544 = pneg %p372
        %p545 = pneg %p369
        %s546 = sand.u32 %s359, 1
        %s547 = scalar_lea.sflag [#allocation7], %s546
        %s548 = sand.u32 %s359, 1
        %s549 = smul.addr %s548, 8
        %s550 = scalar_lea.vmem [#allocation6], %s549
        %p551 = scmp.lt.s32.totalorder %s28, 1
        %s552 = scalar_select %p551, %s28, 1
        %s553 = smul.addr %s552, 4
        %s554 = smul.addr %s553, 8
        %s555 = scalar_lea.vmem %s2, %s554
        %p556 = scmp.lt.s32.totalorder %s28, 1
        %s557 = scalar_select %p556, %s28, 1
        %s558 = smul.addr %s557, 4
        %s559 = smul.addr %s558, 8
        %s560 = scalar_lea.vmem %s3, %s559
        %p561 = scmp.lt.s32.totalorder %s28, 1
        %s562 = scalar_select %p561, %s28, 1
        %s563 = smul.addr %s562, 4
        %s564 = smul.addr %s563, 8
        %s565 = scalar_lea.vmem %s4, %s564
        %p566 = scmp.lt.s32.totalorder %s28, 1
        %s567 = scalar_select %p566, %s28, 1
        %s568 = smul.addr %s567, 4
        %s569 = smul.addr %s568, 8
        %s570 = scalar_lea.vmem %s5, %s569
        %p571 = scmp.lt.s32.totalorder %s28, 1
        %s572 = scalar_select %p571, %s28, 1
        %s573 = smul.addr %s572, 4
        %s574 = smul.addr %s573, 8
        %s575 = scalar_lea.vmem %s6, %s574
        %p576 = scmp.lt.s32.totalorder %s28, 1
        %s577 = scalar_select %p576, %s28, 1
        %s578 = smul.addr %s577, 4
        %s579 = smul.addr %s578, 8
        %s580 = scalar_lea.vmem %s7, %s579
        %p581 = scmp.lt.s32.totalorder %s28, 1
        %s582 = scalar_select %p581, %s28, 1
        %s583 = scalar_lea.vmem %s8, %s582
        %p584 = scmp.lt.s32.totalorder %s28, 1
        %s585 = scalar_select %p584, %s28, 1
        %s586 = scalar_lea.vmem %s9, %s585
        %p587 = scmp.lt.s32.totalorder %s28, 1
        %s588 = scalar_select %p587, %s28, 1
        %s589 = scalar_lea.vmem %s10, %s588
        %p590 = scmp.lt.s32.totalorder %s28, 1
        %s591 = scalar_select %p590, %s28, 1
        %s592 = scalar_lea.vmem %s11, %s591
        %p593 = scmp.eq.s32.totalorder %s28, 0
        // Predicated region
        $region69: #{encoder_forward_pallas.1} parent=67 // pred_check
          %p594 = pneg %p593
        $region70: #{encoder_forward_pallas.1} parent=67 // pred_check_branch
          %596 = sbr.rel (%p594) target = $region72
        $region71: #{encoder_forward_pallas.1} parent=67 // pred_region
          %v597 = vld [vmem:[%s1] sm:$0xff]
          %v598 = vld [vmem:[%s1 + $0x8] sm:$0xff]
          %v599 = vld [vmem:[%s1 + $0x10] sm:$0xff]
          %v600 = vld [vmem:[%s1 + $0x18] sm:$0xff]
          %v601 = vld [vmem:[%s1 + $0x20] sm:$0xff]
          %v602 = vld [vmem:[%s1 + $0x28] sm:$0xff]
          %v603 = vld [vmem:[%s1 + $0x30] sm:$0xff]
          %v604 = vld [vmem:[%s1 + $0x38] sm:$0xff]
          %vm605 = vcmask 261120
          %606 = vst.msk [vmem:[#allocation2] sm:$0xff] %vm605, %v597
          %607 = vst.msk [vmem:[#allocation2 + $0x8] sm:$0xff] %vm605, %v598
          %608 = vst.msk [vmem:[#allocation2 + $0x10] sm:$0xff] %vm605, %v599
          %609 = vst.msk [vmem:[#allocation2 + $0x18] sm:$0xff] %vm605, %v600
          %610 = vst.msk [vmem:[#allocation2 + $0x20] sm:$0xff] %vm605, %v601
          %611 = vst.msk [vmem:[#allocation2 + $0x28] sm:$0xff] %vm605, %v602
          %612 = vst.msk [vmem:[#allocation2 + $0x30] sm:$0xff] %vm605, %v603
          %613 = vst.msk [vmem:[#allocation2 + $0x38] sm:$0xff] %vm605, %v604
        $region72: #{encoder_forward_pallas.1} parent=67 // pred_fallthru
          _
        %v614 = vld [vmem:[#allocation2] sm:$0xff]
        %v615 = vld [vmem:[#allocation2 + $0x8] sm:$0xff]
        %v616 = vld [vmem:[#allocation2 + $0x10] sm:$0xff]
        %v617 = vld [vmem:[#allocation2 + $0x18] sm:$0xff]
        %v618 = vld [vmem:[#allocation2 + $0x20] sm:$0xff]
        %v619 = vld [vmem:[#allocation2 + $0x28] sm:$0xff]
        %v620 = vld [vmem:[#allocation2 + $0x30] sm:$0xff]
        %v621 = vld [vmem:[#allocation2 + $0x38] sm:$0xff]
        %v622 = vld [vmem:[%s555] sm:$0xff]
        %v623 = vld [vmem:[%s555 + $0x8] sm:$0xff]
        %v624 = vld [vmem:[%s555 + $0x10] sm:$0xff]
        %v625 = vld [vmem:[%s555 + $0x18] sm:$0xff]
        %v626 = vld [vmem:[%s583] sm:$0x1]
        %v628 = vlaneseq
        %v629 = vshrl.u32 %v628, 7
        %v630 = vsub.s32 0, %v629
        %v631 = vrot.slane %v626, %v630
        %vm633 = vcmask 261120
        %v635 = vsel %vm633, %v614, 0
        %v638 = vsel %vm633, %v615, 0
        %v641 = vsel %vm633, %v616, 0
        %v644 = vsel %vm633, %v617, 0
        %v647 = vsel %vm633, %v618, 0
        %v650 = vsel %vm633, %v619, 0
        %v653 = vsel %vm633, %v620, 0
        %v656 = vsel %vm633, %v621, 0
        %658 = vmatprep.subr.mxu0 0.0
        %659 = vmatpush1.msra.mxu0 0.0
        %660 = vmatprep.subr.mxu0 0.0
        %661 = vmatpush1.msra.mxu0 0.0
        %662 = vmatprep.subr.mxu0 0.0
        %663 = vmatpush1.msra.mxu0 0.0
        %664 = vmatprep.subr.mxu0 0.0
        %665 = vmatpush1.msra.mxu0 0.0
        %666 = vmatprep.subr.mxu0 0.0
        %667 = vmatpush1.msra.mxu0 0.0
        %668 = vmatprep.subr.mxu0 0.0
        %669 = vmatpush1.msra.mxu0 0.0
        %670 = vmatprep.subr.mxu0 0.0
        %671 = vmatpush1.msra.mxu0 0.0
        %672 = vmatprep.subr.mxu0 0.0
        %673 = vmatpush1.msra.mxu0 0.0
        %674 = vmatprep.subr.mxu0 0.0
        %675 = vmatpush1.msra.mxu0 0.0
        %676 = vmatprep.subr.mxu0 0.0
        %677 = vmatpush1.msra.mxu0 0.0
        %678 = vmatprep.subr.mxu0 0.0
        %679 = vmatpush1.msra.mxu0 0.0
        %680 = vmatprep.subr.mxu0 0.0
        %681 = vmatpush1.msra.mxu0 0.0
        %682 = vmatprep.subr.mxu0 0.0
        %683 = vmatpush1.msra.mxu0 %v625
        %684 = vmatprep.subr.mxu0 0.0
        %685 = vmatpush1.msra.mxu0 %v624
        %686 = vmatprep.subr.mxu0 0.0
        %687 = vmatpush1.msra.mxu0 %v623
        %688 = vmatprep.subr.mxu0 0.0
        %689 = vmatpush1.msra.mxu0 %v622
        %690 = vmatprep.subr.mxu0 0.0
        %691 = vmatpush2.msra.mxu0 0.0
        %692 = vmatprep.subr.mxu0 0.0
        %693 = vmatpush2.msra.mxu0 0.0
        %694 = vmatprep.subr.mxu0 0.0
        %695 = vmatpush2.msra.mxu0 0.0
        %696 = vmatprep.subr.mxu0 0.0
        %697 = vmatpush2.msra.mxu0 0.0
        %698 = vmatprep.subr.mxu0 0.0
        %699 = vmatpush2.msra.mxu0 0.0
        %700 = vmatprep.subr.mxu0 0.0
        %701 = vmatpush2.msra.mxu0 0.0
        %702 = vmatprep.subr.mxu0 0.0
        %703 = vmatpush2.msra.mxu0 0.0
        %704 = vmatprep.subr.mxu0 0.0
        %705 = vmatpush2.msra.mxu0 0.0
        %706 = vmatprep.subr.mxu0 0.0
        %707 = vmatpush2.msra.mxu0 0.0
        %708 = vmatprep.subr.mxu0 0.0
        %709 = vmatpush2.msra.mxu0 0.0
        %710 = vmatprep.subr.mxu0 0.0
        %711 = vmatpush2.msra.mxu0 0.0
        %712 = vmatprep.subr.mxu0 0.0
        %713 = vmatpush2.msra.mxu0 0.0
        %714 = vmatprep.subr.mxu0 0.0
        %715 = vmatpush2.msra.mxu0 0.0
        %716 = vmatprep.subr.mxu0 0.0
        %717 = vmatpush2.msra.mxu0 0.0
        %718 = vmatprep.subr.mxu0 0.0
        %719 = vmatpush2.msra.mxu0 0.0
        %720 = vmatprep.subr.mxu0 0.0
        %721 = vmatpush2.msra.mxu0 0.0
        %722 = vmatprep.mubr.f32.mxu0 0.0
        %723 = vmatmul.mubr.f32.gmra.mxu0 %v635
        %v724 = vpop.f32.mrf.mxu0
        %v725 = vadd.f32 %v631, %v724
        %v726 = vpop.f32.mrf.mxu0
        %727 = vmatprep.mubr.f32.mxu0 0.0
        %728 = vmatmul.mubr.f32.gmra.mxu0 %v638
        %v729 = vpop.f32.mrf.mxu0
        %v730 = vadd.f32 %v631, %v729
        %v731 = vpop.f32.mrf.mxu0
        %732 = vmatprep.mubr.f32.mxu0 0.0
        %733 = vmatmul.mubr.f32.gmra.mxu0 %v641
        %v734 = vpop.f32.mrf.mxu0
        %v735 = vadd.f32 %v631, %v734
        %v736 = vpop.f32.mrf.mxu0
        %737 = vmatprep.mubr.f32.mxu0 0.0
        %738 = vmatmul.mubr.f32.gmra.mxu0 %v644
        %v739 = vpop.f32.mrf.mxu0
        %v740 = vadd.f32 %v631, %v739
        %v741 = vpop.f32.mrf.mxu0
        %742 = vmatprep.mubr.f32.mxu0 0.0
        %743 = vmatmul.mubr.f32.gmra.mxu0 %v647
        %v744 = vpop.f32.mrf.mxu0
        %v745 = vadd.f32 %v631, %v744
        %v746 = vpop.f32.mrf.mxu0
        %747 = vmatprep.mubr.f32.mxu0 0.0
        %748 = vmatmul.mubr.f32.gmra.mxu0 %v650
        %v749 = vpop.f32.mrf.mxu0
        %v750 = vadd.f32 %v631, %v749
        %v751 = vpop.f32.mrf.mxu0
        %752 = vmatprep.mubr.f32.mxu0 0.0
        %753 = vmatmul.mubr.f32.gmra.mxu0 %v653
        %v754 = vpop.f32.mrf.mxu0
        %v755 = vadd.f32 %v631, %v754
        %v756 = vpop.f32.mrf.mxu0
        %757 = vmatprep.mubr.f32.mxu0 0.0
        %758 = vmatmul.mubr.f32.gmra.mxu0 %v656
        %v759 = vpop.f32.mrf.mxu0
        %v760 = vadd.f32 %v631, %v759
        %v761 = vpop.f32.mrf.mxu0
        %762 = vdwg.mxu0
        %763 = vst.msk [vmem:[#allocation3] sm:$0xff] %vm633, %v725
        %764 = vst.msk [vmem:[#allocation3 + $0x8] sm:$0xff] %vm633, %v730
        %765 = vst.msk [vmem:[#allocation3 + $0x10] sm:$0xff] %vm633, %v735
        %766 = vst.msk [vmem:[#allocation3 + $0x18] sm:$0xff] %vm633, %v740
        %767 = vst.msk [vmem:[#allocation3 + $0x20] sm:$0xff] %vm633, %v745
        %768 = vst.msk [vmem:[#allocation3 + $0x28] sm:$0xff] %vm633, %v750
        %769 = vst.msk [vmem:[#allocation3 + $0x30] sm:$0xff] %vm633, %v755
        %770 = vst.msk [vmem:[#allocation3 + $0x38] sm:$0xff] %vm633, %v760
        %v771 = vld [vmem:[%s560] sm:$0xff]
        %v772 = vld [vmem:[%s560 + $0x8] sm:$0xff]
        %v773 = vld [vmem:[%s560 + $0x10] sm:$0xff]
        %v774 = vld [vmem:[%s560 + $0x18] sm:$0xff]
        %v775 = vld [vmem:[%s586] sm:$0x1]
        %v777 = vlaneseq
        %v778 = vshrl.u32 %v777, 7
        %v779 = vsub.s32 0, %v778
        %v780 = vrot.slane %v775, %v779
        %782 = vmatprep.subr.mxu0 0.0
        %783 = vmatpush1.msra.mxu0 0.0
        %784 = vmatprep.subr.mxu0 0.0
        %785 = vmatpush1.msra.mxu0 0.0
        %786 = vmatprep.subr.mxu0 0.0
        %787 = vmatpush1.msra.mxu0 0.0
        %788 = vmatprep.subr.mxu0 0.0
        %789 = vmatpush1.msra.mxu0 0.0
        %790 = vmatprep.subr.mxu0 0.0
        %791 = vmatpush1.msra.mxu0 0.0
        %792 = vmatprep.subr.mxu0 0.0
        %793 = vmatpush1.msra.mxu0 0.0
        %794 = vmatprep.subr.mxu0 0.0
        %795 = vmatpush1.msra.mxu0 0.0
        %796 = vmatprep.subr.mxu0 0.0
        %797 = vmatpush1.msra.mxu0 0.0
        %798 = vmatprep.subr.mxu0 0.0
        %799 = vmatpush1.msra.mxu0 0.0
        %800 = vmatprep.subr.mxu0 0.0
        %801 = vmatpush1.msra.mxu0 0.0
        %802 = vmatprep.subr.mxu0 0.0
        %803 = vmatpush1.msra.mxu0 0.0
        %804 = vmatprep.subr.mxu0 0.0
        %805 = vmatpush1.msra.mxu0 0.0
        %806 = vmatprep.subr.mxu0 0.0
        %807 = vmatpush1.msra.mxu0 %v774
        %808 = vmatprep.subr.mxu0 0.0
        %809 = vmatpush1.msra.mxu0 %v773
        %810 = vmatprep.subr.mxu0 0.0
        %811 = vmatpush1.msra.mxu0 %v772
        %812 = vmatprep.subr.mxu0 0.0
        %813 = vmatpush1.msra.mxu0 %v771
        %814 = vmatprep.subr.mxu0 0.0
        %815 = vmatpush2.msra.mxu0 0.0
        %816 = vmatprep.subr.mxu0 0.0
        %817 = vmatpush2.msra.mxu0 0.0
        %818 = vmatprep.subr.mxu0 0.0
        %819 = vmatpush2.msra.mxu0 0.0
        %820 = vmatprep.subr.mxu0 0.0
        %821 = vmatpush2.msra.mxu0 0.0
        %822 = vmatprep.subr.mxu0 0.0
        %823 = vmatpush2.msra.mxu0 0.0
        %824 = vmatprep.subr.mxu0 0.0
        %825 = vmatpush2.msra.mxu0 0.0
        %826 = vmatprep.subr.mxu0 0.0
        %827 = vmatpush2.msra.mxu0 0.0
        %828 = vmatprep.subr.mxu0 0.0
        %829 = vmatpush2.msra.mxu0 0.0
        %830 = vmatprep.subr.mxu0 0.0
        %831 = vmatpush2.msra.mxu0 0.0
        %832 = vmatprep.subr.mxu0 0.0
        %833 = vmatpush2.msra.mxu0 0.0
        %834 = vmatprep.subr.mxu0 0.0
        %835 = vmatpush2.msra.mxu0 0.0
        %836 = vmatprep.subr.mxu0 0.0
        %837 = vmatpush2.msra.mxu0 0.0
        %838 = vmatprep.subr.mxu0 0.0
        %839 = vmatpush2.msra.mxu0 0.0
        %840 = vmatprep.subr.mxu0 0.0
        %841 = vmatpush2.msra.mxu0 0.0
        %842 = vmatprep.subr.mxu0 0.0
        %843 = vmatpush2.msra.mxu0 0.0
        %844 = vmatprep.subr.mxu0 0.0
        %845 = vmatpush2.msra.mxu0 0.0
        %846 = vmatprep.mubr.f32.mxu0 0.0
        %847 = vmatmul.mubr.f32.gmra.mxu0 %v635
        %v848 = vpop.f32.mrf.mxu0
        %v849 = vadd.f32 %v780, %v848
        %v850 = vpop.f32.mrf.mxu0
        %851 = vmatprep.mubr.f32.mxu0 0.0
        %852 = vmatmul.mubr.f32.gmra.mxu0 %v638
        %v853 = vpop.f32.mrf.mxu0
        %v854 = vadd.f32 %v780, %v853
        %v855 = vpop.f32.mrf.mxu0
        %856 = vmatprep.mubr.f32.mxu0 0.0
        %857 = vmatmul.mubr.f32.gmra.mxu0 %v641
        %v858 = vpop.f32.mrf.mxu0
        %v859 = vadd.f32 %v780, %v858
        %v860 = vpop.f32.mrf.mxu0
        %861 = vmatprep.mubr.f32.mxu0 0.0
        %862 = vmatmul.mubr.f32.gmra.mxu0 %v644
        %v863 = vpop.f32.mrf.mxu0
        %v864 = vadd.f32 %v780, %v863
        %v865 = vpop.f32.mrf.mxu0
        %866 = vmatprep.mubr.f32.mxu0 0.0
        %867 = vmatmul.mubr.f32.gmra.mxu0 %v647
        %v868 = vpop.f32.mrf.mxu0
        %v869 = vadd.f32 %v780, %v868
        %v870 = vpop.f32.mrf.mxu0
        %871 = vmatprep.mubr.f32.mxu0 0.0
        %872 = vmatmul.mubr.f32.gmra.mxu0 %v650
        %v873 = vpop.f32.mrf.mxu0
        %v874 = vadd.f32 %v780, %v873
        %v875 = vpop.f32.mrf.mxu0
        %876 = vmatprep.mubr.f32.mxu0 0.0
        %877 = vmatmul.mubr.f32.gmra.mxu0 %v653
        %v878 = vpop.f32.mrf.mxu0
        %v879 = vadd.f32 %v780, %v878
        %v880 = vpop.f32.mrf.mxu0
        %881 = vmatprep.mubr.f32.mxu0 0.0
        %882 = vmatmul.mubr.f32.gmra.mxu0 %v656
        %v883 = vpop.f32.mrf.mxu0
        %v884 = vadd.f32 %v780, %v883
        %v885 = vpop.f32.mrf.mxu0
        %886 = vdwg.mxu0
        %887 = vst.msk [vmem:[#allocation4] sm:$0xff] %vm633, %v849
        %888 = vst.msk [vmem:[#allocation4 + $0x8] sm:$0xff] %vm633, %v854
        %889 = vst.msk [vmem:[#allocation4 + $0x10] sm:$0xff] %vm633, %v859
        %890 = vst.msk [vmem:[#allocation4 + $0x18] sm:$0xff] %vm633, %v864
        %891 = vst.msk [vmem:[#allocation4 + $0x20] sm:$0xff] %vm633, %v869
        %892 = vst.msk [vmem:[#allocation4 + $0x28] sm:$0xff] %vm633, %v874
        %893 = vst.msk [vmem:[#allocation4 + $0x30] sm:$0xff] %vm633, %v879
        %894 = vst.msk [vmem:[#allocation4 + $0x38] sm:$0xff] %vm633, %v884
        %v895 = vld [vmem:[%s565] sm:$0xff]
        %v896 = vld [vmem:[%s565 + $0x8] sm:$0xff]
        %v897 = vld [vmem:[%s565 + $0x10] sm:$0xff]
        %v898 = vld [vmem:[%s565 + $0x18] sm:$0xff]
        %v899 = vld [vmem:[%s589] sm:$0x1]
        %v901 = vlaneseq
        %v902 = vshrl.u32 %v901, 7
        %v903 = vsub.s32 0, %v902
        %v904 = vrot.slane %v899, %v903
        %906 = vmatprep.subr.mxu0 0.0
        %907 = vmatpush1.msra.mxu0 0.0
        %908 = vmatprep.subr.mxu0 0.0
        %909 = vmatpush1.msra.mxu0 0.0
        %910 = vmatprep.subr.mxu0 0.0
        %911 = vmatpush1.msra.mxu0 0.0
        %912 = vmatprep.subr.mxu0 0.0
        %913 = vmatpush1.msra.mxu0 0.0
        %914 = vmatprep.subr.mxu0 0.0
        %915 = vmatpush1.msra.mxu0 0.0
        %916 = vmatprep.subr.mxu0 0.0
        %917 = vmatpush1.msra.mxu0 0.0
        %918 = vmatprep.subr.mxu0 0.0
        %919 = vmatpush1.msra.mxu0 0.0
        %920 = vmatprep.subr.mxu0 0.0
        %921 = vmatpush1.msra.mxu0 0.0
        %922 = vmatprep.subr.mxu0 0.0
        %923 = vmatpush1.msra.mxu0 0.0
        %924 = vmatprep.subr.mxu0 0.0
        %925 = vmatpush1.msra.mxu0 0.0
        %926 = vmatprep.subr.mxu0 0.0
        %927 = vmatpush1.msra.mxu0 0.0
        %928 = vmatprep.subr.mxu0 0.0
        %929 = vmatpush1.msra.mxu0 0.0
        %930 = vmatprep.subr.mxu0 0.0
        %931 = vmatpush1.msra.mxu0 %v898
        %932 = vmatprep.subr.mxu0 0.0
        %933 = vmatpush1.msra.mxu0 %v897
        %934 = vmatprep.subr.mxu0 0.0
        %935 = vmatpush1.msra.mxu0 %v896
        %936 = vmatprep.subr.mxu0 0.0
        %937 = vmatpush1.msra.mxu0 %v895
        %938 = vmatprep.subr.mxu0 0.0
        %939 = vmatpush2.msra.mxu0 0.0
        %940 = vmatprep.subr.mxu0 0.0
        %941 = vmatpush2.msra.mxu0 0.0
        %942 = vmatprep.subr.mxu0 0.0
        %943 = vmatpush2.msra.mxu0 0.0
        %944 = vmatprep.subr.mxu0 0.0
        %945 = vmatpush2.msra.mxu0 0.0
        %946 = vmatprep.subr.mxu0 0.0
        %947 = vmatpush2.msra.mxu0 0.0
        %948 = vmatprep.subr.mxu0 0.0
        %949 = vmatpush2.msra.mxu0 0.0
        %950 = vmatprep.subr.mxu0 0.0
        %951 = vmatpush2.msra.mxu0 0.0
        %952 = vmatprep.subr.mxu0 0.0
        %953 = vmatpush2.msra.mxu0 0.0
        %954 = vmatprep.subr.mxu0 0.0
        %955 = vmatpush2.msra.mxu0 0.0
        %956 = vmatprep.subr.mxu0 0.0
        %957 = vmatpush2.msra.mxu0 0.0
        %958 = vmatprep.subr.mxu0 0.0
        %959 = vmatpush2.msra.mxu0 0.0
        %960 = vmatprep.subr.mxu0 0.0
        %961 = vmatpush2.msra.mxu0 0.0
        %962 = vmatprep.subr.mxu0 0.0
        %963 = vmatpush2.msra.mxu0 0.0
        %964 = vmatprep.subr.mxu0 0.0
        %965 = vmatpush2.msra.mxu0 0.0
        %966 = vmatprep.subr.mxu0 0.0
        %967 = vmatpush2.msra.mxu0 0.0
        %968 = vmatprep.subr.mxu0 0.0
        %969 = vmatpush2.msra.mxu0 0.0
        %970 = vmatprep.mubr.f32.mxu0 0.0
        %971 = vmatmul.mubr.f32.gmra.mxu0 %v635
        %v972 = vpop.f32.mrf.mxu0
        %v973 = vadd.f32 %v904, %v972
        %v974 = vpop.f32.mrf.mxu0
        %975 = vmatprep.mubr.f32.mxu0 0.0
        %976 = vmatmul.mubr.f32.gmra.mxu0 %v638
        %v977 = vpop.f32.mrf.mxu0
        %v978 = vadd.f32 %v904, %v977
        %v979 = vpop.f32.mrf.mxu0
        %980 = vmatprep.mubr.f32.mxu0 0.0
        %981 = vmatmul.mubr.f32.gmra.mxu0 %v641
        %v982 = vpop.f32.mrf.mxu0
        %v983 = vadd.f32 %v904, %v982
        %v984 = vpop.f32.mrf.mxu0
        %985 = vmatprep.mubr.f32.mxu0 0.0
        %986 = vmatmul.mubr.f32.gmra.mxu0 %v644
        %v987 = vpop.f32.mrf.mxu0
        %v988 = vadd.f32 %v904, %v987
        %v989 = vpop.f32.mrf.mxu0
        %990 = vmatprep.mubr.f32.mxu0 0.0
        %991 = vmatmul.mubr.f32.gmra.mxu0 %v647
        %v992 = vpop.f32.mrf.mxu0
        %v993 = vadd.f32 %v904, %v992
        %v994 = vpop.f32.mrf.mxu0
        %995 = vmatprep.mubr.f32.mxu0 0.0
        %996 = vmatmul.mubr.f32.gmra.mxu0 %v650
        %v997 = vpop.f32.mrf.mxu0
        %v998 = vadd.f32 %v904, %v997
        %v999 = vpop.f32.mrf.mxu0
        %1000 = vmatprep.mubr.f32.mxu0 0.0
        %1001 = vmatmul.mubr.f32.gmra.mxu0 %v653
        %v1002 = vpop.f32.mrf.mxu0
        %v1003 = vadd.f32 %v904, %v1002
        %v1004 = vpop.f32.mrf.mxu0
        %1005 = vmatprep.mubr.f32.mxu0 0.0
        %1006 = vmatmul.mubr.f32.gmra.mxu0 %v656
        %v1007 = vpop.f32.mrf.mxu0
        %v1008 = vadd.f32 %v904, %v1007
        %v1009 = vpop.f32.mrf.mxu0
        %1010 = vdwg.mxu0
        %1011 = vst.msk [vmem:[#allocation5] sm:$0xff] %vm633, %v973
        %1012 = vst.msk [vmem:[#allocation5 + $0x8] sm:$0xff] %vm633, %v978
        %1013 = vst.msk [vmem:[#allocation5 + $0x10] sm:$0xff] %vm633, %v983
        %1014 = vst.msk [vmem:[#allocation5 + $0x18] sm:$0xff] %vm633, %v988
        %1015 = vst.msk [vmem:[#allocation5 + $0x20] sm:$0xff] %vm633, %v993
        %1016 = vst.msk [vmem:[#allocation5 + $0x28] sm:$0xff] %vm633, %v998
        %1017 = vst.msk [vmem:[#allocation5 + $0x30] sm:$0xff] %vm633, %v1003
        %1018 = vst.msk [vmem:[#allocation5 + $0x38] sm:$0xff] %vm633, %v1008
        %v1019 = vld [vmem:[%s0] sm:$0xff]
        %v1020 = vld [vmem:[%s570] sm:$0xff]
        %v1021 = vld [vmem:[%s570 + $0x8] sm:$0xff]
        %v1022 = vld [vmem:[%s570 + $0x10] sm:$0xff]
        %v1023 = vld [vmem:[%s570 + $0x18] sm:$0xff]
        %v1024 = vld [vmem:[%s575] sm:$0xff]
        %v1025 = vld [vmem:[%s575 + $0x8] sm:$0xff]
        %v1026 = vld [vmem:[%s575 + $0x10] sm:$0xff]
        %v1027 = vld [vmem:[%s575 + $0x18] sm:$0xff]
        %v1028 = vld [vmem:[%s580] sm:$0xff]
        %v1029 = vld [vmem:[%s580 + $0x8] sm:$0xff]
        %v1030 = vld [vmem:[%s580 + $0x10] sm:$0xff]
        %v1031 = vld [vmem:[%s580 + $0x18] sm:$0xff]
        %v1032 = vld [vmem:[%s592] sm:$0x1]
        %v1034 = vlaneseq
        %v1035 = vshrl.u32 %v1034, 7
        %v1036 = vsub.s32 0, %v1035
        %v1037 = vrot.slane %v1032, %v1036
        %vm1039 = vcmp.gt.s32.totalorder %v1019, 0
        %v1040 = vsel %vm1039, 1, 0
        %v1041 = vcvt.s32.f32 %v1040
        %v1043 = vsel %vm633, 0.0, 0
        %1045 = vmatprep.subr.mxu0 0.0
        %1046 = vmatpush1.msra.mxu0 0.0
        %1047 = vmatprep.subr.mxu0 0.0
        %1048 = vmatpush1.msra.mxu0 0.0
        %1049 = vmatprep.subr.mxu0 0.0
        %1050 = vmatpush1.msra.mxu0 0.0
        %1051 = vmatprep.subr.mxu0 0.0
        %1052 = vmatpush1.msra.mxu0 0.0
        %1053 = vmatprep.subr.mxu0 0.0
        %1054 = vmatpush1.msra.mxu0 0.0
        %1055 = vmatprep.subr.mxu0 0.0
        %1056 = vmatpush1.msra.mxu0 0.0
        %1057 = vmatprep.subr.mxu0 0.0
        %1058 = vmatpush1.msra.mxu0 0.0
        %1059 = vmatprep.subr.mxu0 0.0
        %1060 = vmatpush1.msra.mxu0 0.0
        %1061 = vmatprep.subr.mxu0 0.0
        %1062 = vmatpush1.msra.mxu0 0.0
        %1063 = vmatprep.subr.mxu0 0.0
        %1064 = vmatpush1.msra.mxu0 0.0
        %1065 = vmatprep.subr.mxu0 0.0
        %1066 = vmatpush1.msra.mxu0 0.0
        %1067 = vmatprep.subr.mxu0 0.0
        %1068 = vmatpush1.msra.mxu0 0.0
        %1069 = vmatprep.subr.mxu0 0.0
        %1070 = vmatpush1.msra.mxu0 %v1023
        %1071 = vmatprep.subr.mxu0 0.0
        %1072 = vmatpush1.msra.mxu0 %v1022
        %1073 = vmatprep.subr.mxu0 0.0
        %1074 = vmatpush1.msra.mxu0 %v1021
        %1075 = vmatprep.subr.mxu0 0.0
        %1076 = vmatpush1.msra.mxu0 %v1020
        %1077 = vmatprep.subr.mxu0 0.0
        %1078 = vmatpush2.msra.mxu0 0.0
        %1079 = vmatprep.subr.mxu0 0.0
        %1080 = vmatpush2.msra.mxu0 0.0
        %1081 = vmatprep.subr.mxu0 0.0
        %1082 = vmatpush2.msra.mxu0 0.0
        %1083 = vmatprep.subr.mxu0 0.0
        %1084 = vmatpush2.msra.mxu0 0.0
        %1085 = vmatprep.subr.mxu0 0.0
        %1086 = vmatpush2.msra.mxu0 0.0
        %1087 = vmatprep.subr.mxu0 0.0
        %1088 = vmatpush2.msra.mxu0 0.0
        %1089 = vmatprep.subr.mxu0 0.0
        %1090 = vmatpush2.msra.mxu0 0.0
        %1091 = vmatprep.subr.mxu0 0.0
        %1092 = vmatpush2.msra.mxu0 0.0
        %1093 = vmatprep.subr.mxu0 0.0
        %1094 = vmatpush2.msra.mxu0 0.0
        %1095 = vmatprep.subr.mxu0 0.0
        %1096 = vmatpush2.msra.mxu0 0.0
        %1097 = vmatprep.subr.mxu0 0.0
        %1098 = vmatpush2.msra.mxu0 0.0
        %1099 = vmatprep.subr.mxu0 0.0
        %1100 = vmatpush2.msra.mxu0 0.0
        %1101 = vmatprep.subr.mxu0 0.0
        %1102 = vmatpush2.msra.mxu0 0.0
        %1103 = vmatprep.subr.mxu0 0.0
        %1104 = vmatpush2.msra.mxu0 0.0
        %1105 = vmatprep.subr.mxu0 0.0
        %1106 = vmatpush2.msra.mxu0 0.0
        %1107 = vmatprep.subr.mxu0 0.0
        %1108 = vmatpush2.msra.mxu0 0.0
        %1109 = vmatprep.mubr.f32.mxu0 0.0
        %1110 = vmatmul.mubr.f32.gmra.mxu0 %v1043
        %v1111 = vpop.f32.mrf.mxu0
        %v1112 = vadd.f32 0.0, %v1111
        %v1113 = vpop.f32.mrf.mxu0
        %1114 = vdwg.mxu0
        %1115 = vmatprep.subr.mxu0 0.0
        %1116 = vmatpush1.msra.mxu0 0.0
        %1117 = vmatprep.subr.mxu0 0.0
        %1118 = vmatpush1.msra.mxu0 0.0
        %1119 = vmatprep.subr.mxu0 0.0
        %1120 = vmatpush1.msra.mxu0 0.0
        %1121 = vmatprep.subr.mxu0 0.0
        %1122 = vmatpush1.msra.mxu0 0.0
        %1123 = vmatprep.subr.mxu0 0.0
        %1124 = vmatpush1.msra.mxu0 0.0
        %1125 = vmatprep.subr.mxu0 0.0
        %1126 = vmatpush1.msra.mxu0 0.0
        %1127 = vmatprep.subr.mxu0 0.0
        %1128 = vmatpush1.msra.mxu0 0.0
        %1129 = vmatprep.subr.mxu0 0.0
        %1130 = vmatpush1.msra.mxu0 0.0
        %1131 = vmatprep.subr.mxu0 0.0
        %1132 = vmatpush1.msra.mxu0 0.0
        %1133 = vmatprep.subr.mxu0 0.0
        %1134 = vmatpush1.msra.mxu0 0.0
        %1135 = vmatprep.subr.mxu0 0.0
        %1136 = vmatpush1.msra.mxu0 0.0
        %1137 = vmatprep.subr.mxu0 0.0
        %1138 = vmatpush1.msra.mxu0 0.0
        %1139 = vmatprep.subr.mxu0 0.0
        %1140 = vmatpush1.msra.mxu0 %v1027
        %1141 = vmatprep.subr.mxu0 0.0
        %1142 = vmatpush1.msra.mxu0 %v1026
        %1143 = vmatprep.subr.mxu0 0.0
        %1144 = vmatpush1.msra.mxu0 %v1025
        %1145 = vmatprep.subr.mxu0 0.0
        %1146 = vmatpush1.msra.mxu0 %v1024
        %1147 = vmatprep.subr.mxu0 0.0
        %1148 = vmatpush2.msra.mxu0 0.0
        %1149 = vmatprep.subr.mxu0 0.0
        %1150 = vmatpush2.msra.mxu0 0.0
        %1151 = vmatprep.subr.mxu0 0.0
        %1152 = vmatpush2.msra.mxu0 0.0
        %1153 = vmatprep.subr.mxu0 0.0
        %1154 = vmatpush2.msra.mxu0 0.0
        %1155 = vmatprep.subr.mxu0 0.0
        %1156 = vmatpush2.msra.mxu0 0.0
        %1157 = vmatprep.subr.mxu0 0.0
        %1158 = vmatpush2.msra.mxu0 0.0
        %1159 = vmatprep.subr.mxu0 0.0
        %1160 = vmatpush2.msra.mxu0 0.0
        %1161 = vmatprep.subr.mxu0 0.0
        %1162 = vmatpush2.msra.mxu0 0.0
        %1163 = vmatprep.subr.mxu0 0.0
        %1164 = vmatpush2.msra.mxu0 0.0
        %1165 = vmatprep.subr.mxu0 0.0
        %1166 = vmatpush2.msra.mxu0 0.0
        %1167 = vmatprep.subr.mxu0 0.0
        %1168 = vmatpush2.msra.mxu0 0.0
        %1169 = vmatprep.subr.mxu0 0.0
        %1170 = vmatpush2.msra.mxu0 0.0
        %1171 = vmatprep.subr.mxu0 0.0
        %1172 = vmatpush2.msra.mxu0 0.0
        %1173 = vmatprep.subr.mxu0 0.0
        %1174 = vmatpush2.msra.mxu0 0.0
        %1175 = vmatprep.subr.mxu0 0.0
        %1176 = vmatpush2.msra.mxu0 0.0
        %1177 = vmatprep.subr.mxu0 0.0
        %1178 = vmatpush2.msra.mxu0 0.0
        %1179 = vmatprep.mubr.f32.mxu0 0.0
        %1180 = vmatmul.mubr.f32.gmra.mxu0 %v1043
        %v1181 = vpop.f32.mrf.mxu0
        %v1182 = vadd.f32 0.0, %v1181
        %v1183 = vpop.f32.mrf.mxu0
        %1184 = vdwg.mxu0
        %1185 = vmatprep.subr.mxu0 0.0
        %1186 = vmatpush1.msra.mxu0 0.0
        %1187 = vmatprep.subr.mxu0 0.0
        %1188 = vmatpush1.msra.mxu0 0.0
        %1189 = vmatprep.subr.mxu0 0.0
        %1190 = vmatpush1.msra.mxu0 0.0
        %1191 = vmatprep.subr.mxu0 0.0
        %1192 = vmatpush1.msra.mxu0 0.0
        %1193 = vmatprep.subr.mxu0 0.0
        %1194 = vmatpush1.msra.mxu0 0.0
        %1195 = vmatprep.subr.mxu0 0.0
        %1196 = vmatpush1.msra.mxu0 0.0
        %1197 = vmatprep.subr.mxu0 0.0
        %1198 = vmatpush1.msra.mxu0 0.0
        %1199 = vmatprep.subr.mxu0 0.0
        %1200 = vmatpush1.msra.mxu0 0.0
        %1201 = vmatprep.subr.mxu0 0.0
        %1202 = vmatpush1.msra.mxu0 0.0
        %1203 = vmatprep.subr.mxu0 0.0
        %1204 = vmatpush1.msra.mxu0 0.0
        %1205 = vmatprep.subr.mxu0 0.0
        %1206 = vmatpush1.msra.mxu0 0.0
        %1207 = vmatprep.subr.mxu0 0.0
        %1208 = vmatpush1.msra.mxu0 0.0
        %1209 = vmatprep.subr.mxu0 0.0
        %1210 = vmatpush1.msra.mxu0 %v1031
        %1211 = vmatprep.subr.mxu0 0.0
        %1212 = vmatpush1.msra.mxu0 %v1030
        %1213 = vmatprep.subr.mxu0 0.0
        %1214 = vmatpush1.msra.mxu0 %v1029
        %1215 = vmatprep.subr.mxu0 0.0
        %1216 = vmatpush1.msra.mxu0 %v1028
        %1217 = vmatprep.subr.mxu0 0.0
        %1218 = vmatpush2.msra.mxu0 0.0
        %1219 = vmatprep.subr.mxu0 0.0
        %1220 = vmatpush2.msra.mxu0 0.0
        %1221 = vmatprep.subr.mxu0 0.0
        %1222 = vmatpush2.msra.mxu0 0.0
        %1223 = vmatprep.subr.mxu0 0.0
        %1224 = vmatpush2.msra.mxu0 0.0
        %1225 = vmatprep.subr.mxu0 0.0
        %1226 = vmatpush2.msra.mxu0 0.0
        %1227 = vmatprep.subr.mxu0 0.0
        %1228 = vmatpush2.msra.mxu0 0.0
        %1229 = vmatprep.subr.mxu0 0.0
        %1230 = vmatpush2.msra.mxu0 0.0
        %1231 = vmatprep.subr.mxu0 0.0
        %1232 = vmatpush2.msra.mxu0 0.0
        %1233 = vmatprep.subr.mxu0 0.0
        %1234 = vmatpush2.msra.mxu0 0.0
        %1235 = vmatprep.subr.mxu0 0.0
        %1236 = vmatpush2.msra.mxu0 0.0
        %1237 = vmatprep.subr.mxu0 0.0
        %1238 = vmatpush2.msra.mxu0 0.0
        %1239 = vmatprep.subr.mxu0 0.0
        %1240 = vmatpush2.msra.mxu0 0.0
        %1241 = vmatprep.subr.mxu0 0.0
        %1242 = vmatpush2.msra.mxu0 0.0
        %1243 = vmatprep.subr.mxu0 0.0
        %1244 = vmatpush2.msra.mxu0 0.0
        %1245 = vmatprep.subr.mxu0 0.0
        %1246 = vmatpush2.msra.mxu0 0.0
        %1247 = vmatprep.subr.mxu0 0.0
        %1248 = vmatpush2.msra.mxu0 0.0
        %1249 = vmatprep.mubr.f32.mxu0 0.0
        %1250 = vmatmul.mubr.f32.gmra.mxu0 %v1043
        %v1251 = vpop.f32.mrf.mxu0
        %v1252 = vadd.f32 %v1037, %v1251
        %v1253 = vpop.f32.mrf.mxu0
        %1254 = vdwg.mxu0
        %v1255 = vld [vmem:[#allocation3] sm:$0xff]
        %v1256 = vadd.f32 %v1255, %v1112
        %v1257 = vxor.u32 %v1256, 2147483648
        %v1258 = vmul.f32 %v1257, 1.442695
        %v1259 = vpow.pop %v1258
        %v1260 = vadd.f32 %v1259, 1.0
        %v1261 = vrcp.pop %v1260
        %v1262 = vmul.f32 1.0, %v1261
        %v1263 = vld [vmem:[#allocation4] sm:$0xff]
        %v1264 = vadd.f32 %v1263, %v1182
        %v1265 = vxor.u32 %v1264, 2147483648
        %v1266 = vmul.f32 %v1265, 1.442695
        %v1267 = vpow.pop %v1266
        %v1268 = vadd.f32 %v1267, 1.0
        %v1269 = vrcp.pop %v1268
        %v1270 = vmul.f32 1.0, %v1269
        %v1271 = vld [vmem:[#allocation5] sm:$0xff]
        %v1272 = vmul.f32 %v1262, %v1252
        %v1273 = vadd.f32 %v1271, %v1272
        %v1274 = vtanh.pop %v1273
        %v1275 = vsub.f32 1.0, %v1270
        %v1276 = vmul.f32 %v1275, %v1274
        %v1277 = vmul.f32 %v1270, 0.0
        %v1278 = vadd.f32 %v1276, %v1277
        %1280 = vset.pattern.permute.xlu0 0
        %1281 = vperm.xlu0 %1280, %v1041
        %v1282 = vpop.permute.xlu0 %1281
        %v1284 = vmul.f32 %v1282, %v1278
        %v1285 = vsub.f32 1.0, %v1041
        %1287 = vset.pattern.permute.xlu0 0
        %1288 = vperm.xlu0 %1287, %v1285
        %v1289 = vpop.permute.xlu0 %1288
        %v1291 = vmul.f32 %v1289, 0.0
        %v1292 = vadd.f32 %v1284, %v1291
        %1293 = vst.msk [vmem:[#allocation2] sm:$0xff] %vm633, %v1284
        %vm1294 = vcmp.gt.s32.totalorder %v1019, 1
        %v1295 = vsel %vm1294, 1, 0
        %v1296 = vcvt.s32.f32 %v1295
        %v1298 = vsel %vm633, %v1292, 0
        %1300 = vmatprep.subr.mxu0 0.0
        %1301 = vmatpush1.msra.mxu0 0.0
        %1302 = vmatprep.subr.mxu0 0.0
        %1303 = vmatpush1.msra.mxu0 0.0
        %1304 = vmatprep.subr.mxu0 0.0
        %1305 = vmatpush1.msra.mxu0 0.0
        %1306 = vmatprep.subr.mxu0 0.0
        %1307 = vmatpush1.msra.mxu0 0.0
        %1308 = vmatprep.subr.mxu0 0.0
        %1309 = vmatpush1.msra.mxu0 0.0
        %1310 = vmatprep.subr.mxu0 0.0
        %1311 = vmatpush1.msra.mxu0 0.0
        %1312 = vmatprep.subr.mxu0 0.0
        %1313 = vmatpush1.msra.mxu0 0.0
        %1314 = vmatprep.subr.mxu0 0.0
        %1315 = vmatpush1.msra.mxu0 0.0
        %1316 = vmatprep.subr.mxu0 0.0
        %1317 = vmatpush1.msra.mxu0 0.0
        %1318 = vmatprep.subr.mxu0 0.0
        %1319 = vmatpush1.msra.mxu0 0.0
        %1320 = vmatprep.subr.mxu0 0.0
        %1321 = vmatpush1.msra.mxu0 0.0
        %1322 = vmatprep.subr.mxu0 0.0
        %1323 = vmatpush1.msra.mxu0 0.0
        %1324 = vmatprep.subr.mxu0 0.0
        %1325 = vmatpush1.msra.mxu0 %v1023
        %1326 = vmatprep.subr.mxu0 0.0
        %1327 = vmatpush1.msra.mxu0 %v1022
        %1328 = vmatprep.subr.mxu0 0.0
        %1329 = vmatpush1.msra.mxu0 %v1021
        %1330 = vmatprep.subr.mxu0 0.0
        %1331 = vmatpush1.msra.mxu0 %v1020
        %1332 = vmatprep.subr.mxu0 0.0
        %1333 = vmatpush2.msra.mxu0 0.0
        %1334 = vmatprep.subr.mxu0 0.0
        %1335 = vmatpush2.msra.mxu0 0.0
        %1336 = vmatprep.subr.mxu0 0.0
        %1337 = vmatpush2.msra.mxu0 0.0
        %1338 = vmatprep.subr.mxu0 0.0
        %1339 = vmatpush2.msra.mxu0 0.0
        %1340 = vmatprep.subr.mxu0 0.0
        %1341 = vmatpush2.msra.mxu0 0.0
        %1342 = vmatprep.subr.mxu0 0.0
        %1343 = vmatpush2.msra.mxu0 0.0
        %1344 = vmatprep.subr.mxu0 0.0
        %1345 = vmatpush2.msra.mxu0 0.0
        %1346 = vmatprep.subr.mxu0 0.0
        %1347 = vmatpush2.msra.mxu0 0.0
        %1348 = vmatprep.subr.mxu0 0.0
        %1349 = vmatpush2.msra.mxu0 0.0
        %1350 = vmatprep.subr.mxu0 0.0
        %1351 = vmatpush2.msra.mxu0 0.0
        %1352 = vmatprep.subr.mxu0 0.0
        %1353 = vmatpush2.msra.mxu0 0.0
        %1354 = vmatprep.subr.mxu0 0.0
        %1355 = vmatpush2.msra.mxu0 0.0
        %1356 = vmatprep.subr.mxu0 0.0
        %1357 = vmatpush2.msra.mxu0 0.0
        %1358 = vmatprep.subr.mxu0 0.0
        %1359 = vmatpush2.msra.mxu0 0.0
        %1360 = vmatprep.subr.mxu0 0.0
        %1361 = vmatpush2.msra.mxu0 0.0
        %1362 = vmatprep.subr.mxu0 0.0
        %1363 = vmatpush2.msra.mxu0 0.0
        %1364 = vmatprep.mubr.f32.mxu0 0.0
        %1365 = vmatmul.mubr.f32.gmra.mxu0 %v1298
        %v1366 = vpop.f32.mrf.mxu0
        %v1367 = vadd.f32 0.0, %v1366
        %v1368 = vpop.f32.mrf.mxu0
        %1369 = vdwg.mxu0
        %1370 = vmatprep.subr.mxu0 0.0
        %1371 = vmatpush1.msra.mxu0 0.0
        %1372 = vmatprep.subr.mxu0 0.0
        %1373 = vmatpush1.msra.mxu0 0.0
        %1374 = vmatprep.subr.mxu0 0.0
        %1375 = vmatpush1.msra.mxu0 0.0
        %1376 = vmatprep.subr.mxu0 0.0
        %1377 = vmatpush1.msra.mxu0 0.0
        %1378 = vmatprep.subr.mxu0 0.0
        %1379 = vmatpush1.msra.mxu0 0.0
        %1380 = vmatprep.subr.mxu0 0.0
        %1381 = vmatpush1.msra.mxu0 0.0
        %1382 = vmatprep.subr.mxu0 0.0
        %1383 = vmatpush1.msra.mxu0 0.0
        %1384 = vmatprep.subr.mxu0 0.0
        %1385 = vmatpush1.msra.mxu0 0.0
        %1386 = vmatprep.subr.mxu0 0.0
        %1387 = vmatpush1.msra.mxu0 0.0
        %1388 = vmatprep.subr.mxu0 0.0
        %1389 = vmatpush1.msra.mxu0 0.0
        %1390 = vmatprep.subr.mxu0 0.0
        %1391 = vmatpush1.msra.mxu0 0.0
        %1392 = vmatprep.subr.mxu0 0.0
        %1393 = vmatpush1.msra.mxu0 0.0
        %1394 = vmatprep.subr.mxu0 0.0
        %1395 = vmatpush1.msra.mxu0 %v1027
        %1396 = vmatprep.subr.mxu0 0.0
        %1397 = vmatpush1.msra.mxu0 %v1026
        %1398 = vmatprep.subr.mxu0 0.0
        %1399 = vmatpush1.msra.mxu0 %v1025
        %1400 = vmatprep.subr.mxu0 0.0
        %1401 = vmatpush1.msra.mxu0 %v1024
        %1402 = vmatprep.subr.mxu0 0.0
        %1403 = vmatpush2.msra.mxu0 0.0
        %1404 = vmatprep.subr.mxu0 0.0
        %1405 = vmatpush2.msra.mxu0 0.0
        %1406 = vmatprep.subr.mxu0 0.0
        %1407 = vmatpush2.msra.mxu0 0.0
        %1408 = vmatprep.subr.mxu0 0.0
        %1409 = vmatpush2.msra.mxu0 0.0
        %1410 = vmatprep.subr.mxu0 0.0
        %1411 = vmatpush2.msra.mxu0 0.0
        %1412 = vmatprep.subr.mxu0 0.0
        %1413 = vmatpush2.msra.mxu0 0.0
        %1414 = vmatprep.subr.mxu0 0.0
        %1415 = vmatpush2.msra.mxu0 0.0
        %1416 = vmatprep.subr.mxu0 0.0
        %1417 = vmatpush2.msra.mxu0 0.0
        %1418 = vmatprep.subr.mxu0 0.0
        %1419 = vmatpush2.msra.mxu0 0.0
        %1420 = vmatprep.subr.mxu0 0.0
        %1421 = vmatpush2.msra.mxu0 0.0
        %1422 = vmatprep.subr.mxu0 0.0
        %1423 = vmatpush2.msra.mxu0 0.0
        %1424 = vmatprep.subr.mxu0 0.0
        %1425 = vmatpush2.msra.mxu0 0.0
        %1426 = vmatprep.subr.mxu0 0.0
        %1427 = vmatpush2.msra.mxu0 0.0
        %1428 = vmatprep.subr.mxu0 0.0
        %1429 = vmatpush2.msra.mxu0 0.0
        %1430 = vmatprep.subr.mxu0 0.0
        %1431 = vmatpush2.msra.mxu0 0.0
        %1432 = vmatprep.subr.mxu0 0.0
        %1433 = vmatpush2.msra.mxu0 0.0
        %1434 = vmatprep.mubr.f32.mxu0 0.0
        %1435 = vmatmul.mubr.f32.gmra.mxu0 %v1298
        %v1436 = vpop.f32.mrf.mxu0
        %v1437 = vadd.f32 0.0, %v1436
        %v1438 = vpop.f32.mrf.mxu0
        %1439 = vdwg.mxu0
        %1440 = vmatprep.subr.mxu0 0.0
        %1441 = vmatpush1.msra.mxu0 0.0
        %1442 = vmatprep.subr.mxu0 0.0
        %1443 = vmatpush1.msra.mxu0 0.0
        %1444 = vmatprep.subr.mxu0 0.0
        %1445 = vmatpush1.msra.mxu0 0.0
        %1446 = vmatprep.subr.mxu0 0.0
        %1447 = vmatpush1.msra.mxu0 0.0
        %1448 = vmatprep.subr.mxu0 0.0
        %1449 = vmatpush1.msra.mxu0 0.0
        %1450 = vmatprep.subr.mxu0 0.0
        %1451 = vmatpush1.msra.mxu0 0.0
        %1452 = vmatprep.subr.mxu0 0.0
        %1453 = vmatpush1.msra.mxu0 0.0
        %1454 = vmatprep.subr.mxu0 0.0
        %1455 = vmatpush1.msra.mxu0 0.0
        %1456 = vmatprep.subr.mxu0 0.0
        %1457 = vmatpush1.msra.mxu0 0.0
        %1458 = vmatprep.subr.mxu0 0.0
        %1459 = vmatpush1.msra.mxu0 0.0
        %1460 = vmatprep.subr.mxu0 0.0
        %1461 = vmatpush1.msra.mxu0 0.0
        %1462 = vmatprep.subr.mxu0 0.0
        %1463 = vmatpush1.msra.mxu0 0.0
        %1464 = vmatprep.subr.mxu0 0.0
        %1465 = vmatpush1.msra.mxu0 %v1031
        %1466 = vmatprep.subr.mxu0 0.0
        %1467 = vmatpush1.msra.mxu0 %v1030
        %1468 = vmatprep.subr.mxu0 0.0
        %1469 = vmatpush1.msra.mxu0 %v1029
        %1470 = vmatprep.subr.mxu0 0.0
        %1471 = vmatpush1.msra.mxu0 %v1028
        %1472 = vmatprep.subr.mxu0 0.0
        %1473 = vmatpush2.msra.mxu0 0.0
        %1474 = vmatprep.subr.mxu0 0.0
        %1475 = vmatpush2.msra.mxu0 0.0
        %1476 = vmatprep.subr.mxu0 0.0
        %1477 = vmatpush2.msra.mxu0 0.0
        %1478 = vmatprep.subr.mxu0 0.0
        %1479 = vmatpush2.msra.mxu0 0.0
        %1480 = vmatprep.subr.mxu0 0.0
        %1481 = vmatpush2.msra.mxu0 0.0
        %1482 = vmatprep.subr.mxu0 0.0
        %1483 = vmatpush2.msra.mxu0 0.0
        %1484 = vmatprep.subr.mxu0 0.0
        %1485 = vmatpush2.msra.mxu0 0.0
        %1486 = vmatprep.subr.mxu0 0.0
        %1487 = vmatpush2.msra.mxu0 0.0
        %1488 = vmatprep.subr.mxu0 0.0
        %1489 = vmatpush2.msra.mxu0 0.0
        %1490 = vmatprep.subr.mxu0 0.0
        %1491 = vmatpush2.msra.mxu0 0.0
        %1492 = vmatprep.subr.mxu0 0.0
        %1493 = vmatpush2.msra.mxu0 0.0
        %1494 = vmatprep.subr.mxu0 0.0
        %1495 = vmatpush2.msra.mxu0 0.0
        %1496 = vmatprep.subr.mxu0 0.0
        %1497 = vmatpush2.msra.mxu0 0.0
        %1498 = vmatprep.subr.mxu0 0.0
        %1499 = vmatpush2.msra.mxu0 0.0
        %1500 = vmatprep.subr.mxu0 0.0
        %1501 = vmatpush2.msra.mxu0 0.0
        %1502 = vmatprep.subr.mxu0 0.0
        %1503 = vmatpush2.msra.mxu0 0.0
        %1504 = vmatprep.mubr.f32.mxu0 0.0
        %1505 = vmatmul.mubr.f32.gmra.mxu0 %v1298
        %v1506 = vpop.f32.mrf.mxu0
        %v1507 = vadd.f32 %v1037, %v1506
        %v1508 = vpop.f32.mrf.mxu0
        %1509 = vdwg.mxu0
        %s1510 = scalar_lea.vmem [#allocation3], 8
        %v1511 = vld [vmem:[%s1510] sm:$0xff]
        %v1512 = vadd.f32 %v1511, %v1367
        %v1513 = vxor.u32 %v1512, 2147483648
        %v1514 = vmul.f32 %v1513, 1.442695
        %v1515 = vpow.pop %v1514
        %v1516 = vadd.f32 %v1515, 1.0
        %v1517 = vrcp.pop %v1516
        %v1518 = vmul.f32 1.0, %v1517
        %s1519 = scalar_lea.vmem [#allocation4], 8
        %v1520 = vld [vmem:[%s1519] sm:$0xff]
        %v1521 = vadd.f32 %v1520, %v1437
        %v1522 = vxor.u32 %v1521, 2147483648
        %v1523 = vmul.f32 %v1522, 1.442695
        %v1524 = vpow.pop %v1523
        %v1525 = vadd.f32 %v1524, 1.0
        %v1526 = vrcp.pop %v1525
        %v1527 = vmul.f32 1.0, %v1526
        %s1528 = scalar_lea.vmem [#allocation5], 8
        %v1529 = vld [vmem:[%s1528] sm:$0xff]
        %v1530 = vmul.f32 %v1518, %v1507
        %v1531 = vadd.f32 %v1529, %v1530
        %v1532 = vtanh.pop %v1531
        %v1533 = vsub.f32 1.0, %v1527
        %v1534 = vmul.f32 %v1533, %v1532
        %v1535 = vmul.f32 %v1527, %v1292
        %v1536 = vadd.f32 %v1534, %v1535
        %1538 = vset.pattern.permute.xlu0 0
        %1539 = vperm.xlu0 %1538, %v1296
        %v1540 = vpop.permute.xlu0 %1539
        %v1542 = vmul.f32 %v1540, %v1536
        %v1543 = vsub.f32 1.0, %v1296
        %1545 = vset.pattern.permute.xlu0 0
        %1546 = vperm.xlu0 %1545, %v1543
        %v1547 = vpop.permute.xlu0 %1546
        %v1549 = vmul.f32 %v1547, %v1292
        %v1550 = vadd.f32 %v1542, %v1549
        %s1551 = scalar_lea.vmem [#allocation2], 8
        %1552 = vst.msk [vmem:[%s1551] sm:$0xff] %vm633, %v1542
        %vm1553 = vcmp.gt.s32.totalorder %v1019, 2
        %v1554 = vsel %vm1553, 1, 0
        %v1555 = vcvt.s32.f32 %v1554
        %v1557 = vsel %vm633, %v1550, 0
        %1559 = vmatprep.subr.mxu0 0.0
        %1560 = vmatpush1.msra.mxu0 0.0
        %1561 = vmatprep.subr.mxu0 0.0
        %1562 = vmatpush1.msra.mxu0 0.0
        %1563 = vmatprep.subr.mxu0 0.0
        %1564 = vmatpush1.msra.mxu0 0.0
        %1565 = vmatprep.subr.mxu0 0.0
        %1566 = vmatpush1.msra.mxu0 0.0
        %1567 = vmatprep.subr.mxu0 0.0
        %1568 = vmatpush1.msra.mxu0 0.0
        %1569 = vmatprep.subr.mxu0 0.0
        %1570 = vmatpush1.msra.mxu0 0.0
        %1571 = vmatprep.subr.mxu0 0.0
        %1572 = vmatpush1.msra.mxu0 0.0
        %1573 = vmatprep.subr.mxu0 0.0
        %1574 = vmatpush1.msra.mxu0 0.0
        %1575 = vmatprep.subr.mxu0 0.0
        %1576 = vmatpush1.msra.mxu0 0.0
        %1577 = vmatprep.subr.mxu0 0.0
        %1578 = vmatpush1.msra.mxu0 0.0
        %1579 = vmatprep.subr.mxu0 0.0
        %1580 = vmatpush1.msra.mxu0 0.0
        %1581 = vmatprep.subr.mxu0 0.0
        %1582 = vmatpush1.msra.mxu0 0.0
        %1583 = vmatprep.subr.mxu0 0.0
        %1584 = vmatpush1.msra.mxu0 %v1023
        %1585 = vmatprep.subr.mxu0 0.0
        %1586 = vmatpush1.msra.mxu0 %v1022
        %1587 = vmatprep.subr.mxu0 0.0
        %1588 = vmatpush1.msra.mxu0 %v1021
        %1589 = vmatprep.subr.mxu0 0.0
        %1590 = vmatpush1.msra.mxu0 %v1020
        %1591 = vmatprep.subr.mxu0 0.0
        %1592 = vmatpush2.msra.mxu0 0.0
        %1593 = vmatprep.subr.mxu0 0.0
        %1594 = vmatpush2.msra.mxu0 0.0
        %1595 = vmatprep.subr.mxu0 0.0
        %1596 = vmatpush2.msra.mxu0 0.0
        %1597 = vmatprep.subr.mxu0 0.0
        %1598 = vmatpush2.msra.mxu0 0.0
        %1599 = vmatprep.subr.mxu0 0.0
        %1600 = vmatpush2.msra.mxu0 0.0
        %1601 = vmatprep.subr.mxu0 0.0
        %1602 = vmatpush2.msra.mxu0 0.0
        %1603 = vmatprep.subr.mxu0 0.0
        %1604 = vmatpush2.msra.mxu0 0.0
        %1605 = vmatprep.subr.mxu0 0.0
        %1606 = vmatpush2.msra.mxu0 0.0
        %1607 = vmatprep.subr.mxu0 0.0
        %1608 = vmatpush2.msra.mxu0 0.0
        %1609 = vmatprep.subr.mxu0 0.0
        %1610 = vmatpush2.msra.mxu0 0.0
        %1611 = vmatprep.subr.mxu0 0.0
        %1612 = vmatpush2.msra.mxu0 0.0
        %1613 = vmatprep.subr.mxu0 0.0
        %1614 = vmatpush2.msra.mxu0 0.0
        %1615 = vmatprep.subr.mxu0 0.0
        %1616 = vmatpush2.msra.mxu0 0.0
        %1617 = vmatprep.subr.mxu0 0.0
        %1618 = vmatpush2.msra.mxu0 0.0
        %1619 = vmatprep.subr.mxu0 0.0
        %1620 = vmatpush2.msra.mxu0 0.0
        %1621 = vmatprep.subr.mxu0 0.0
        %1622 = vmatpush2.msra.mxu0 0.0
        %1623 = vmatprep.mubr.f32.mxu0 0.0
        %1624 = vmatmul.mubr.f32.gmra.mxu0 %v1557
        %v1625 = vpop.f32.mrf.mxu0
        %v1626 = vadd.f32 0.0, %v1625
        %v1627 = vpop.f32.mrf.mxu0
        %1628 = vdwg.mxu0
        %1629 = vmatprep.subr.mxu0 0.0
        %1630 = vmatpush1.msra.mxu0 0.0
        %1631 = vmatprep.subr.mxu0 0.0
        %1632 = vmatpush1.msra.mxu0 0.0
        %1633 = vmatprep.subr.mxu0 0.0
        %1634 = vmatpush1.msra.mxu0 0.0
        %1635 = vmatprep.subr.mxu0 0.0
        %1636 = vmatpush1.msra.mxu0 0.0
        %1637 = vmatprep.subr.mxu0 0.0
        %1638 = vmatpush1.msra.mxu0 0.0
        %1639 = vmatprep.subr.mxu0 0.0
        %1640 = vmatpush1.msra.mxu0 0.0
        %1641 = vmatprep.subr.mxu0 0.0
        %1642 = vmatpush1.msra.mxu0 0.0
        %1643 = vmatprep.subr.mxu0 0.0
        %1644 = vmatpush1.msra.mxu0 0.0
        %1645 = vmatprep.subr.mxu0 0.0
        %1646 = vmatpush1.msra.mxu0 0.0
        %1647 = vmatprep.subr.mxu0 0.0
        %1648 = vmatpush1.msra.mxu0 0.0
        %1649 = vmatprep.subr.mxu0 0.0
        %1650 = vmatpush1.msra.mxu0 0.0
        %1651 = vmatprep.subr.mxu0 0.0
        %1652 = vmatpush1.msra.mxu0 0.0
        %1653 = vmatprep.subr.mxu0 0.0
        %1654 = vmatpush1.msra.mxu0 %v1027
        %1655 = vmatprep.subr.mxu0 0.0
        %1656 = vmatpush1.msra.mxu0 %v1026
        %1657 = vmatprep.subr.mxu0 0.0
        %1658 = vmatpush1.msra.mxu0 %v1025
        %1659 = vmatprep.subr.mxu0 0.0
        %1660 = vmatpush1.msra.mxu0 %v1024
        %1661 = vmatprep.subr.mxu0 0.0
        %1662 = vmatpush2.msra.mxu0 0.0
        %1663 = vmatprep.subr.mxu0 0.0
        %1664 = vmatpush2.msra.mxu0 0.0
        %1665 = vmatprep.subr.mxu0 0.0
        %1666 = vmatpush2.msra.mxu0 0.0
        %1667 = vmatprep.subr.mxu0 0.0
        %1668 = vmatpush2.msra.mxu0 0.0
        %1669 = vmatprep.subr.mxu0 0.0
        %1670 = vmatpush2.msra.mxu0 0.0
        %1671 = vmatprep.subr.mxu0 0.0
        %1672 = vmatpush2.msra.mxu0 0.0
        %1673 = vmatprep.subr.mxu0 0.0
        %1674 = vmatpush2.msra.mxu0 0.0
        %1675 = vmatprep.subr.mxu0 0.0
        %1676 = vmatpush2.msra.mxu0 0.0
        %1677 = vmatprep.subr.mxu0 0.0
        %1678 = vmatpush2.msra.mxu0 0.0
        %1679 = vmatprep.subr.mxu0 0.0
        %1680 = vmatpush2.msra.mxu0 0.0
        %1681 = vmatprep.subr.mxu0 0.0
        %1682 = vmatpush2.msra.mxu0 0.0
        %1683 = vmatprep.subr.mxu0 0.0
        %1684 = vmatpush2.msra.mxu0 0.0
        %1685 = vmatprep.subr.mxu0 0.0
        %1686 = vmatpush2.msra.mxu0 0.0
        %1687 = vmatprep.subr.mxu0 0.0
        %1688 = vmatpush2.msra.mxu0 0.0
        %1689 = vmatprep.subr.mxu0 0.0
        %1690 = vmatpush2.msra.mxu0 0.0
        %1691 = vmatprep.subr.mxu0 0.0
        %1692 = vmatpush2.msra.mxu0 0.0
        %1693 = vmatprep.mubr.f32.mxu0 0.0
        %1694 = vmatmul.mubr.f32.gmra.mxu0 %v1557
        %v1695 = vpop.f32.mrf.mxu0
        %v1696 = vadd.f32 0.0, %v1695
        %v1697 = vpop.f32.mrf.mxu0
        %1698 = vdwg.mxu0
        %1699 = vmatprep.subr.mxu0 0.0
        %1700 = vmatpush1.msra.mxu0 0.0
        %1701 = vmatprep.subr.mxu0 0.0
        %1702 = vmatpush1.msra.mxu0 0.0
        %1703 = vmatprep.subr.mxu0 0.0
        %1704 = vmatpush1.msra.mxu0 0.0
        %1705 = vmatprep.subr.mxu0 0.0
        %1706 = vmatpush1.msra.mxu0 0.0
        %1707 = vmatprep.subr.mxu0 0.0
        %1708 = vmatpush1.msra.mxu0 0.0
        %1709 = vmatprep.subr.mxu0 0.0
        %1710 = vmatpush1.msra.mxu0 0.0
        %1711 = vmatprep.subr.mxu0 0.0
        %1712 = vmatpush1.msra.mxu0 0.0
        %1713 = vmatprep.subr.mxu0 0.0
        %1714 = vmatpush1.msra.mxu0 0.0
        %1715 = vmatprep.subr.mxu0 0.0
        %1716 = vmatpush1.msra.mxu0 0.0
        %1717 = vmatprep.subr.mxu0 0.0
        %1718 = vmatpush1.msra.mxu0 0.0
        %1719 = vmatprep.subr.mxu0 0.0
        %1720 = vmatpush1.msra.mxu0 0.0
        %1721 = vmatprep.subr.mxu0 0.0
        %1722 = vmatpush1.msra.mxu0 0.0
        %1723 = vmatprep.subr.mxu0 0.0
        %1724 = vmatpush1.msra.mxu0 %v1031
        %1725 = vmatprep.subr.mxu0 0.0
        %1726 = vmatpush1.msra.mxu0 %v1030
        %1727 = vmatprep.subr.mxu0 0.0
        %1728 = vmatpush1.msra.mxu0 %v1029
        %1729 = vmatprep.subr.mxu0 0.0
        %1730 = vmatpush1.msra.mxu0 %v1028
        %1731 = vmatprep.subr.mxu0 0.0
        %1732 = vmatpush2.msra.mxu0 0.0
        %1733 = vmatprep.subr.mxu0 0.0
        %1734 = vmatpush2.msra.mxu0 0.0
        %1735 = vmatprep.subr.mxu0 0.0
        %1736 = vmatpush2.msra.mxu0 0.0
        %1737 = vmatprep.subr.mxu0 0.0
        %1738 = vmatpush2.msra.mxu0 0.0
        %1739 = vmatprep.subr.mxu0 0.0
        %1740 = vmatpush2.msra.mxu0 0.0
        %1741 = vmatprep.subr.mxu0 0.0
        %1742 = vmatpush2.msra.mxu0 0.0
        %1743 = vmatprep.subr.mxu0 0.0
        %1744 = vmatpush2.msra.mxu0 0.0
        %1745 = vmatprep.subr.mxu0 0.0
        %1746 = vmatpush2.msra.mxu0 0.0
        %1747 = vmatprep.subr.mxu0 0.0
        %1748 = vmatpush2.msra.mxu0 0.0
        %1749 = vmatprep.subr.mxu0 0.0
        %1750 = vmatpush2.msra.mxu0 0.0
        %1751 = vmatprep.subr.mxu0 0.0
        %1752 = vmatpush2.msra.mxu0 0.0
        %1753 = vmatprep.subr.mxu0 0.0
        %1754 = vmatpush2.msra.mxu0 0.0
        %1755 = vmatprep.subr.mxu0 0.0
        %1756 = vmatpush2.msra.mxu0 0.0
        %1757 = vmatprep.subr.mxu0 0.0
        %1758 = vmatpush2.msra.mxu0 0.0
        %1759 = vmatprep.subr.mxu0 0.0
        %1760 = vmatpush2.msra.mxu0 0.0
        %1761 = vmatprep.subr.mxu0 0.0
        %1762 = vmatpush2.msra.mxu0 0.0
        %1763 = vmatprep.mubr.f32.mxu0 0.0
        %1764 = vmatmul.mubr.f32.gmra.mxu0 %v1557
        %v1765 = vpop.f32.mrf.mxu0
        %v1766 = vadd.f32 %v1037, %v1765
        %v1767 = vpop.f32.mrf.mxu0
        %1768 = vdwg.mxu0
        %s1769 = scalar_lea.vmem [#allocation3], 16
        %v1770 = vld [vmem:[%s1769] sm:$0xff]
        %v1771 = vadd.f32 %v1770, %v1626
        %v1772 = vxor.u32 %v1771, 2147483648
        %v1773 = vmul.f32 %v1772, 1.442695
        %v1774 = vpow.pop %v1773
        %v1775 = vadd.f32 %v1774, 1.0
        %v1776 = vrcp.pop %v1775
        %v1777 = vmul.f32 1.0, %v1776
        %s1778 = scalar_lea.vmem [#allocation4], 16
        %v1779 = vld [vmem:[%s1778] sm:$0xff]
        %v1780 = vadd.f32 %v1779, %v1696
        %v1781 = vxor.u32 %v1780, 2147483648
        %v1782 = vmul.f32 %v1781, 1.442695
        %v1783 = vpow.pop %v1782
        %v1784 = vadd.f32 %v1783, 1.0
        %v1785 = vrcp.pop %v1784
        %v1786 = vmul.f32 1.0, %v1785
        %s1787 = scalar_lea.vmem [#allocation5], 16
        %v1788 = vld [vmem:[%s1787] sm:$0xff]
        %v1789 = vmul.f32 %v1777, %v1766
        %v1790 = vadd.f32 %v1788, %v1789
        %v1791 = vtanh.pop %v1790
        %v1792 = vsub.f32 1.0, %v1786
        %v1793 = vmul.f32 %v1792, %v1791
        %v1794 = vmul.f32 %v1786, %v1550
        %v1795 = vadd.f32 %v1793, %v1794
        %1797 = vset.pattern.permute.xlu0 0
        %1798 = vperm.xlu0 %1797, %v1555
        %v1799 = vpop.permute.xlu0 %1798
        %v1801 = vmul.f32 %v1799, %v1795
        %v1802 = vsub.f32 1.0, %v1555
        %1804 = vset.pattern.permute.xlu0 0
        %1805 = vperm.xlu0 %1804, %v1802
        %v1806 = vpop.permute.xlu0 %1805
        %v1808 = vmul.f32 %v1806, %v1550
        %v1809 = vadd.f32 %v1801, %v1808
        %s1810 = scalar_lea.vmem [#allocation2], 16
        %1811 = vst.msk [vmem:[%s1810] sm:$0xff] %vm633, %v1801
        %vm1812 = vcmp.gt.s32.totalorder %v1019, 3
        %v1813 = vsel %vm1812, 1, 0
        %v1814 = vcvt.s32.f32 %v1813
        %v1816 = vsel %vm633, %v1809, 0
        %1818 = vmatprep.subr.mxu0 0.0
        %1819 = vmatpush1.msra.mxu0 0.0
        %1820 = vmatprep.subr.mxu0 0.0
        %1821 = vmatpush1.msra.mxu0 0.0
        %1822 = vmatprep.subr.mxu0 0.0
        %1823 = vmatpush1.msra.mxu0 0.0
        %1824 = vmatprep.subr.mxu0 0.0
        %1825 = vmatpush1.msra.mxu0 0.0
        %1826 = vmatprep.subr.mxu0 0.0
        %1827 = vmatpush1.msra.mxu0 0.0
        %1828 = vmatprep.subr.mxu0 0.0
        %1829 = vmatpush1.msra.mxu0 0.0
        %1830 = vmatprep.subr.mxu0 0.0
        %1831 = vmatpush1.msra.mxu0 0.0
        %1832 = vmatprep.subr.mxu0 0.0
        %1833 = vmatpush1.msra.mxu0 0.0
        %1834 = vmatprep.subr.mxu0 0.0
        %1835 = vmatpush1.msra.mxu0 0.0
        %1836 = vmatprep.subr.mxu0 0.0
        %1837 = vmatpush1.msra.mxu0 0.0
        %1838 = vmatprep.subr.mxu0 0.0
        %1839 = vmatpush1.msra.mxu0 0.0
        %1840 = vmatprep.subr.mxu0 0.0
        %1841 = vmatpush1.msra.mxu0 0.0
        %1842 = vmatprep.subr.mxu0 0.0
        %1843 = vmatpush1.msra.mxu0 %v1023
        %1844 = vmatprep.subr.mxu0 0.0
        %1845 = vmatpush1.msra.mxu0 %v1022
        %1846 = vmatprep.subr.mxu0 0.0
        %1847 = vmatpush1.msra.mxu0 %v1021
        %1848 = vmatprep.subr.mxu0 0.0
        %1849 = vmatpush1.msra.mxu0 %v1020
        %1850 = vmatprep.subr.mxu0 0.0
        %1851 = vmatpush2.msra.mxu0 0.0
        %1852 = vmatprep.subr.mxu0 0.0
        %1853 = vmatpush2.msra.mxu0 0.0
        %1854 = vmatprep.subr.mxu0 0.0
        %1855 = vmatpush2.msra.mxu0 0.0
        %1856 = vmatprep.subr.mxu0 0.0
        %1857 = vmatpush2.msra.mxu0 0.0
        %1858 = vmatprep.subr.mxu0 0.0
        %1859 = vmatpush2.msra.mxu0 0.0
        %1860 = vmatprep.subr.mxu0 0.0
        %1861 = vmatpush2.msra.mxu0 0.0
        %1862 = vmatprep.subr.mxu0 0.0
        %1863 = vmatpush2.msra.mxu0 0.0
        %1864 = vmatprep.subr.mxu0 0.0
        %1865 = vmatpush2.msra.mxu0 0.0
        %1866 = vmatprep.subr.mxu0 0.0
        %1867 = vmatpush2.msra.mxu0 0.0
        %1868 = vmatprep.subr.mxu0 0.0
        %1869 = vmatpush2.msra.mxu0 0.0
        %1870 = vmatprep.subr.mxu0 0.0
        %1871 = vmatpush2.msra.mxu0 0.0
        %1872 = vmatprep.subr.mxu0 0.0
        %1873 = vmatpush2.msra.mxu0 0.0
        %1874 = vmatprep.subr.mxu0 0.0
        %1875 = vmatpush2.msra.mxu0 0.0
        %1876 = vmatprep.subr.mxu0 0.0
        %1877 = vmatpush2.msra.mxu0 0.0
        %1878 = vmatprep.subr.mxu0 0.0
        %1879 = vmatpush2.msra.mxu0 0.0
        %1880 = vmatprep.subr.mxu0 0.0
        %1881 = vmatpush2.msra.mxu0 0.0
        %1882 = vmatprep.mubr.f32.mxu0 0.0
        %1883 = vmatmul.mubr.f32.gmra.mxu0 %v1816
        %v1884 = vpop.f32.mrf.mxu0
        %v1885 = vadd.f32 0.0, %v1884
        %v1886 = vpop.f32.mrf.mxu0
        %1887 = vdwg.mxu0
        %1888 = vmatprep.subr.mxu0 0.0
        %1889 = vmatpush1.msra.mxu0 0.0
        %1890 = vmatprep.subr.mxu0 0.0
        %1891 = vmatpush1.msra.mxu0 0.0
        %1892 = vmatprep.subr.mxu0 0.0
        %1893 = vmatpush1.msra.mxu0 0.0
        %1894 = vmatprep.subr.mxu0 0.0
        %1895 = vmatpush1.msra.mxu0 0.0
        %1896 = vmatprep.subr.mxu0 0.0
        %1897 = vmatpush1.msra.mxu0 0.0
        %1898 = vmatprep.subr.mxu0 0.0
        %1899 = vmatpush1.msra.mxu0 0.0
        %1900 = vmatprep.subr.mxu0 0.0
        %1901 = vmatpush1.msra.mxu0 0.0
        %1902 = vmatprep.subr.mxu0 0.0
        %1903 = vmatpush1.msra.mxu0 0.0
        %1904 = vmatprep.subr.mxu0 0.0
        %1905 = vmatpush1.msra.mxu0 0.0
        %1906 = vmatprep.subr.mxu0 0.0
        %1907 = vmatpush1.msra.mxu0 0.0
        %1908 = vmatprep.subr.mxu0 0.0
        %1909 = vmatpush1.msra.mxu0 0.0
        %1910 = vmatprep.subr.mxu0 0.0
        %1911 = vmatpush1.msra.mxu0 0.0
        %1912 = vmatprep.subr.mxu0 0.0
        %1913 = vmatpush1.msra.mxu0 %v1027
        %1914 = vmatprep.subr.mxu0 0.0
        %1915 = vmatpush1.msra.mxu0 %v1026
        %1916 = vmatprep.subr.mxu0 0.0
        %1917 = vmatpush1.msra.mxu0 %v1025
        %1918 = vmatprep.subr.mxu0 0.0
        %1919 = vmatpush1.msra.mxu0 %v1024
        %1920 = vmatprep.subr.mxu0 0.0
        %1921 = vmatpush2.msra.mxu0 0.0
        %1922 = vmatprep.subr.mxu0 0.0
        %1923 = vmatpush2.msra.mxu0 0.0
        %1924 = vmatprep.subr.mxu0 0.0
        %1925 = vmatpush2.msra.mxu0 0.0
        %1926 = vmatprep.subr.mxu0 0.0
        %1927 = vmatpush2.msra.mxu0 0.0
        %1928 = vmatprep.subr.mxu0 0.0
        %1929 = vmatpush2.msra.mxu0 0.0
        %1930 = vmatprep.subr.mxu0 0.0
        %1931 = vmatpush2.msra.mxu0 0.0
        %1932 = vmatprep.subr.mxu0 0.0
        %1933 = vmatpush2.msra.mxu0 0.0
        %1934 = vmatprep.subr.mxu0 0.0
        %1935 = vmatpush2.msra.mxu0 0.0
        %1936 = vmatprep.subr.mxu0 0.0
        %1937 = vmatpush2.msra.mxu0 0.0
        %1938 = vmatprep.subr.mxu0 0.0
        %1939 = vmatpush2.msra.mxu0 0.0
        %1940 = vmatprep.subr.mxu0 0.0
        %1941 = vmatpush2.msra.mxu0 0.0
        %1942 = vmatprep.subr.mxu0 0.0
        %1943 = vmatpush2.msra.mxu0 0.0
        %1944 = vmatprep.subr.mxu0 0.0
        %1945 = vmatpush2.msra.mxu0 0.0
        %1946 = vmatprep.subr.mxu0 0.0
        %1947 = vmatpush2.msra.mxu0 0.0
        %1948 = vmatprep.subr.mxu0 0.0
        %1949 = vmatpush2.msra.mxu0 0.0
        %1950 = vmatprep.subr.mxu0 0.0
        %1951 = vmatpush2.msra.mxu0 0.0
        %1952 = vmatprep.mubr.f32.mxu0 0.0
        %1953 = vmatmul.mubr.f32.gmra.mxu0 %v1816
        %v1954 = vpop.f32.mrf.mxu0
        %v1955 = vadd.f32 0.0, %v1954
        %v1956 = vpop.f32.mrf.mxu0
        %1957 = vdwg.mxu0
        %1958 = vmatprep.subr.mxu0 0.0
        %1959 = vmatpush1.msra.mxu0 0.0
        %1960 = vmatprep.subr.mxu0 0.0
        %1961 = vmatpush1.msra.mxu0 0.0
        %1962 = vmatprep.subr.mxu0 0.0
        %1963 = vmatpush1.msra.mxu0 0.0
        %1964 = vmatprep.subr.mxu0 0.0
        %1965 = vmatpush1.msra.mxu0 0.0
        %1966 = vmatprep.subr.mxu0 0.0
        %1967 = vmatpush1.msra.mxu0 0.0
        %1968 = vmatprep.subr.mxu0 0.0
        %1969 = vmatpush1.msra.mxu0 0.0
        %1970 = vmatprep.subr.mxu0 0.0
        %1971 = vmatpush1.msra.mxu0 0.0
        %1972 = vmatprep.subr.mxu0 0.0
        %1973 = vmatpush1.msra.mxu0 0.0
        %1974 = vmatprep.subr.mxu0 0.0
        %1975 = vmatpush1.msra.mxu0 0.0
        %1976 = vmatprep.subr.mxu0 0.0
        %1977 = vmatpush1.msra.mxu0 0.0
        %1978 = vmatprep.subr.mxu0 0.0
        %1979 = vmatpush1.msra.mxu0 0.0
        %1980 = vmatprep.subr.mxu0 0.0
        %1981 = vmatpush1.msra.mxu0 0.0
        %1982 = vmatprep.subr.mxu0 0.0
        %1983 = vmatpush1.msra.mxu0 %v1031
        %1984 = vmatprep.subr.mxu0 0.0
        %1985 = vmatpush1.msra.mxu0 %v1030
        %1986 = vmatprep.subr.mxu0 0.0
        %1987 = vmatpush1.msra.mxu0 %v1029
        %1988 = vmatprep.subr.mxu0 0.0
        %1989 = vmatpush1.msra.mxu0 %v1028
        %1990 = vmatprep.subr.mxu0 0.0
        %1991 = vmatpush2.msra.mxu0 0.0
        %1992 = vmatprep.subr.mxu0 0.0
        %1993 = vmatpush2.msra.mxu0 0.0
        %1994 = vmatprep.subr.mxu0 0.0
        %1995 = vmatpush2.msra.mxu0 0.0
        %1996 = vmatprep.subr.mxu0 0.0
        %1997 = vmatpush2.msra.mxu0 0.0
        %1998 = vmatprep.subr.mxu0 0.0
        %1999 = vmatpush2.msra.mxu0 0.0
        %2000 = vmatprep.subr.mxu0 0.0
        %2001 = vmatpush2.msra.mxu0 0.0
        %2002 = vmatprep.subr.mxu0 0.0
        %2003 = vmatpush2.msra.mxu0 0.0
        %2004 = vmatprep.subr.mxu0 0.0
        %2005 = vmatpush2.msra.mxu0 0.0
        %2006 = vmatprep.subr.mxu0 0.0
        %2007 = vmatpush2.msra.mxu0 0.0
        %2008 = vmatprep.subr.mxu0 0.0
        %2009 = vmatpush2.msra.mxu0 0.0
        %2010 = vmatprep.subr.mxu0 0.0
        %2011 = vmatpush2.msra.mxu0 0.0
        %2012 = vmatprep.subr.mxu0 0.0
        %2013 = vmatpush2.msra.mxu0 0.0
        %2014 = vmatprep.subr.mxu0 0.0
        %2015 = vmatpush2.msra.mxu0 0.0
        %2016 = vmatprep.subr.mxu0 0.0
        %2017 = vmatpush2.msra.mxu0 0.0
        %2018 = vmatprep.subr.mxu0 0.0
        %2019 = vmatpush2.msra.mxu0 0.0
        %2020 = vmatprep.subr.mxu0 0.0
        %2021 = vmatpush2.msra.mxu0 0.0
        %2022 = vmatprep.mubr.f32.mxu0 0.0
        %2023 = vmatmul.mubr.f32.gmra.mxu0 %v1816
        %v2024 = vpop.f32.mrf.mxu0
        %v2025 = vadd.f32 %v1037, %v2024
        %v2026 = vpop.f32.mrf.mxu0
        %2027 = vdwg.mxu0
        %s2028 = scalar_lea.vmem [#allocation3], 24
        %v2029 = vld [vmem:[%s2028] sm:$0xff]
        %v2030 = vadd.f32 %v2029, %v1885
        %v2031 = vxor.u32 %v2030, 2147483648
        %v2032 = vmul.f32 %v2031, 1.442695
        %v2033 = vpow.pop %v2032
        %v2034 = vadd.f32 %v2033, 1.0
        %v2035 = vrcp.pop %v2034
        %v2036 = vmul.f32 1.0, %v2035
        %s2037 = scalar_lea.vmem [#allocation4], 24
        %v2038 = vld [vmem:[%s2037] sm:$0xff]
        %v2039 = vadd.f32 %v2038, %v1955
        %v2040 = vxor.u32 %v2039, 2147483648
        %v2041 = vmul.f32 %v2040, 1.442695
        %v2042 = vpow.pop %v2041
        %v2043 = vadd.f32 %v2042, 1.0
        %v2044 = vrcp.pop %v2043
        %v2045 = vmul.f32 1.0, %v2044
        %s2046 = scalar_lea.vmem [#allocation5], 24
        %v2047 = vld [vmem:[%s2046] sm:$0xff]
        %v2048 = vmul.f32 %v2036, %v2025
        %v2049 = vadd.f32 %v2047, %v2048
        %v2050 = vtanh.pop %v2049
        %v2051 = vsub.f32 1.0, %v2045
        %v2052 = vmul.f32 %v2051, %v2050
        %v2053 = vmul.f32 %v2045, %v1809
        %v2054 = vadd.f32 %v2052, %v2053
        %2056 = vset.pattern.permute.xlu0 0
        %2057 = vperm.xlu0 %2056, %v1814
        %v2058 = vpop.permute.xlu0 %2057
        %v2060 = vmul.f32 %v2058, %v2054
        %v2061 = vsub.f32 1.0, %v1814
        %2063 = vset.pattern.permute.xlu0 0
        %2064 = vperm.xlu0 %2063, %v2061
        %v2065 = vpop.permute.xlu0 %2064
        %v2067 = vmul.f32 %v2065, %v1809
        %v2068 = vadd.f32 %v2060, %v2067
        %s2069 = scalar_lea.vmem [#allocation2], 24
        %2070 = vst.msk [vmem:[%s2069] sm:$0xff] %vm633, %v2060
        %vm2071 = vcmp.gt.s32.totalorder %v1019, 4
        %v2072 = vsel %vm2071, 1, 0
        %v2073 = vcvt.s32.f32 %v2072
        %v2075 = vsel %vm633, %v2068, 0
        %2077 = vmatprep.subr.mxu0 0.0
        %2078 = vmatpush1.msra.mxu0 0.0
        %2079 = vmatprep.subr.mxu0 0.0
        %2080 = vmatpush1.msra.mxu0 0.0
        %2081 = vmatprep.subr.mxu0 0.0
        %2082 = vmatpush1.msra.mxu0 0.0
        %2083 = vmatprep.subr.mxu0 0.0
        %2084 = vmatpush1.msra.mxu0 0.0
        %2085 = vmatprep.subr.mxu0 0.0
        %2086 = vmatpush1.msra.mxu0 0.0
        %2087 = vmatprep.subr.mxu0 0.0
        %2088 = vmatpush1.msra.mxu0 0.0
        %2089 = vmatprep.subr.mxu0 0.0
        %2090 = vmatpush1.msra.mxu0 0.0
        %2091 = vmatprep.subr.mxu0 0.0
        %2092 = vmatpush1.msra.mxu0 0.0
        %2093 = vmatprep.subr.mxu0 0.0
        %2094 = vmatpush1.msra.mxu0 0.0
        %2095 = vmatprep.subr.mxu0 0.0
        %2096 = vmatpush1.msra.mxu0 0.0
        %2097 = vmatprep.subr.mxu0 0.0
        %2098 = vmatpush1.msra.mxu0 0.0
        %2099 = vmatprep.subr.mxu0 0.0
        %2100 = vmatpush1.msra.mxu0 0.0
        %2101 = vmatprep.subr.mxu0 0.0
        %2102 = vmatpush1.msra.mxu0 %v1023
        %2103 = vmatprep.subr.mxu0 0.0
        %2104 = vmatpush1.msra.mxu0 %v1022
        %2105 = vmatprep.subr.mxu0 0.0
        %2106 = vmatpush1.msra.mxu0 %v1021
        %2107 = vmatprep.subr.mxu0 0.0
        %2108 = vmatpush1.msra.mxu0 %v1020
        %2109 = vmatprep.subr.mxu0 0.0
        %2110 = vmatpush2.msra.mxu0 0.0
        %2111 = vmatprep.subr.mxu0 0.0
        %2112 = vmatpush2.msra.mxu0 0.0
        %2113 = vmatprep.subr.mxu0 0.0
        %2114 = vmatpush2.msra.mxu0 0.0
        %2115 = vmatprep.subr.mxu0 0.0
        %2116 = vmatpush2.msra.mxu0 0.0
        %2117 = vmatprep.subr.mxu0 0.0
        %2118 = vmatpush2.msra.mxu0 0.0
        %2119 = vmatprep.subr.mxu0 0.0
        %2120 = vmatpush2.msra.mxu0 0.0
        %2121 = vmatprep.subr.mxu0 0.0
        %2122 = vmatpush2.msra.mxu0 0.0
        %2123 = vmatprep.subr.mxu0 0.0
        %2124 = vmatpush2.msra.mxu0 0.0
        %2125 = vmatprep.subr.mxu0 0.0
        %2126 = vmatpush2.msra.mxu0 0.0
        %2127 = vmatprep.subr.mxu0 0.0
        %2128 = vmatpush2.msra.mxu0 0.0
        %2129 = vmatprep.subr.mxu0 0.0
        %2130 = vmatpush2.msra.mxu0 0.0
        %2131 = vmatprep.subr.mxu0 0.0
        %2132 = vmatpush2.msra.mxu0 0.0
        %2133 = vmatprep.subr.mxu0 0.0
        %2134 = vmatpush2.msra.mxu0 0.0
        %2135 = vmatprep.subr.mxu0 0.0
        %2136 = vmatpush2.msra.mxu0 0.0
        %2137 = vmatprep.subr.mxu0 0.0
        %2138 = vmatpush2.msra.mxu0 0.0
        %2139 = vmatprep.subr.mxu0 0.0
        %2140 = vmatpush2.msra.mxu0 0.0
        %2141 = vmatprep.mubr.f32.mxu0 0.0
        %2142 = vmatmul.mubr.f32.gmra.mxu0 %v2075
        %v2143 = vpop.f32.mrf.mxu0
        %v2144 = vadd.f32 0.0, %v2143
        %v2145 = vpop.f32.mrf.mxu0
        %2146 = vdwg.mxu0
        %2147 = vmatprep.subr.mxu0 0.0
        %2148 = vmatpush1.msra.mxu0 0.0
        %2149 = vmatprep.subr.mxu0 0.0
        %2150 = vmatpush1.msra.mxu0 0.0
        %2151 = vmatprep.subr.mxu0 0.0
        %2152 = vmatpush1.msra.mxu0 0.0
        %2153 = vmatprep.subr.mxu0 0.0
        %2154 = vmatpush1.msra.mxu0 0.0
        %2155 = vmatprep.subr.mxu0 0.0
        %2156 = vmatpush1.msra.mxu0 0.0
        %2157 = vmatprep.subr.mxu0 0.0
        %2158 = vmatpush1.msra.mxu0 0.0
        %2159 = vmatprep.subr.mxu0 0.0
        %2160 = vmatpush1.msra.mxu0 0.0
        %2161 = vmatprep.subr.mxu0 0.0
        %2162 = vmatpush1.msra.mxu0 0.0
        %2163 = vmatprep.subr.mxu0 0.0
        %2164 = vmatpush1.msra.mxu0 0.0
        %2165 = vmatprep.subr.mxu0 0.0
        %2166 = vmatpush1.msra.mxu0 0.0
        %2167 = vmatprep.subr.mxu0 0.0
        %2168 = vmatpush1.msra.mxu0 0.0
        %2169 = vmatprep.subr.mxu0 0.0
        %2170 = vmatpush1.msra.mxu0 0.0
        %2171 = vmatprep.subr.mxu0 0.0
        %2172 = vmatpush1.msra.mxu0 %v1027
        %2173 = vmatprep.subr.mxu0 0.0
        %2174 = vmatpush1.msra.mxu0 %v1026
        %2175 = vmatprep.subr.mxu0 0.0
        %2176 = vmatpush1.msra.mxu0 %v1025
        %2177 = vmatprep.subr.mxu0 0.0
        %2178 = vmatpush1.msra.mxu0 %v1024
        %2179 = vmatprep.subr.mxu0 0.0
        %2180 = vmatpush2.msra.mxu0 0.0
        %2181 = vmatprep.subr.mxu0 0.0
        %2182 = vmatpush2.msra.mxu0 0.0
        %2183 = vmatprep.subr.mxu0 0.0
        %2184 = vmatpush2.msra.mxu0 0.0
        %2185 = vmatprep.subr.mxu0 0.0
        %2186 = vmatpush2.msra.mxu0 0.0
        %2187 = vmatprep.subr.mxu0 0.0
        %2188 = vmatpush2.msra.mxu0 0.0
        %2189 = vmatprep.subr.mxu0 0.0
        %2190 = vmatpush2.msra.mxu0 0.0
        %2191 = vmatprep.subr.mxu0 0.0
        %2192 = vmatpush2.msra.mxu0 0.0
        %2193 = vmatprep.subr.mxu0 0.0
        %2194 = vmatpush2.msra.mxu0 0.0
        %2195 = vmatprep.subr.mxu0 0.0
        %2196 = vmatpush2.msra.mxu0 0.0
        %2197 = vmatprep.subr.mxu0 0.0
        %2198 = vmatpush2.msra.mxu0 0.0
        %2199 = vmatprep.subr.mxu0 0.0
        %2200 = vmatpush2.msra.mxu0 0.0
        %2201 = vmatprep.subr.mxu0 0.0
        %2202 = vmatpush2.msra.mxu0 0.0
        %2203 = vmatprep.subr.mxu0 0.0
        %2204 = vmatpush2.msra.mxu0 0.0
        %2205 = vmatprep.subr.mxu0 0.0
        %2206 = vmatpush2.msra.mxu0 0.0
        %2207 = vmatprep.subr.mxu0 0.0
        %2208 = vmatpush2.msra.mxu0 0.0
        %2209 = vmatprep.subr.mxu0 0.0
        %2210 = vmatpush2.msra.mxu0 0.0
        %2211 = vmatprep.mubr.f32.mxu0 0.0
        %2212 = vmatmul.mubr.f32.gmra.mxu0 %v2075
        %v2213 = vpop.f32.mrf.mxu0
        %v2214 = vadd.f32 0.0, %v2213
        %v2215 = vpop.f32.mrf.mxu0
        %2216 = vdwg.mxu0
        %2217 = vmatprep.subr.mxu0 0.0
        %2218 = vmatpush1.msra.mxu0 0.0
        %2219 = vmatprep.subr.mxu0 0.0
        %2220 = vmatpush1.msra.mxu0 0.0
        %2221 = vmatprep.subr.mxu0 0.0
        %2222 = vmatpush1.msra.mxu0 0.0
        %2223 = vmatprep.subr.mxu0 0.0
        %2224 = vmatpush1.msra.mxu0 0.0
        %2225 = vmatprep.subr.mxu0 0.0
        %2226 = vmatpush1.msra.mxu0 0.0
        %2227 = vmatprep.subr.mxu0 0.0
        %2228 = vmatpush1.msra.mxu0 0.0
        %2229 = vmatprep.subr.mxu0 0.0
        %2230 = vmatpush1.msra.mxu0 0.0
        %2231 = vmatprep.subr.mxu0 0.0
        %2232 = vmatpush1.msra.mxu0 0.0
        %2233 = vmatprep.subr.mxu0 0.0
        %2234 = vmatpush1.msra.mxu0 0.0
        %2235 = vmatprep.subr.mxu0 0.0
        %2236 = vmatpush1.msra.mxu0 0.0
        %2237 = vmatprep.subr.mxu0 0.0
        %2238 = vmatpush1.msra.mxu0 0.0
        %2239 = vmatprep.subr.mxu0 0.0
        %2240 = vmatpush1.msra.mxu0 0.0
        %2241 = vmatprep.subr.mxu0 0.0
        %2242 = vmatpush1.msra.mxu0 %v1031
        %2243 = vmatprep.subr.mxu0 0.0
        %2244 = vmatpush1.msra.mxu0 %v1030
        %2245 = vmatprep.subr.mxu0 0.0
        %2246 = vmatpush1.msra.mxu0 %v1029
        %2247 = vmatprep.subr.mxu0 0.0
        %2248 = vmatpush1.msra.mxu0 %v1028
        %2249 = vmatprep.subr.mxu0 0.0
        %2250 = vmatpush2.msra.mxu0 0.0
        %2251 = vmatprep.subr.mxu0 0.0
        %2252 = vmatpush2.msra.mxu0 0.0
        %2253 = vmatprep.subr.mxu0 0.0
        %2254 = vmatpush2.msra.mxu0 0.0
        %2255 = vmatprep.subr.mxu0 0.0
        %2256 = vmatpush2.msra.mxu0 0.0
        %2257 = vmatprep.subr.mxu0 0.0
        %2258 = vmatpush2.msra.mxu0 0.0
        %2259 = vmatprep.subr.mxu0 0.0
        %2260 = vmatpush2.msra.mxu0 0.0
        %2261 = vmatprep.subr.mxu0 0.0
        %2262 = vmatpush2.msra.mxu0 0.0
        %2263 = vmatprep.subr.mxu0 0.0
        %2264 = vmatpush2.msra.mxu0 0.0
        %2265 = vmatprep.subr.mxu0 0.0
        %2266 = vmatpush2.msra.mxu0 0.0
        %2267 = vmatprep.subr.mxu0 0.0
        %2268 = vmatpush2.msra.mxu0 0.0
        %2269 = vmatprep.subr.mxu0 0.0
        %2270 = vmatpush2.msra.mxu0 0.0
        %2271 = vmatprep.subr.mxu0 0.0
        %2272 = vmatpush2.msra.mxu0 0.0
        %2273 = vmatprep.subr.mxu0 0.0
        %2274 = vmatpush2.msra.mxu0 0.0
        %2275 = vmatprep.subr.mxu0 0.0
        %2276 = vmatpush2.msra.mxu0 0.0
        %2277 = vmatprep.subr.mxu0 0.0
        %2278 = vmatpush2.msra.mxu0 0.0
        %2279 = vmatprep.subr.mxu0 0.0
        %2280 = vmatpush2.msra.mxu0 0.0
        %2281 = vmatprep.mubr.f32.mxu0 0.0
        %2282 = vmatmul.mubr.f32.gmra.mxu0 %v2075
        %v2283 = vpop.f32.mrf.mxu0
        %v2284 = vadd.f32 %v1037, %v2283
        %v2285 = vpop.f32.mrf.mxu0
        %2286 = vdwg.mxu0
        %s2287 = scalar_lea.vmem [#allocation3], 32
        %v2288 = vld [vmem:[%s2287] sm:$0xff]
        %v2289 = vadd.f32 %v2288, %v2144
        %v2290 = vxor.u32 %v2289, 2147483648
        %v2291 = vmul.f32 %v2290, 1.442695
        %v2292 = vpow.pop %v2291
        %v2293 = vadd.f32 %v2292, 1.0
        %v2294 = vrcp.pop %v2293
        %v2295 = vmul.f32 1.0, %v2294
        %s2296 = scalar_lea.vmem [#allocation4], 32
        %v2297 = vld [vmem:[%s2296] sm:$0xff]
        %v2298 = vadd.f32 %v2297, %v2214
        %v2299 = vxor.u32 %v2298, 2147483648
        %v2300 = vmul.f32 %v2299, 1.442695
        %v2301 = vpow.pop %v2300
        %v2302 = vadd.f32 %v2301, 1.0
        %v2303 = vrcp.pop %v2302
        %v2304 = vmul.f32 1.0, %v2303
        %s2305 = scalar_lea.vmem [#allocation5], 32
        %v2306 = vld [vmem:[%s2305] sm:$0xff]
        %v2307 = vmul.f32 %v2295, %v2284
        %v2308 = vadd.f32 %v2306, %v2307
        %v2309 = vtanh.pop %v2308
        %v2310 = vsub.f32 1.0, %v2304
        %v2311 = vmul.f32 %v2310, %v2309
        %v2312 = vmul.f32 %v2304, %v2068
        %v2313 = vadd.f32 %v2311, %v2312
        %2315 = vset.pattern.permute.xlu0 0
        %2316 = vperm.xlu0 %2315, %v2073
        %v2317 = vpop.permute.xlu0 %2316
        %v2319 = vmul.f32 %v2317, %v2313
        %v2320 = vsub.f32 1.0, %v2073
        %2322 = vset.pattern.permute.xlu0 0
        %2323 = vperm.xlu0 %2322, %v2320
        %v2324 = vpop.permute.xlu0 %2323
        %v2326 = vmul.f32 %v2324, %v2068
        %v2327 = vadd.f32 %v2319, %v2326
        %s2328 = scalar_lea.vmem [#allocation2], 32
        %2329 = vst.msk [vmem:[%s2328] sm:$0xff] %vm633, %v2319
        %vm2330 = vcmp.gt.s32.totalorder %v1019, 5
        %v2331 = vsel %vm2330, 1, 0
        %v2332 = vcvt.s32.f32 %v2331
        %v2334 = vsel %vm633, %v2327, 0
        %2336 = vmatprep.subr.mxu0 0.0
        %2337 = vmatpush1.msra.mxu0 0.0
        %2338 = vmatprep.subr.mxu0 0.0
        %2339 = vmatpush1.msra.mxu0 0.0
        %2340 = vmatprep.subr.mxu0 0.0
        %2341 = vmatpush1.msra.mxu0 0.0
        %2342 = vmatprep.subr.mxu0 0.0
        %2343 = vmatpush1.msra.mxu0 0.0
        %2344 = vmatprep.subr.mxu0 0.0
        %2345 = vmatpush1.msra.mxu0 0.0
        %2346 = vmatprep.subr.mxu0 0.0
        %2347 = vmatpush1.msra.mxu0 0.0
        %2348 = vmatprep.subr.mxu0 0.0
        %2349 = vmatpush1.msra.mxu0 0.0
        %2350 = vmatprep.subr.mxu0 0.0
        %2351 = vmatpush1.msra.mxu0 0.0
        %2352 = vmatprep.subr.mxu0 0.0
        %2353 = vmatpush1.msra.mxu0 0.0
        %2354 = vmatprep.subr.mxu0 0.0
        %2355 = vmatpush1.msra.mxu0 0.0
        %2356 = vmatprep.subr.mxu0 0.0
        %2357 = vmatpush1.msra.mxu0 0.0
        %2358 = vmatprep.subr.mxu0 0.0
        %2359 = vmatpush1.msra.mxu0 0.0
        %2360 = vmatprep.subr.mxu0 0.0
        %2361 = vmatpush1.msra.mxu0 %v1023
        %2362 = vmatprep.subr.mxu0 0.0
        %2363 = vmatpush1.msra.mxu0 %v1022
        %2364 = vmatprep.subr.mxu0 0.0
        %2365 = vmatpush1.msra.mxu0 %v1021
        %2366 = vmatprep.subr.mxu0 0.0
        %2367 = vmatpush1.msra.mxu0 %v1020
        %2368 = vmatprep.subr.mxu0 0.0
        %2369 = vmatpush2.msra.mxu0 0.0
        %2370 = vmatprep.subr.mxu0 0.0
        %2371 = vmatpush2.msra.mxu0 0.0
        %2372 = vmatprep.subr.mxu0 0.0
        %2373 = vmatpush2.msra.mxu0 0.0
        %2374 = vmatprep.subr.mxu0 0.0
        %2375 = vmatpush2.msra.mxu0 0.0
        %2376 = vmatprep.subr.mxu0 0.0
        %2377 = vmatpush2.msra.mxu0 0.0
        %2378 = vmatprep.subr.mxu0 0.0
        %2379 = vmatpush2.msra.mxu0 0.0
        %2380 = vmatprep.subr.mxu0 0.0
        %2381 = vmatpush2.msra.mxu0 0.0
        %2382 = vmatprep.subr.mxu0 0.0
        %2383 = vmatpush2.msra.mxu0 0.0
        %2384 = vmatprep.subr.mxu0 0.0
        %2385 = vmatpush2.msra.mxu0 0.0
        %2386 = vmatprep.subr.mxu0 0.0
        %2387 = vmatpush2.msra.mxu0 0.0
        %2388 = vmatprep.subr.mxu0 0.0
        %2389 = vmatpush2.msra.mxu0 0.0
        %2390 = vmatprep.subr.mxu0 0.0
        %2391 = vmatpush2.msra.mxu0 0.0
        %2392 = vmatprep.subr.mxu0 0.0
        %2393 = vmatpush2.msra.mxu0 0.0
        %2394 = vmatprep.subr.mxu0 0.0
        %2395 = vmatpush2.msra.mxu0 0.0
        %2396 = vmatprep.subr.mxu0 0.0
        %2397 = vmatpush2.msra.mxu0 0.0
        %2398 = vmatprep.subr.mxu0 0.0
        %2399 = vmatpush2.msra.mxu0 0.0
        %2400 = vmatprep.mubr.f32.mxu0 0.0
        %2401 = vmatmul.mubr.f32.gmra.mxu0 %v2334
        %v2402 = vpop.f32.mrf.mxu0
        %v2403 = vadd.f32 0.0, %v2402
        %v2404 = vpop.f32.mrf.mxu0
        %2405 = vdwg.mxu0
        %2406 = vmatprep.subr.mxu0 0.0
        %2407 = vmatpush1.msra.mxu0 0.0
        %2408 = vmatprep.subr.mxu0 0.0
        %2409 = vmatpush1.msra.mxu0 0.0
        %2410 = vmatprep.subr.mxu0 0.0
        %2411 = vmatpush1.msra.mxu0 0.0
        %2412 = vmatprep.subr.mxu0 0.0
        %2413 = vmatpush1.msra.mxu0 0.0
        %2414 = vmatprep.subr.mxu0 0.0
        %2415 = vmatpush1.msra.mxu0 0.0
        %2416 = vmatprep.subr.mxu0 0.0
        %2417 = vmatpush1.msra.mxu0 0.0
        %2418 = vmatprep.subr.mxu0 0.0
        %2419 = vmatpush1.msra.mxu0 0.0
        %2420 = vmatprep.subr.mxu0 0.0
        %2421 = vmatpush1.msra.mxu0 0.0
        %2422 = vmatprep.subr.mxu0 0.0
        %2423 = vmatpush1.msra.mxu0 0.0
        %2424 = vmatprep.subr.mxu0 0.0
        %2425 = vmatpush1.msra.mxu0 0.0
        %2426 = vmatprep.subr.mxu0 0.0
        %2427 = vmatpush1.msra.mxu0 0.0
        %2428 = vmatprep.subr.mxu0 0.0
        %2429 = vmatpush1.msra.mxu0 0.0
        %2430 = vmatprep.subr.mxu0 0.0
        %2431 = vmatpush1.msra.mxu0 %v1027
        %2432 = vmatprep.subr.mxu0 0.0
        %2433 = vmatpush1.msra.mxu0 %v1026
        %2434 = vmatprep.subr.mxu0 0.0
        %2435 = vmatpush1.msra.mxu0 %v1025
        %2436 = vmatprep.subr.mxu0 0.0
        %2437 = vmatpush1.msra.mxu0 %v1024
        %2438 = vmatprep.subr.mxu0 0.0
        %2439 = vmatpush2.msra.mxu0 0.0
        %2440 = vmatprep.subr.mxu0 0.0
        %2441 = vmatpush2.msra.mxu0 0.0
        %2442 = vmatprep.subr.mxu0 0.0
        %2443 = vmatpush2.msra.mxu0 0.0
        %2444 = vmatprep.subr.mxu0 0.0
        %2445 = vmatpush2.msra.mxu0 0.0
        %2446 = vmatprep.subr.mxu0 0.0
        %2447 = vmatpush2.msra.mxu0 0.0
        %2448 = vmatprep.subr.mxu0 0.0
        %2449 = vmatpush2.msra.mxu0 0.0
        %2450 = vmatprep.subr.mxu0 0.0
        %2451 = vmatpush2.msra.mxu0 0.0
        %2452 = vmatprep.subr.mxu0 0.0
        %2453 = vmatpush2.msra.mxu0 0.0
        %2454 = vmatprep.subr.mxu0 0.0
        %2455 = vmatpush2.msra.mxu0 0.0
        %2456 = vmatprep.subr.mxu0 0.0
        %2457 = vmatpush2.msra.mxu0 0.0
        %2458 = vmatprep.subr.mxu0 0.0
        %2459 = vmatpush2.msra.mxu0 0.0
        %2460 = vmatprep.subr.mxu0 0.0
        %2461 = vmatpush2.msra.mxu0 0.0
        %2462 = vmatprep.subr.mxu0 0.0
        %2463 = vmatpush2.msra.mxu0 0.0
        %2464 = vmatprep.subr.mxu0 0.0
        %2465 = vmatpush2.msra.mxu0 0.0
        %2466 = vmatprep.subr.mxu0 0.0
        %2467 = vmatpush2.msra.mxu0 0.0
        %2468 = vmatprep.subr.mxu0 0.0
        %2469 = vmatpush2.msra.mxu0 0.0
        %2470 = vmatprep.mubr.f32.mxu0 0.0
        %2471 = vmatmul.mubr.f32.gmra.mxu0 %v2334
        %v2472 = vpop.f32.mrf.mxu0
        %v2473 = vadd.f32 0.0, %v2472
        %v2474 = vpop.f32.mrf.mxu0
        %2475 = vdwg.mxu0
        %2476 = vmatprep.subr.mxu0 0.0
        %2477 = vmatpush1.msra.mxu0 0.0
        %2478 = vmatprep.subr.mxu0 0.0
        %2479 = vmatpush1.msra.mxu0 0.0
        %2480 = vmatprep.subr.mxu0 0.0
        %2481 = vmatpush1.msra.mxu0 0.0
        %2482 = vmatprep.subr.mxu0 0.0
        %2483 = vmatpush1.msra.mxu0 0.0
        %2484 = vmatprep.subr.mxu0 0.0
        %2485 = vmatpush1.msra.mxu0 0.0
        %2486 = vmatprep.subr.mxu0 0.0
        %2487 = vmatpush1.msra.mxu0 0.0
        %2488 = vmatprep.subr.mxu0 0.0
        %2489 = vmatpush1.msra.mxu0 0.0
        %2490 = vmatprep.subr.mxu0 0.0
        %2491 = vmatpush1.msra.mxu0 0.0
        %2492 = vmatprep.subr.mxu0 0.0
        %2493 = vmatpush1.msra.mxu0 0.0
        %2494 = vmatprep.subr.mxu0 0.0
        %2495 = vmatpush1.msra.mxu0 0.0
        %2496 = vmatprep.subr.mxu0 0.0
        %2497 = vmatpush1.msra.mxu0 0.0
        %2498 = vmatprep.subr.mxu0 0.0
        %2499 = vmatpush1.msra.mxu0 0.0
        %2500 = vmatprep.subr.mxu0 0.0
        %2501 = vmatpush1.msra.mxu0 %v1031
        %2502 = vmatprep.subr.mxu0 0.0
        %2503 = vmatpush1.msra.mxu0 %v1030
        %2504 = vmatprep.subr.mxu0 0.0
        %2505 = vmatpush1.msra.mxu0 %v1029
        %2506 = vmatprep.subr.mxu0 0.0
        %2507 = vmatpush1.msra.mxu0 %v1028
        %2508 = vmatprep.subr.mxu0 0.0
        %2509 = vmatpush2.msra.mxu0 0.0
        %2510 = vmatprep.subr.mxu0 0.0
        %2511 = vmatpush2.msra.mxu0 0.0
        %2512 = vmatprep.subr.mxu0 0.0
        %2513 = vmatpush2.msra.mxu0 0.0
        %2514 = vmatprep.subr.mxu0 0.0
        %2515 = vmatpush2.msra.mxu0 0.0
        %2516 = vmatprep.subr.mxu0 0.0
        %2517 = vmatpush2.msra.mxu0 0.0
        %2518 = vmatprep.subr.mxu0 0.0
        %2519 = vmatpush2.msra.mxu0 0.0
        %2520 = vmatprep.subr.mxu0 0.0
        %2521 = vmatpush2.msra.mxu0 0.0
        %2522 = vmatprep.subr.mxu0 0.0
        %2523 = vmatpush2.msra.mxu0 0.0
        %2524 = vmatprep.subr.mxu0 0.0
        %2525 = vmatpush2.msra.mxu0 0.0
        %2526 = vmatprep.subr.mxu0 0.0
        %2527 = vmatpush2.msra.mxu0 0.0
        %2528 = vmatprep.subr.mxu0 0.0
        %2529 = vmatpush2.msra.mxu0 0.0
        %2530 = vmatprep.subr.mxu0 0.0
        %2531 = vmatpush2.msra.mxu0 0.0
        %2532 = vmatprep.subr.mxu0 0.0
        %2533 = vmatpush2.msra.mxu0 0.0
        %2534 = vmatprep.subr.mxu0 0.0
        %2535 = vmatpush2.msra.mxu0 0.0
        %2536 = vmatprep.subr.mxu0 0.0
        %2537 = vmatpush2.msra.mxu0 0.0
        %2538 = vmatprep.subr.mxu0 0.0
        %2539 = vmatpush2.msra.mxu0 0.0
        %2540 = vmatprep.mubr.f32.mxu0 0.0
        %2541 = vmatmul.mubr.f32.gmra.mxu0 %v2334
        %v2542 = vpop.f32.mrf.mxu0
        %v2543 = vadd.f32 %v1037, %v2542
        %v2544 = vpop.f32.mrf.mxu0
        %2545 = vdwg.mxu0
        %s2546 = scalar_lea.vmem [#allocation3], 40
        %v2547 = vld [vmem:[%s2546] sm:$0xff]
        %v2548 = vadd.f32 %v2547, %v2403
        %v2549 = vxor.u32 %v2548, 2147483648
        %v2550 = vmul.f32 %v2549, 1.442695
        %v2551 = vpow.pop %v2550
        %v2552 = vadd.f32 %v2551, 1.0
        %v2553 = vrcp.pop %v2552
        %v2554 = vmul.f32 1.0, %v2553
        %s2555 = scalar_lea.vmem [#allocation4], 40
        %v2556 = vld [vmem:[%s2555] sm:$0xff]
        %v2557 = vadd.f32 %v2556, %v2473
        %v2558 = vxor.u32 %v2557, 2147483648
        %v2559 = vmul.f32 %v2558, 1.442695
        %v2560 = vpow.pop %v2559
        %v2561 = vadd.f32 %v2560, 1.0
        %v2562 = vrcp.pop %v2561
        %v2563 = vmul.f32 1.0, %v2562
        %s2564 = scalar_lea.vmem [#allocation5], 40
        %v2565 = vld [vmem:[%s2564] sm:$0xff]
        %v2566 = vmul.f32 %v2554, %v2543
        %v2567 = vadd.f32 %v2565, %v2566
        %v2568 = vtanh.pop %v2567
        %v2569 = vsub.f32 1.0, %v2563
        %v2570 = vmul.f32 %v2569, %v2568
        %v2571 = vmul.f32 %v2563, %v2327
        %v2572 = vadd.f32 %v2570, %v2571
        %2574 = vset.pattern.permute.xlu0 0
        %2575 = vperm.xlu0 %2574, %v2332
        %v2576 = vpop.permute.xlu0 %2575
        %v2578 = vmul.f32 %v2576, %v2572
        %v2579 = vsub.f32 1.0, %v2332
        %2581 = vset.pattern.permute.xlu0 0
        %2582 = vperm.xlu0 %2581, %v2579
        %v2583 = vpop.permute.xlu0 %2582
        %v2585 = vmul.f32 %v2583, %v2327
        %v2586 = vadd.f32 %v2578, %v2585
        %s2587 = scalar_lea.vmem [#allocation2], 40
        %2588 = vst.msk [vmem:[%s2587] sm:$0xff] %vm633, %v2578
        %vm2589 = vcmp.gt.s32.totalorder %v1019, 6
        %v2590 = vsel %vm2589, 1, 0
        %v2591 = vcvt.s32.f32 %v2590
        %v2593 = vsel %vm633, %v2586, 0
        %2595 = vmatprep.subr.mxu0 0.0
        %2596 = vmatpush1.msra.mxu0 0.0
        %2597 = vmatprep.subr.mxu0 0.0
        %2598 = vmatpush1.msra.mxu0 0.0
        %2599 = vmatprep.subr.mxu0 0.0
        %2600 = vmatpush1.msra.mxu0 0.0
        %2601 = vmatprep.subr.mxu0 0.0
        %2602 = vmatpush1.msra.mxu0 0.0
        %2603 = vmatprep.subr.mxu0 0.0
        %2604 = vmatpush1.msra.mxu0 0.0
        %2605 = vmatprep.subr.mxu0 0.0
        %2606 = vmatpush1.msra.mxu0 0.0
        %2607 = vmatprep.subr.mxu0 0.0
        %2608 = vmatpush1.msra.mxu0 0.0
        %2609 = vmatprep.subr.mxu0 0.0
        %2610 = vmatpush1.msra.mxu0 0.0
        %2611 = vmatprep.subr.mxu0 0.0
        %2612 = vmatpush1.msra.mxu0 0.0
        %2613 = vmatprep.subr.mxu0 0.0
        %2614 = vmatpush1.msra.mxu0 0.0
        %2615 = vmatprep.subr.mxu0 0.0
        %2616 = vmatpush1.msra.mxu0 0.0
        %2617 = vmatprep.subr.mxu0 0.0
        %2618 = vmatpush1.msra.mxu0 0.0
        %2619 = vmatprep.subr.mxu0 0.0
        %2620 = vmatpush1.msra.mxu0 %v1023
        %2621 = vmatprep.subr.mxu0 0.0
        %2622 = vmatpush1.msra.mxu0 %v1022
        %2623 = vmatprep.subr.mxu0 0.0
        %2624 = vmatpush1.msra.mxu0 %v1021
        %2625 = vmatprep.subr.mxu0 0.0
        %2626 = vmatpush1.msra.mxu0 %v1020
        %2627 = vmatprep.subr.mxu0 0.0
        %2628 = vmatpush2.msra.mxu0 0.0
        %2629 = vmatprep.subr.mxu0 0.0
        %2630 = vmatpush2.msra.mxu0 0.0
        %2631 = vmatprep.subr.mxu0 0.0
        %2632 = vmatpush2.msra.mxu0 0.0
        %2633 = vmatprep.subr.mxu0 0.0
        %2634 = vmatpush2.msra.mxu0 0.0
        %2635 = vmatprep.subr.mxu0 0.0
        %2636 = vmatpush2.msra.mxu0 0.0
        %2637 = vmatprep.subr.mxu0 0.0
        %2638 = vmatpush2.msra.mxu0 0.0
        %2639 = vmatprep.subr.mxu0 0.0
        %2640 = vmatpush2.msra.mxu0 0.0
        %2641 = vmatprep.subr.mxu0 0.0
        %2642 = vmatpush2.msra.mxu0 0.0
        %2643 = vmatprep.subr.mxu0 0.0
        %2644 = vmatpush2.msra.mxu0 0.0
        %2645 = vmatprep.subr.mxu0 0.0
        %2646 = vmatpush2.msra.mxu0 0.0
        %2647 = vmatprep.subr.mxu0 0.0
        %2648 = vmatpush2.msra.mxu0 0.0
        %2649 = vmatprep.subr.mxu0 0.0
        %2650 = vmatpush2.msra.mxu0 0.0
        %2651 = vmatprep.subr.mxu0 0.0
        %2652 = vmatpush2.msra.mxu0 0.0
        %2653 = vmatprep.subr.mxu0 0.0
        %2654 = vmatpush2.msra.mxu0 0.0
        %2655 = vmatprep.subr.mxu0 0.0
        %2656 = vmatpush2.msra.mxu0 0.0
        %2657 = vmatprep.subr.mxu0 0.0
        %2658 = vmatpush2.msra.mxu0 0.0
        %2659 = vmatprep.mubr.f32.mxu0 0.0
        %2660 = vmatmul.mubr.f32.gmra.mxu0 %v2593
        %v2661 = vpop.f32.mrf.mxu0
        %v2662 = vadd.f32 0.0, %v2661
        %v2663 = vpop.f32.mrf.mxu0
        %2664 = vdwg.mxu0
        %2665 = vmatprep.subr.mxu0 0.0
        %2666 = vmatpush1.msra.mxu0 0.0
        %2667 = vmatprep.subr.mxu0 0.0
        %2668 = vmatpush1.msra.mxu0 0.0
        %2669 = vmatprep.subr.mxu0 0.0
        %2670 = vmatpush1.msra.mxu0 0.0
        %2671 = vmatprep.subr.mxu0 0.0
        %2672 = vmatpush1.msra.mxu0 0.0
        %2673 = vmatprep.subr.mxu0 0.0
        %2674 = vmatpush1.msra.mxu0 0.0
        %2675 = vmatprep.subr.mxu0 0.0
        %2676 = vmatpush1.msra.mxu0 0.0
        %2677 = vmatprep.subr.mxu0 0.0
        %2678 = vmatpush1.msra.mxu0 0.0
        %2679 = vmatprep.subr.mxu0 0.0
        %2680 = vmatpush1.msra.mxu0 0.0
        %2681 = vmatprep.subr.mxu0 0.0
        %2682 = vmatpush1.msra.mxu0 0.0
        %2683 = vmatprep.subr.mxu0 0.0
        %2684 = vmatpush1.msra.mxu0 0.0
        %2685 = vmatprep.subr.mxu0 0.0
        %2686 = vmatpush1.msra.mxu0 0.0
        %2687 = vmatprep.subr.mxu0 0.0
        %2688 = vmatpush1.msra.mxu0 0.0
        %2689 = vmatprep.subr.mxu0 0.0
        %2690 = vmatpush1.msra.mxu0 %v1027
        %2691 = vmatprep.subr.mxu0 0.0
        %2692 = vmatpush1.msra.mxu0 %v1026
        %2693 = vmatprep.subr.mxu0 0.0
        %2694 = vmatpush1.msra.mxu0 %v1025
        %2695 = vmatprep.subr.mxu0 0.0
        %2696 = vmatpush1.msra.mxu0 %v1024
        %2697 = vmatprep.subr.mxu0 0.0
        %2698 = vmatpush2.msra.mxu0 0.0
        %2699 = vmatprep.subr.mxu0 0.0
        %2700 = vmatpush2.msra.mxu0 0.0
        %2701 = vmatprep.subr.mxu0 0.0
        %2702 = vmatpush2.msra.mxu0 0.0
        %2703 = vmatprep.subr.mxu0 0.0
        %2704 = vmatpush2.msra.mxu0 0.0
        %2705 = vmatprep.subr.mxu0 0.0
        %2706 = vmatpush2.msra.mxu0 0.0
        %2707 = vmatprep.subr.mxu0 0.0
        %2708 = vmatpush2.msra.mxu0 0.0
        %2709 = vmatprep.subr.mxu0 0.0
        %2710 = vmatpush2.msra.mxu0 0.0
        %2711 = vmatprep.subr.mxu0 0.0
        %2712 = vmatpush2.msra.mxu0 0.0
        %2713 = vmatprep.subr.mxu0 0.0
        %2714 = vmatpush2.msra.mxu0 0.0
        %2715 = vmatprep.subr.mxu0 0.0
        %2716 = vmatpush2.msra.mxu0 0.0
        %2717 = vmatprep.subr.mxu0 0.0
        %2718 = vmatpush2.msra.mxu0 0.0
        %2719 = vmatprep.subr.mxu0 0.0
        %2720 = vmatpush2.msra.mxu0 0.0
        %2721 = vmatprep.subr.mxu0 0.0
        %2722 = vmatpush2.msra.mxu0 0.0
        %2723 = vmatprep.subr.mxu0 0.0
        %2724 = vmatpush2.msra.mxu0 0.0
        %2725 = vmatprep.subr.mxu0 0.0
        %2726 = vmatpush2.msra.mxu0 0.0
        %2727 = vmatprep.subr.mxu0 0.0
        %2728 = vmatpush2.msra.mxu0 0.0
        %2729 = vmatprep.mubr.f32.mxu0 0.0
        %2730 = vmatmul.mubr.f32.gmra.mxu0 %v2593
        %v2731 = vpop.f32.mrf.mxu0
        %v2732 = vadd.f32 0.0, %v2731
        %v2733 = vpop.f32.mrf.mxu0
        %2734 = vdwg.mxu0
        %2735 = vmatprep.subr.mxu0 0.0
        %2736 = vmatpush1.msra.mxu0 0.0
        %2737 = vmatprep.subr.mxu0 0.0
        %2738 = vmatpush1.msra.mxu0 0.0
        %2739 = vmatprep.subr.mxu0 0.0
        %2740 = vmatpush1.msra.mxu0 0.0
        %2741 = vmatprep.subr.mxu0 0.0
        %2742 = vmatpush1.msra.mxu0 0.0
        %2743 = vmatprep.subr.mxu0 0.0
        %2744 = vmatpush1.msra.mxu0 0.0
        %2745 = vmatprep.subr.mxu0 0.0
        %2746 = vmatpush1.msra.mxu0 0.0
        %2747 = vmatprep.subr.mxu0 0.0
        %2748 = vmatpush1.msra.mxu0 0.0
        %2749 = vmatprep.subr.mxu0 0.0
        %2750 = vmatpush1.msra.mxu0 0.0
        %2751 = vmatprep.subr.mxu0 0.0
        %2752 = vmatpush1.msra.mxu0 0.0
        %2753 = vmatprep.subr.mxu0 0.0
        %2754 = vmatpush1.msra.mxu0 0.0
        %2755 = vmatprep.subr.mxu0 0.0
        %2756 = vmatpush1.msra.mxu0 0.0
        %2757 = vmatprep.subr.mxu0 0.0
        %2758 = vmatpush1.msra.mxu0 0.0
        %2759 = vmatprep.subr.mxu0 0.0
        %2760 = vmatpush1.msra.mxu0 %v1031
        %2761 = vmatprep.subr.mxu0 0.0
        %2762 = vmatpush1.msra.mxu0 %v1030
        %2763 = vmatprep.subr.mxu0 0.0
        %2764 = vmatpush1.msra.mxu0 %v1029
        %2765 = vmatprep.subr.mxu0 0.0
        %2766 = vmatpush1.msra.mxu0 %v1028
        %2767 = vmatprep.subr.mxu0 0.0
        %2768 = vmatpush2.msra.mxu0 0.0
        %2769 = vmatprep.subr.mxu0 0.0
        %2770 = vmatpush2.msra.mxu0 0.0
        %2771 = vmatprep.subr.mxu0 0.0
        %2772 = vmatpush2.msra.mxu0 0.0
        %2773 = vmatprep.subr.mxu0 0.0
        %2774 = vmatpush2.msra.mxu0 0.0
        %2775 = vmatprep.subr.mxu0 0.0
        %2776 = vmatpush2.msra.mxu0 0.0
        %2777 = vmatprep.subr.mxu0 0.0
        %2778 = vmatpush2.msra.mxu0 0.0
        %2779 = vmatprep.subr.mxu0 0.0
        %2780 = vmatpush2.msra.mxu0 0.0
        %2781 = vmatprep.subr.mxu0 0.0
        %2782 = vmatpush2.msra.mxu0 0.0
        %2783 = vmatprep.subr.mxu0 0.0
        %2784 = vmatpush2.msra.mxu0 0.0
        %2785 = vmatprep.subr.mxu0 0.0
        %2786 = vmatpush2.msra.mxu0 0.0
        %2787 = vmatprep.subr.mxu0 0.0
        %2788 = vmatpush2.msra.mxu0 0.0
        %2789 = vmatprep.subr.mxu0 0.0
        %2790 = vmatpush2.msra.mxu0 0.0
        %2791 = vmatprep.subr.mxu0 0.0
        %2792 = vmatpush2.msra.mxu0 0.0
        %2793 = vmatprep.subr.mxu0 0.0
        %2794 = vmatpush2.msra.mxu0 0.0
        %2795 = vmatprep.subr.mxu0 0.0
        %2796 = vmatpush2.msra.mxu0 0.0
        %2797 = vmatprep.subr.mxu0 0.0
        %2798 = vmatpush2.msra.mxu0 0.0
        %2799 = vmatprep.mubr.f32.mxu0 0.0
        %2800 = vmatmul.mubr.f32.gmra.mxu0 %v2593
        %v2801 = vpop.f32.mrf.mxu0
        %v2802 = vadd.f32 %v1037, %v2801
        %v2803 = vpop.f32.mrf.mxu0
        %2804 = vdwg.mxu0
        %s2805 = scalar_lea.vmem [#allocation3], 48
        %v2806 = vld [vmem:[%s2805] sm:$0xff]
        %v2807 = vadd.f32 %v2806, %v2662
        %v2808 = vxor.u32 %v2807, 2147483648
        %v2809 = vmul.f32 %v2808, 1.442695
        %v2810 = vpow.pop %v2809
        %v2811 = vadd.f32 %v2810, 1.0
        %v2812 = vrcp.pop %v2811
        %v2813 = vmul.f32 1.0, %v2812
        %s2814 = scalar_lea.vmem [#allocation4], 48
        %v2815 = vld [vmem:[%s2814] sm:$0xff]
        %v2816 = vadd.f32 %v2815, %v2732
        %v2817 = vxor.u32 %v2816, 2147483648
        %v2818 = vmul.f32 %v2817, 1.442695
        %v2819 = vpow.pop %v2818
        %v2820 = vadd.f32 %v2819, 1.0
        %v2821 = vrcp.pop %v2820
        %v2822 = vmul.f32 1.0, %v2821
        %s2823 = scalar_lea.vmem [#allocation5], 48
        %v2824 = vld [vmem:[%s2823] sm:$0xff]
        %v2825 = vmul.f32 %v2813, %v2802
        %v2826 = vadd.f32 %v2824, %v2825
        %v2827 = vtanh.pop %v2826
        %v2828 = vsub.f32 1.0, %v2822
        %v2829 = vmul.f32 %v2828, %v2827
        %v2830 = vmul.f32 %v2822, %v2586
        %v2831 = vadd.f32 %v2829, %v2830
        %2833 = vset.pattern.permute.xlu0 0
        %2834 = vperm.xlu0 %2833, %v2591
        %v2835 = vpop.permute.xlu0 %2834
        %v2837 = vmul.f32 %v2835, %v2831
        %v2838 = vsub.f32 1.0, %v2591
        %2840 = vset.pattern.permute.xlu0 0
        %2841 = vperm.xlu0 %2840, %v2838
        %v2842 = vpop.permute.xlu0 %2841
        %v2844 = vmul.f32 %v2842, %v2586
        %v2845 = vadd.f32 %v2837, %v2844
        %s2846 = scalar_lea.vmem [#allocation2], 48
        %2847 = vst.msk [vmem:[%s2846] sm:$0xff] %vm633, %v2837
        %vm2848 = vcmp.gt.s32.totalorder %v1019, 7
        %v2849 = vsel %vm2848, 1, 0
        %v2850 = vcvt.s32.f32 %v2849
        %v2852 = vsel %vm633, %v2845, 0
        %2854 = vmatprep.subr.mxu0 0.0
        %2855 = vmatpush1.msra.mxu0 0.0
        %2856 = vmatprep.subr.mxu0 0.0
        %2857 = vmatpush1.msra.mxu0 0.0
        %2858 = vmatprep.subr.mxu0 0.0
        %2859 = vmatpush1.msra.mxu0 0.0
        %2860 = vmatprep.subr.mxu0 0.0
        %2861 = vmatpush1.msra.mxu0 0.0
        %2862 = vmatprep.subr.mxu0 0.0
        %2863 = vmatpush1.msra.mxu0 0.0
        %2864 = vmatprep.subr.mxu0 0.0
        %2865 = vmatpush1.msra.mxu0 0.0
        %2866 = vmatprep.subr.mxu0 0.0
        %2867 = vmatpush1.msra.mxu0 0.0
        %2868 = vmatprep.subr.mxu0 0.0
        %2869 = vmatpush1.msra.mxu0 0.0
        %2870 = vmatprep.subr.mxu0 0.0
        %2871 = vmatpush1.msra.mxu0 0.0
        %2872 = vmatprep.subr.mxu0 0.0
        %2873 = vmatpush1.msra.mxu0 0.0
        %2874 = vmatprep.subr.mxu0 0.0
        %2875 = vmatpush1.msra.mxu0 0.0
        %2876 = vmatprep.subr.mxu0 0.0
        %2877 = vmatpush1.msra.mxu0 0.0
        %2878 = vmatprep.subr.mxu0 0.0
        %2879 = vmatpush1.msra.mxu0 %v1023
        %2880 = vmatprep.subr.mxu0 0.0
        %2881 = vmatpush1.msra.mxu0 %v1022
        %2882 = vmatprep.subr.mxu0 0.0
        %2883 = vmatpush1.msra.mxu0 %v1021
        %2884 = vmatprep.subr.mxu0 0.0
        %2885 = vmatpush1.msra.mxu0 %v1020
        %2886 = vmatprep.subr.mxu0 0.0
        %2887 = vmatpush2.msra.mxu0 0.0
        %2888 = vmatprep.subr.mxu0 0.0
        %2889 = vmatpush2.msra.mxu0 0.0
        %2890 = vmatprep.subr.mxu0 0.0
        %2891 = vmatpush2.msra.mxu0 0.0
        %2892 = vmatprep.subr.mxu0 0.0
        %2893 = vmatpush2.msra.mxu0 0.0
        %2894 = vmatprep.subr.mxu0 0.0
        %2895 = vmatpush2.msra.mxu0 0.0
        %2896 = vmatprep.subr.mxu0 0.0
        %2897 = vmatpush2.msra.mxu0 0.0
        %2898 = vmatprep.subr.mxu0 0.0
        %2899 = vmatpush2.msra.mxu0 0.0
        %2900 = vmatprep.subr.mxu0 0.0
        %2901 = vmatpush2.msra.mxu0 0.0
        %2902 = vmatprep.subr.mxu0 0.0
        %2903 = vmatpush2.msra.mxu0 0.0
        %2904 = vmatprep.subr.mxu0 0.0
        %2905 = vmatpush2.msra.mxu0 0.0
        %2906 = vmatprep.subr.mxu0 0.0
        %2907 = vmatpush2.msra.mxu0 0.0
        %2908 = vmatprep.subr.mxu0 0.0
        %2909 = vmatpush2.msra.mxu0 0.0
        %2910 = vmatprep.subr.mxu0 0.0
        %2911 = vmatpush2.msra.mxu0 0.0
        %2912 = vmatprep.subr.mxu0 0.0
        %2913 = vmatpush2.msra.mxu0 0.0
        %2914 = vmatprep.subr.mxu0 0.0
        %2915 = vmatpush2.msra.mxu0 0.0
        %2916 = vmatprep.subr.mxu0 0.0
        %2917 = vmatpush2.msra.mxu0 0.0
        %2918 = vmatprep.mubr.f32.mxu0 0.0
        %2919 = vmatmul.mubr.f32.gmra.mxu0 %v2852
        %v2920 = vpop.f32.mrf.mxu0
        %v2921 = vadd.f32 0.0, %v2920
        %v2922 = vpop.f32.mrf.mxu0
        %2923 = vdwg.mxu0
        %2924 = vmatprep.subr.mxu0 0.0
        %2925 = vmatpush1.msra.mxu0 0.0
        %2926 = vmatprep.subr.mxu0 0.0
        %2927 = vmatpush1.msra.mxu0 0.0
        %2928 = vmatprep.subr.mxu0 0.0
        %2929 = vmatpush1.msra.mxu0 0.0
        %2930 = vmatprep.subr.mxu0 0.0
        %2931 = vmatpush1.msra.mxu0 0.0
        %2932 = vmatprep.subr.mxu0 0.0
        %2933 = vmatpush1.msra.mxu0 0.0
        %2934 = vmatprep.subr.mxu0 0.0
        %2935 = vmatpush1.msra.mxu0 0.0
        %2936 = vmatprep.subr.mxu0 0.0
        %2937 = vmatpush1.msra.mxu0 0.0
        %2938 = vmatprep.subr.mxu0 0.0
        %2939 = vmatpush1.msra.mxu0 0.0
        %2940 = vmatprep.subr.mxu0 0.0
        %2941 = vmatpush1.msra.mxu0 0.0
        %2942 = vmatprep.subr.mxu0 0.0
        %2943 = vmatpush1.msra.mxu0 0.0
        %2944 = vmatprep.subr.mxu0 0.0
        %2945 = vmatpush1.msra.mxu0 0.0
        %2946 = vmatprep.subr.mxu0 0.0
        %2947 = vmatpush1.msra.mxu0 0.0
        %2948 = vmatprep.subr.mxu0 0.0
        %2949 = vmatpush1.msra.mxu0 %v1027
        %2950 = vmatprep.subr.mxu0 0.0
        %2951 = vmatpush1.msra.mxu0 %v1026
        %2952 = vmatprep.subr.mxu0 0.0
        %2953 = vmatpush1.msra.mxu0 %v1025
        %2954 = vmatprep.subr.mxu0 0.0
        %2955 = vmatpush1.msra.mxu0 %v1024
        %2956 = vmatprep.subr.mxu0 0.0
        %2957 = vmatpush2.msra.mxu0 0.0
        %2958 = vmatprep.subr.mxu0 0.0
        %2959 = vmatpush2.msra.mxu0 0.0
        %2960 = vmatprep.subr.mxu0 0.0
        %2961 = vmatpush2.msra.mxu0 0.0
        %2962 = vmatprep.subr.mxu0 0.0
        %2963 = vmatpush2.msra.mxu0 0.0
        %2964 = vmatprep.subr.mxu0 0.0
        %2965 = vmatpush2.msra.mxu0 0.0
        %2966 = vmatprep.subr.mxu0 0.0
        %2967 = vmatpush2.msra.mxu0 0.0
        %2968 = vmatprep.subr.mxu0 0.0
        %2969 = vmatpush2.msra.mxu0 0.0
        %2970 = vmatprep.subr.mxu0 0.0
        %2971 = vmatpush2.msra.mxu0 0.0
        %2972 = vmatprep.subr.mxu0 0.0
        %2973 = vmatpush2.msra.mxu0 0.0
        %2974 = vmatprep.subr.mxu0 0.0
        %2975 = vmatpush2.msra.mxu0 0.0
        %2976 = vmatprep.subr.mxu0 0.0
        %2977 = vmatpush2.msra.mxu0 0.0
        %2978 = vmatprep.subr.mxu0 0.0
        %2979 = vmatpush2.msra.mxu0 0.0
        %2980 = vmatprep.subr.mxu0 0.0
        %2981 = vmatpush2.msra.mxu0 0.0
        %2982 = vmatprep.subr.mxu0 0.0
        %2983 = vmatpush2.msra.mxu0 0.0
        %2984 = vmatprep.subr.mxu0 0.0
        %2985 = vmatpush2.msra.mxu0 0.0
        %2986 = vmatprep.subr.mxu0 0.0
        %2987 = vmatpush2.msra.mxu0 0.0
        %2988 = vmatprep.mubr.f32.mxu0 0.0
        %2989 = vmatmul.mubr.f32.gmra.mxu0 %v2852
        %v2990 = vpop.f32.mrf.mxu0
        %v2991 = vadd.f32 0.0, %v2990
        %v2992 = vpop.f32.mrf.mxu0
        %2993 = vdwg.mxu0
        %2994 = vmatprep.subr.mxu0 0.0
        %2995 = vmatpush1.msra.mxu0 0.0
        %2996 = vmatprep.subr.mxu0 0.0
        %2997 = vmatpush1.msra.mxu0 0.0
        %2998 = vmatprep.subr.mxu0 0.0
        %2999 = vmatpush1.msra.mxu0 0.0
        %3000 = vmatprep.subr.mxu0 0.0
        %3001 = vmatpush1.msra.mxu0 0.0
        %3002 = vmatprep.subr.mxu0 0.0
        %3003 = vmatpush1.msra.mxu0 0.0
        %3004 = vmatprep.subr.mxu0 0.0
        %3005 = vmatpush1.msra.mxu0 0.0
        %3006 = vmatprep.subr.mxu0 0.0
        %3007 = vmatpush1.msra.mxu0 0.0
        %3008 = vmatprep.subr.mxu0 0.0
        %3009 = vmatpush1.msra.mxu0 0.0
        %3010 = vmatprep.subr.mxu0 0.0
        %3011 = vmatpush1.msra.mxu0 0.0
        %3012 = vmatprep.subr.mxu0 0.0
        %3013 = vmatpush1.msra.mxu0 0.0
        %3014 = vmatprep.subr.mxu0 0.0
        %3015 = vmatpush1.msra.mxu0 0.0
        %3016 = vmatprep.subr.mxu0 0.0
        %3017 = vmatpush1.msra.mxu0 0.0
        %3018 = vmatprep.subr.mxu0 0.0
        %3019 = vmatpush1.msra.mxu0 %v1031
        %3020 = vmatprep.subr.mxu0 0.0
        %3021 = vmatpush1.msra.mxu0 %v1030
        %3022 = vmatprep.subr.mxu0 0.0
        %3023 = vmatpush1.msra.mxu0 %v1029
        %3024 = vmatprep.subr.mxu0 0.0
        %3025 = vmatpush1.msra.mxu0 %v1028
        %3026 = vmatprep.subr.mxu0 0.0
        %3027 = vmatpush2.msra.mxu0 0.0
        %3028 = vmatprep.subr.mxu0 0.0
        %3029 = vmatpush2.msra.mxu0 0.0
        %3030 = vmatprep.subr.mxu0 0.0
        %3031 = vmatpush2.msra.mxu0 0.0
        %3032 = vmatprep.subr.mxu0 0.0
        %3033 = vmatpush2.msra.mxu0 0.0
        %3034 = vmatprep.subr.mxu0 0.0
        %3035 = vmatpush2.msra.mxu0 0.0
        %3036 = vmatprep.subr.mxu0 0.0
        %3037 = vmatpush2.msra.mxu0 0.0
        %3038 = vmatprep.subr.mxu0 0.0
        %3039 = vmatpush2.msra.mxu0 0.0
        %3040 = vmatprep.subr.mxu0 0.0
        %3041 = vmatpush2.msra.mxu0 0.0
        %3042 = vmatprep.subr.mxu0 0.0
        %3043 = vmatpush2.msra.mxu0 0.0
        %3044 = vmatprep.subr.mxu0 0.0
        %3045 = vmatpush2.msra.mxu0 0.0
        %3046 = vmatprep.subr.mxu0 0.0
        %3047 = vmatpush2.msra.mxu0 0.0
        %3048 = vmatprep.subr.mxu0 0.0
        %3049 = vmatpush2.msra.mxu0 0.0
        %3050 = vmatprep.subr.mxu0 0.0
        %3051 = vmatpush2.msra.mxu0 0.0
        %3052 = vmatprep.subr.mxu0 0.0
        %3053 = vmatpush2.msra.mxu0 0.0
        %3054 = vmatprep.subr.mxu0 0.0
        %3055 = vmatpush2.msra.mxu0 0.0
        %3056 = vmatprep.subr.mxu0 0.0
        %3057 = vmatpush2.msra.mxu0 0.0
        %3058 = vmatprep.mubr.f32.mxu0 0.0
        %3059 = vmatmul.mubr.f32.gmra.mxu0 %v2852
        %v3060 = vpop.f32.mrf.mxu0
        %v3061 = vadd.f32 %v1037, %v3060
        %v3062 = vpop.f32.mrf.mxu0
        %3063 = vdwg.mxu0
        %s3064 = scalar_lea.vmem [#allocation3], 56
        %v3065 = vld [vmem:[%s3064] sm:$0xff]
        %v3066 = vadd.f32 %v3065, %v2921
        %v3067 = vxor.u32 %v3066, 2147483648
        %v3068 = vmul.f32 %v3067, 1.442695
        %v3069 = vpow.pop %v3068
        %v3070 = vadd.f32 %v3069, 1.0
        %v3071 = vrcp.pop %v3070
        %v3072 = vmul.f32 1.0, %v3071
        %s3073 = scalar_lea.vmem [#allocation4], 56
        %v3074 = vld [vmem:[%s3073] sm:$0xff]
        %v3075 = vadd.f32 %v3074, %v2991
        %v3076 = vxor.u32 %v3075, 2147483648
        %v3077 = vmul.f32 %v3076, 1.442695
        %v3078 = vpow.pop %v3077
        %v3079 = vadd.f32 %v3078, 1.0
        %v3080 = vrcp.pop %v3079
        %v3081 = vmul.f32 1.0, %v3080
        %s3082 = scalar_lea.vmem [#allocation5], 56
        %v3083 = vld [vmem:[%s3082] sm:$0xff]
        %v3084 = vmul.f32 %v3072, %v3061
        %v3085 = vadd.f32 %v3083, %v3084
        %v3086 = vtanh.pop %v3085
        %v3087 = vsub.f32 1.0, %v3081
        %v3088 = vmul.f32 %v3087, %v3086
        %v3089 = vmul.f32 %v3081, %v2845
        %v3090 = vadd.f32 %v3088, %v3089
        %3092 = vset.pattern.permute.xlu0 0
        %3093 = vperm.xlu0 %3092, %v2850
        %v3094 = vpop.permute.xlu0 %3093
        %v3096 = vmul.f32 %v3094, %v3090
        %v3097 = vsub.f32 1.0, %v2850
        %3099 = vset.pattern.permute.xlu0 0
        %3100 = vperm.xlu0 %3099, %v3097
        %v3101 = vpop.permute.xlu0 %3100
        %v3103 = vmul.f32 %v3101, %v2845
        %v3104 = vadd.f32 %v3096, %v3103
        %s3105 = scalar_lea.vmem [#allocation2], 56
        %3106 = vst.msk [vmem:[%s3105] sm:$0xff] %vm633, %v3096
        %3107 = vst.msk [vmem:[%s550] sm:$0xff] %vm633, %v3104
        %p3108 = scmp.eq.s32.totalorder %s28, 1
        // Predicated region
        $region73: #{encoder_forward_pallas.1} parent=67 // pred_check
          %p3109 = pneg %p3108
        $region74: #{encoder_forward_pallas.1} parent=67 // pred_check_branch
          %3111 = sbr.rel (%p3109) target = $region76
        $region75: #{encoder_forward_pallas.1} parent=67 // pred_region
          %v3112 = vld [vmem:[#allocation2] sm:$0xff]
          %v3113 = vld [vmem:[#allocation2 + $0x8] sm:$0xff]
          %v3114 = vld [vmem:[#allocation2 + $0x10] sm:$0xff]
          %v3115 = vld [vmem:[#allocation2 + $0x18] sm:$0xff]
          %v3116 = vld [vmem:[#allocation2 + $0x20] sm:$0xff]
          %v3117 = vld [vmem:[#allocation2 + $0x28] sm:$0xff]
          %v3118 = vld [vmem:[#allocation2 + $0x30] sm:$0xff]
          %v3119 = vld [vmem:[#allocation2 + $0x38] sm:$0xff]
          %3120 = vst.msk [vmem:[%s12] sm:$0xff] %vm633, %v3112
          %3121 = vst.msk [vmem:[%s12 + $0x8] sm:$0xff] %vm633, %v3113
          %3122 = vst.msk [vmem:[%s12 + $0x10] sm:$0xff] %vm633, %v3114
          %3123 = vst.msk [vmem:[%s12 + $0x18] sm:$0xff] %vm633, %v3115
          %3124 = vst.msk [vmem:[%s12 + $0x20] sm:$0xff] %vm633, %v3116
          %3125 = vst.msk [vmem:[%s12 + $0x28] sm:$0xff] %vm633, %v3117
          %3126 = vst.msk [vmem:[%s12 + $0x30] sm:$0xff] %vm633, %v3118
          %3127 = vst.msk [vmem:[%s12 + $0x38] sm:$0xff] %vm633, %v3119
        $region76: #{encoder_forward_pallas.1} parent=67 // pred_fallthru
          _
        %s3128 = sand.u32 %s359, 1
        %s3129 = scalar_lea.sflag [#allocation7], %s3128
        %s3130 = sand.u32 %s359, 1
        %s3131 = smul.addr %s3130, 8
        %s3132 = scalar_lea.vmem [#allocation6], %s3131
        // Predicated region
        $region77: #{encoder_forward_pallas.1} parent=67 // pred_check
          %p3133 = pneg %p343
        $region78: #{encoder_forward_pallas.1} parent=67 // pred_check_branch
          %3135 = sbr.rel (%p3133) target = $region80
        $region79: #{encoder_forward_pallas.1} parent=67 // pred_region
          _
        $region80: #{encoder_forward_pallas.1} parent=67 // pred_fallthru
          _
        // Predicated region
        $region81: #{encoder_forward_pallas.1} parent=67 // pred_check
          %p3136 = pneg %p369
        $region82: #{encoder_forward_pallas.1} parent=67 // pred_check_branch
          %3138 = sbr.rel (%p3136) target = $region84
        $region83: #{encoder_forward_pallas.1} parent=67 // pred_region
          %s3140 = ssub.s32 128, 128
          %3141 = vsyncadd %s3129, %s3140
          %s3142 = smul.addr %s28, 128
          %s3143 = scalar_lea.hbm %s13, %s3142
          %s3145 = sshll.u32 %s3132, 4
          %s3146 = int_to_ptr.vmem [resolvable:$true] %s3145
          %3148 = dma.vmem_to_hbm [thread:$0]  %s3146, 128, %s3143, %s3129
        $region84: #{encoder_forward_pallas.1} parent=67 // pred_fallthru
          _
        // Predicated region
        $region85: #{encoder_forward_pallas.1} parent=67 // pred_check
          %p3149 = pneg %p343
        $region86: #{encoder_forward_pallas.1} parent=67 // pred_check_branch
          %3151 = sbr.rel (%p3149) target = $region88
        $region87: #{encoder_forward_pallas.1} parent=67 // pred_region
          _
        $region88: #{encoder_forward_pallas.1} parent=67 // pred_fallthru
          _
      $region68: #{encoder_forward_pallas.1} parent=5 // pred_fallthru
        _
      %p3152 = scmp.le.s32.totalorder 2, %s23
      // Predicated region
      $region89: #{encoder_forward_pallas.1} parent=5 // pred_check
        %p3153 = pneg %p3152
      $region90: #{encoder_forward_pallas.1} parent=5 // pred_check_branch
        %3155 = sbr.rel (%p3153) target = $region92
      $region91: #{encoder_forward_pallas.1} parent=5 // pred_region
        %s3156 = ssub.s32 %s23, 2
        // Predicated region
        $region93: #{encoder_forward_pallas.1} parent=91 // pred_check
          %p3157 = pneg %p375
        $region94: #{encoder_forward_pallas.1} parent=91 // pred_check_branch
          %3159 = sbr.rel (%p3157) target = $region96
        $region95: #{encoder_forward_pallas.1} parent=91 // pred_region
          %s3160 = sand.u32 %s360, 1
          %s3161 = scalar_lea.sflag [#allocation7], %s3160
          %s3162 = sand.u32 %s360, 1
          %s3163 = smul.addr %s3162, 8
          %s3164 = scalar_lea.vmem [#allocation6], %s3163
          %3165 = dma.done %s3161, 128
        $region96: #{encoder_forward_pallas.1} parent=91 // pred_fallthru
          _
      $region92: #{encoder_forward_pallas.1} parent=5 // pred_fallthru
        _
    $region6: #{encoder_forward_pallas.1} parent=1 // loop_footer
      %s27 = sadd.s32 1, %s23
    $region7: #{encoder_forward_pallas.1} parent=1 // loop_footer_branch
      %22 = sbr.rel target = $region3
    $region8: #{encoder_forward_pallas.1} parent=1 // loop_exit
      _
    %3166 = vsyncpa [#allocation7], 1
    %s3167 = scalar_lea.sflag [#allocation7], 1
    %3168 = vsyncpa %s3167, 1

</llo_original>
